<compile_context>
chip_gen: v5e
topology: v5e:2x2
jax: 0.10.0
libtpu: 0.0.40
codegen_flags: <defaults>
</compile_context>

<pallas_src>
import functools

import jax
import jax.numpy as jnp
from jax import lax
from jax.experimental import pallas as pl
from jax.experimental.pallas import tpu as pltpu


def _round_up(x, m):
    return ((x + m - 1) // m) * m


# ----------------------------------------------------------------------------
# Pallas kernel: one grid step == (one channel, one H tile).
#   compositing + masked-L1 sum + banded-blur SSIM sum + mask sum
# ----------------------------------------------------------------------------
def _human_scene_loss_kernel(pred_ref, gt_ref, fb_ref, m_ref, bg_ref,
                             bhs_ref, bws_ref,
                             gt_out_ref, scal_ref,
                             tall_ref,
                             *, img_h, img_w, tile_h):
    # pred_ref, gt_ref : (1, HPAD, Wp) VMEM, full padded channel (resident
    #                    across the H-tile axis: index map ignores the tile id)
    # fb_ref           : (1, HPAD, Wp) VMEM humanbody mask (0-padded, resident)
    # m_ref            : (1, TH, Wp)   VMEM loss-mask tile (0-padded)
    # bg_ref           : (C,)          SMEM human background color
    # bhs_ref          : (TH, TH+16)   VMEM row-blur band strip (constant)
    # bws_ref          : (TW+256, TW)  VMEM column-blur band strip (constant)
    # gt_out_ref       : (1, TH, Wp)   VMEM composited gt (extras['gt_img'])
    # scal_ref         : (1, 1, 8,128) VMEM; row0 lanes [0..2] = l1, ssim, mask
    # tall_ref         : (5*TH, Wp+256) VMEM column-blur staging (5 maps stacked)
    C1 = jnp.float32(0.01 ** 2)
    C2 = jnp.float32(0.03 ** 2)
    c = pl.program_id(0)
    t = pl.program_id(1)

    TH = tile_h
    THW = TH + 16                      # row window = 8-row halo top + bottom
    Wp = pred_ref.shape[2]
    KW, TW = bws_ref.shape             # column window width / output tile width
    nW = Wp // TW

    # 8-row-halo'd window of this H tile, read from the resident channel image.
    row0 = pl.multiple_of(t * TH, 8)            # padded-row coordinate of start
    p_win = pred_ref[0, pl.ds(row0, THW), :]    # (THW, Wp)
    gt_win = gt_ref[0, pl.ds(row0, THW), :]
    fb_win = fb_ref[0, pl.ds(row0, THW), :]
    bgc = bg_ref[c]

    # gt compositing against the human background color.  Zero it outside the
    # real HxW image so the blur sees the same zero padding as F.conv2d.
    rr = lax.broadcasted_iota(jnp.int32, (THW, Wp), 0) + row0
    cc = lax.broadcasted_iota(jnp.int32, (THW, Wp), 1)
    in_img = (rr >= 8) & (rr < 8 + img_h) & (cc < img_w)
    g_win = jnp.where(in_img, gt_win * fb_win + bgc * (1.0 - fb_win), 0.0)

    p_core = p_win[8:8 + TH, :]
    g_core = g_win[8:8 + TH, :]
    m_core = m_ref[0]
    gt_out_ref[0] = g_core                      # Wp multiple of 128: aligned vst

    # masked L1 (mask is 0 in the padded region, pred/gt are 0 there too)
    l1_sum = jnp.sum(jnp.abs(p_core - g_core) * m_core)

    # ---- SSIM: banded separable 11-tap gaussian blur on the MXU --------------
    # Row blur: per map, (TH, TH+16) strip @ (TH+16, Wp) halo window -> (TH, Wp),
    # written at a 128-lane offset so every column window below starts aligned.
    tall_ref[:, 0:128] = jnp.zeros((5 * TH, 128), jnp.float32)
    tall_ref[:, 128 + Wp:256 + Wp] = jnp.zeros((5 * TH, 128), jnp.float32)
    bhs = bhs_ref[...]
    map_fns = (lambda: p_win,
               lambda: g_win,
               lambda: p_win * p_win,
               lambda: g_win * g_win,
               lambda: p_win * g_win)
    for k, fn in enumerate(map_fns):
        tall_ref[k * TH:(k + 1) * TH, 128:128 + Wp] = jnp.dot(
            bhs, fn(), preferred_element_type=jnp.float32)

    # Column blur + SSIM reduction: one aligned (5*TH, KW) @ (KW, TW) matmul per
    # W tile, covering all 5 maps at once.  No restack copies, no extra scratch.
    bws = bws_ref[...]
    r_t = lax.broadcasted_iota(jnp.int32, (TH, TW), 0) + row0   # original rows
    c_base = lax.broadcasted_iota(jnp.int32, (TH, TW), 1)
    row_ok = r_t < img_h
    ssim_sum = jnp.float32(0.0)
    for wj in range(nW):
        col0 = wj * TW                          # lane-aligned window start
        blk = jnp.dot(tall_ref[:, col0:col0 + KW], bws,
                      preferred_element_type=jnp.float32)        # (5*TH, TW)
        mu1 = blk[0 * TH:1 * TH, :]
        mu2 = blk[1 * TH:2 * TH, :]
        e_pp = blk[2 * TH:3 * TH, :]
        e_gg = blk[3 * TH:4 * TH, :]
        e_pg = blk[4 * TH:5 * TH, :]
        mu1_sq = mu1 * mu1
        mu2_sq = mu2 * mu2
        mu12 = mu1 * mu2
        s1 = e_pp - mu1_sq
        s2 = e_gg - mu2_sq
        s12 = e_pg - mu12
        num = (2.0 * mu12 + C1) * (2.0 * s12 + C2)
        den = (mu1_sq + mu2_sq + C1) * (s1 + s2 + C2)
        # den >= C1*C2 > 0 everywhere, so the EUP approximate reciprocal is safe.
        smap = num * pl.reciprocal(den, approx=True)
        ok = row_ok & (c_base + col0 < img_w)   # exclude alignment padding
        ssim_sum = ssim_sum + jnp.sum(jnp.where(ok, smap, 0.0))

    # pack the scalars into a lane-dense (8, 128) tile (row 0, lanes 0..2)
    lane = lax.broadcasted_iota(jnp.int32, (8, 128), 1)
    sub = lax.broadcasted_iota(jnp.int32, (8, 128), 0)
    base = (jnp.where((sub == 0) & (lane == 0), l1_sum, 0.0)
            + jnp.where((sub == 0) & (lane == 1), ssim_sum, 0.0))
    scal_ref[0, 0] = base

    @pl.when(c == 0)           # mask.sum() is channel-invariant: do it once
    def _():
        scal_ref[0, 0] = base + jnp.where((sub == 0) & (lane == 2),
                                          jnp.sum(m_core), 0.0)


# ----------------------------------------------------------------------------
# Gaussian window + band strips (match the GS ssim(): gaussian(11, 1.5))
# ----------------------------------------------------------------------------
def _gaussian_1d(window_size=11, sigma=1.5):
    xs = jnp.arange(window_size, dtype=jnp.float32)
    g = jnp.exp(-((xs - window_size // 2) ** 2) / (2.0 * sigma ** 2))
    return g / jnp.sum(g)


def _row_band_strip(tile_h, g1d):
    # S[i, j] = g[j - i - 3] for j - i in [3, 13]; window rows carry an 8-row
    # halo on each side of the TH output rows.  Shape (TH, TH + 16).
    taps = g1d.shape[0]
    i = jnp.arange(tile_h)[:, None]
    j = jnp.arange(tile_h + 16)[None, :]
    d = j - i - 3
    ok = (d >= 0) & (d < taps)
    return jnp.where(ok, g1d[jnp.clip(d, 0, taps - 1)], 0.0).astype(jnp.float32)


def _col_band_strip(tile_w, g1d):
    # S[j, k] = g[j - k - 123] for j - k in [123, 133]; the row-blurred data sits
    # at a 128-lane offset inside each (TW + 256)-wide window so every window
    # start is lane-aligned.  Shape (TW + 256, TW).
    taps = g1d.shape[0]
    j = jnp.arange(tile_w + 256)[:, None]
    k = jnp.arange(tile_w)[None, :]
    d = j - k - 123
    ok = (d >= 0) & (d < taps)
    return jnp.where(ok, g1d[jnp.clip(d, 0, taps - 1)], 0.0).astype(jnp.float32)


def _band_matrix(n, n_pad, w):
    # Dense band matrix (reference only): A[i,j] = w[j-i+P] if |j-i|<=P, i,j<n.
    P = (w.shape[0] - 1) // 2
    idx = jnp.arange(n_pad)
    diff = idx[None, :] - idx[:, None] + P
    valid = ((diff >= 0) & (diff < w.shape[0])
             & (idx[None, :] < n) & (idx[:, None] < n))
    diffc = jnp.clip(diff, 0, w.shape[0] - 1)
    return jnp.where(valid, w[diffc], 0.0).astype(jnp.float32)


# ----------------------------------------------------------------------------
# Wrapper
# ----------------------------------------------------------------------------
@jax.jit
def human_scene_loss(pred_img, gt_image, humanbody_mask, mask, human_bg_color,
                     l_l1_w=0.8, l_ssim_w=0.2):
    """render_mode='human' forward of HumanSceneLoss with default weights.

    pred_img, gt_image : (C, H, W) float32
    humanbody_mask     : (H, W)    float32 in [0, 1]
    mask               : (H, W)    float32 in [0, 1]
    human_bg_color     : (C,)      float32
    Returns (loss, loss_dict, extras_dict).
    """
    C, H, W = pred_img.shape

    # H tiling: balanced tiles, multiple of 8, row-blur contraction (TH+16)<=256
    nH = -(-H // 240)
    TH = _round_up(-(-H // nH), 8)
    Hcore = nH * TH
    HPAD = Hcore + 16                  # 8-row zero halo top + bottom (>= 5 taps)

    # W tiling: 256-wide output tiles, 512-wide lane-aligned column-blur windows
    TW = 256
    Wp = _round_up(W, TW)
    KW = TW + 256

    pad_hw = ((0, 0), (8, HPAD - 8 - H), (0, Wp - W))
    pred = jnp.pad(pred_img.astype(jnp.float32), pad_hw)
    gt = jnp.pad(gt_image.astype(jnp.float32), pad_hw)
    fb = jnp.pad(humanbody_mask.astype(jnp.float32)[None], pad_hw)
    m = jnp.pad(mask.astype(jnp.float32)[None],
                ((0, 0), (0, Hcore - H), (0, Wp - W)))

    g1d = _gaussian_1d()
    bhs = _row_band_strip(TH, g1d)          # constant-folded at compile time
    bws = _col_band_strip(TW, g1d)

    # Scoped VMEM sized to the real working set (defaults are 16/32 MiB which a
    # 512+ resolution working set exceeds).  Headroom re-derived per call.
    fp = 4
    vmem_work = fp * (
        2 * 2 * HPAD * Wp                    # pred + gt blocks, double-buffered
        + 2 * HPAD * Wp                      # humanbody mask block
        + 2 * 2 * TH * Wp                    # loss-mask tile + composited-gt tile
        + 5 * TH * (Wp + 256)                # column-blur staging scratch
        + 2 * (TH * (TH + 16) + KW * TW)     # band strips
        + 8 * (TH + 16) * Wp                 # in-kernel temporaries (maps)
        + 2 * 5 * TH * (KW + TW))            # column matmul operand/result temps
    vmem_limit = int(min(110 * 2 ** 20, max(32 * 2 ** 20, vmem_work + 8 * 2 ** 20)))

    flops = C * nH * (2 * 5 * TH * (TH + 16) * Wp     # banded row blur
                      + 2 * 5 * TH * KW * Wp          # banded column blur
                      + 40 * (TH + 16) * Wp)          # elementwise
    bytes_accessed = fp * ((2 * C + 1) * HPAD * Wp + (C + 1) * Hcore * Wp
                           + C * nH * 8 * 128 + C)
    cost = pl.CostEstimate(flops=int(flops),
                           transcendentals=int(C * Hcore * Wp),
                           bytes_accessed=int(bytes_accessed))

    kernel = functools.partial(_human_scene_loss_kernel,
                               img_h=H, img_w=W, tile_h=TH)
    gt_comp_p, scal = pl.pallas_call(
        kernel,
        grid=(C, nH),
        out_shape=(jax.ShapeDtypeStruct((C, Hcore, Wp), jnp.float32),
                   jax.ShapeDtypeStruct((C, nH, 8, 128), jnp.float32)),
        in_specs=[
            pl.BlockSpec((1, HPAD, Wp), lambda ci, ti: (ci, 0, 0)),   # pred
            pl.BlockSpec((1, HPAD, Wp), lambda ci, ti: (ci, 0, 0)),   # gt (raw)
            pl.BlockSpec((1, HPAD, Wp), lambda ci, ti: (0, 0, 0)),    # humanbody mask
            pl.BlockSpec((1, TH, Wp), lambda ci, ti: (0, ti, 0)),     # loss-mask tile
            pl.BlockSpec(memory_space=pltpu.MemorySpace.SMEM),        # bg color
            pl.BlockSpec((TH, TH + 16), lambda ci, ti: (0, 0)),       # row band strip
            pl.BlockSpec((KW, TW), lambda ci, ti: (0, 0)),            # col band strip
        ],
        out_specs=(
            pl.BlockSpec((1, TH, Wp), lambda ci, ti: (ci, ti, 0)),       # composited gt
            pl.BlockSpec((1, 1, 8, 128), lambda ci, ti: (ci, ti, 0, 0)),  # scalars
        ),
        scratch_shapes=[pltpu.VMEM((5 * TH, Wp + 256), jnp.float32)],
        compiler_params=pltpu.CompilerParams(
            dimension_semantics=("parallel", "parallel"),
            vmem_limit_bytes=vmem_limit),
        cost_estimate=cost,
    )(pred, gt, fb, m, human_bg_color.astype(jnp.float32), bhs, bws)

    l1_sum = jnp.sum(scal[:, :, 0, 0])
    ssim_sum = jnp.sum(scal[:, :, 0, 1])
    mask_sum = jnp.sum(scal[0, :, 0, 2])

    n_elem = jnp.float32(C * H * W)
    Ll1 = l1_sum / n_elem
    ssim_val = ssim_sum / n_elem
    loss_ssim = (1.0 - ssim_val) * (mask_sum / jnp.float32(H * W))

    loss_dict = {
        'l1': l_l1_w * Ll1,
        'ssim': l_ssim_w * loss_ssim,
    }
    loss = loss_dict['l1'] + loss_dict['ssim']
    extras_dict = {'gt_img': gt_comp_p[:, :H, :W], 'pred_img': pred_img}
    return loss, loss_dict, extras_dict


# ----------------------------------------------------------------------------
# Pure-JAX reference (same math, no Pallas) for a sanity check
# ----------------------------------------------------------------------------
def _reference(pred_img, gt_image, humanbody_mask, mask, human_bg_color,
               l_l1_w=0.8, l_ssim_w=0.2):
    C, H, W = pred_img.shape
    fb = humanbody_mask[None]
    m = mask[None]
    gt = gt_image * fb + human_bg_color[:, None, None] * (1.0 - fb)
    Ll1 = jnp.mean(jnp.abs(pred_img - gt) * m)

    g1d = _gaussian_1d()
    bh = _band_matrix(H, H, g1d)
    bw = _band_matrix(W, W, g1d)
    blur = lambda x: jnp.einsum('ij,cjk,kl->cil', bh, x, bw)
    C1, C2 = 0.01 ** 2, 0.03 ** 2
    mu1, mu2 = blur(pred_img), blur(gt)
    s1 = blur(pred_img * pred_img) - mu1 * mu1
    s2 = blur(gt * gt) - mu2 * mu2
    s12 = blur(pred_img * gt) - mu1 * mu2
    ssim_map = ((2 * mu1 * mu2 + C1) * (2 * s12 + C2)) / (
        (mu1 * mu1 + mu2 * mu2 + C1) * (s1 + s2 + C2))
    loss_ssim = (1.0 - jnp.mean(ssim_map)) * (jnp.sum(m) / (H * W))
    return l_l1_w * Ll1 + l_ssim_w * loss_ssim, gt


if __name__ == "__main__":
    key = jax.random.PRNGKey(0)
    k1, k2, k3, k4 = jax.random.split(key, 4)

    C, H, W = 3, 64, 64
    gt_image = jax.random.uniform(k1, (C, H, W), dtype=jnp.float32)
    pred_img = jax.random.uniform(k2, (C, H, W), dtype=jnp.float32)
    # binary-ish masks (as in the dataset: {0,1} float masks)
    humanbody_mask = (jax.random.uniform(k3, (H, W)) > 0.5).astype(jnp.float32)
    mask = (jax.random.uniform(k4, (H, W)) > 0.4).astype(jnp.float32)
    human_bg_color = jnp.ones((C,), dtype=jnp.float32)   # bg_color='white'

    loss, loss_dict, extras = human_scene_loss(
        pred_img, gt_image, humanbody_mask, mask, human_bg_color)
    loss = jax.block_until_ready(loss)
    jax.block_until_ready(extras['gt_img'])

    ref_loss, ref_gt = _reference(pred_img, gt_image, humanbody_mask, mask,
                                  human_bg_color)
    assert extras['gt_img'].shape == (C, H, W)
    assert jnp.allclose(extras['gt_img'], ref_gt, rtol=1e-5, atol=1e-5)
    assert bool(jnp.isfinite(loss))
    # rtol loosened slightly because of the EUP approximate reciprocal in SSIM
    assert jnp.allclose(loss, ref_loss, rtol=2e-3, atol=2e-4), (loss, ref_loss)
    print("KERNEL_OK")
</pallas_src>

<mosaic_0001>
module attributes {stable_mosaic.version = 11 : i64} {
  func.func @_human_scene_loss_kernel(%arg0: i32, %arg1: i32, %arg2: memref<1x80x256xf32, #tpu.memory_space<vmem>>, %arg3: memref<1x80x256xf32, #tpu.memory_space<vmem>>, %arg4: memref<1x80x256xf32, #tpu.memory_space<vmem>>, %arg5: memref<1x64x256xf32, #tpu.memory_space<vmem>>, %arg6: memref<3xf32, #tpu.memory_space<smem>>, %arg7: memref<64x80xf32, #tpu.memory_space<vmem>>, %arg8: memref<512x256xf32, #tpu.memory_space<vmem>>, %arg9: memref<1x64x256xf32, #tpu.memory_space<vmem>>, %arg10: memref<1x1x8x128xf32, #tpu.memory_space<vmem>>, %arg11: memref<320x512xf32, #tpu.memory_space<vmem>>) attributes {dimension_semantics = [#tpu.dimension_semantics<parallel>, #tpu.dimension_semantics<parallel>], iteration_bounds = array<i64: 3, 1>, scalar_prefetch = 0 : i64, scratch_operands = 1 : i64, tpu.core_type = #tpu.core_type<tc>, window_params = [{transform_indices = @transform_0, window_bounds = array<i64: 1, 80, 256>}, {transform_indices = @transform_1, window_bounds = array<i64: 1, 80, 256>}, {pipeline_mode = #tpu.pipeline_mode<synchronous>, transform_indices = @transform_2, window_bounds = array<i64: 1, 80, 256>}, {transform_indices = @transform_3, window_bounds = array<i64: 1, 64, 256>}, {transform_indices = @transform_4, window_bounds = array<i64: 3>}, {pipeline_mode = #tpu.pipeline_mode<synchronous>, transform_indices = @transform_5, window_bounds = array<i64: 64, 80>}, {pipeline_mode = #tpu.pipeline_mode<synchronous>, transform_indices = @transform_6, window_bounds = array<i64: 512, 256>}, {transform_indices = @transform_7, window_bounds = array<i64: 1, 64, 256>}, {transform_indices = @transform_8, window_bounds = array<i64: 1, 1, 8, 128>}]} {
    %c64_i32 = arith.constant 64 : i32
    %0 = arith.muli %arg1, %c64_i32 : i32
    %1 = tpu.assume_multiple %0, 8 : i32
    %c0 = arith.constant 0 : index
    %2 = arith.index_cast %1 : i32 to index
    %c0_0 = arith.constant 0 : index
    %3 = vector.load %arg2[%c0, %2, %c0_0] : memref<1x80x256xf32, #tpu.memory_space<vmem>>, vector<1x80x256xf32>
    %4 = vector.shape_cast %3 : vector<1x80x256xf32> to vector<80x256xf32>
    %c0_1 = arith.constant 0 : index
    %5 = arith.index_cast %1 : i32 to index
    %c0_2 = arith.constant 0 : index
    %6 = vector.load %arg3[%c0_1, %5, %c0_2] : memref<1x80x256xf32, #tpu.memory_space<vmem>>, vector<1x80x256xf32>
    %7 = vector.shape_cast %6 : vector<1x80x256xf32> to vector<80x256xf32>
    %c0_3 = arith.constant 0 : index
    %8 = arith.index_cast %1 : i32 to index
    %c0_4 = arith.constant 0 : index
    %9 = vector.load %arg4[%c0_3, %8, %c0_4] : memref<1x80x256xf32, #tpu.memory_space<vmem>>, vector<1x80x256xf32>
    %10 = vector.shape_cast %9 : vector<1x80x256xf32> to vector<80x256xf32>
    %11 = arith.index_cast %arg0 : i32 to index
    %12 = memref.load %arg6[%11] : memref<3xf32, #tpu.memory_space<smem>>
    %13 = tpu.iota {dimensions = array<i32: 0>} : vector<80x256xi32>
    %14 = vector.broadcast %1 : i32 to vector<80x256xi32>
    %15 = arith.addi %13, %14 : vector<80x256xi32>
    %16 = tpu.iota {dimensions = array<i32: 1>} : vector<80x256xi32>
    %c8_i32 = arith.constant 8 : i32
    %17 = vector.broadcast %c8_i32 : i32 to vector<80x256xi32>
    %18 = arith.cmpi sge, %15, %17 : vector<80x256xi32>
    %c72_i32 = arith.constant 72 : i32
    %19 = vector.broadcast %c72_i32 : i32 to vector<80x256xi32>
    %20 = arith.cmpi slt, %15, %19 : vector<80x256xi32>
    %21 = arith.andi %18, %20 : vector<80x256xi1>
    %c64_i32_5 = arith.constant 64 : i32
    %22 = vector.broadcast %c64_i32_5 : i32 to vector<80x256xi32>
    %23 = arith.cmpi slt, %16, %22 : vector<80x256xi32>
    %24 = arith.andi %21, %23 : vector<80x256xi1>
    %25 = arith.mulf %7, %10 : vector<80x256xf32>
    %cst = arith.constant 1.000000e+00 : f32
    %26 = vector.broadcast %cst : f32 to vector<80x256xf32>
    %27 = arith.subf %26, %10 : vector<80x256xf32>
    %28 = vector.broadcast %12 : f32 to vector<80x256xf32>
    %29 = arith.mulf %28, %27 : vector<80x256xf32>
    %30 = arith.addf %25, %29 : vector<80x256xf32>
    %cst_6 = arith.constant 0.000000e+00 : f32
    %31 = vector.broadcast %cst_6 : f32 to vector<80x256xf32>
    %32 = arith.select %24, %30, %31 : vector<80x256xi1>, vector<80x256xf32>
    %33 = vector.extract_strided_slice %4 {offsets = [8, 0], sizes = [64, 256], strides = [1, 1]} : vector<80x256xf32> to vector<64x256xf32>
    %34 = vector.extract_strided_slice %32 {offsets = [8, 0], sizes = [64, 256], strides = [1, 1]} : vector<80x256xf32> to vector<64x256xf32>
    %c0_7 = arith.constant 0 : index
    %c0_8 = arith.constant 0 : index
    %c0_9 = arith.constant 0 : index
    %35 = vector.load %arg5[%c0_7, %c0_8, %c0_9] : memref<1x64x256xf32, #tpu.memory_space<vmem>>, vector<1x64x256xf32>
    %36 = vector.shape_cast %35 : vector<1x64x256xf32> to vector<64x256xf32>
    %c0_10 = arith.constant 0 : index
    %c0_11 = arith.constant 0 : index
    %c0_12 = arith.constant 0 : index
    %37 = vector.load %arg9[%c0_10, %c0_11, %c0_12] : memref<1x64x256xf32, #tpu.memory_space<vmem>>, vector<1x64x256xf32>
    %38 = vector.shape_cast %37 : vector<1x64x256xf32> to vector<64x256xf32>
    %39 = vector.shape_cast %34 : vector<64x256xf32> to vector<1x64x256xf32>
    tpu.vector_store %arg9[%c0_10, %c0_11, %c0_12], %39 {strides = array<i32>} : memref<1x64x256xf32, #tpu.memory_space<vmem>>, vector<1x64x256xf32>,
    %40 = arith.subf %33, %34 : vector<64x256xf32>
    %41 = math.absf %40 : vector<64x256xf32>
    %42 = arith.mulf %41, %36 : vector<64x256xf32>
    %43 = vector.shape_cast %42 : vector<64x256xf32> to vector<1x64x256xf32>
    %cst_13 = arith.constant dense<0.000000e+00> : vector<1xf32>
    %44 = vector.multi_reduction <add>, %43, %cst_13 [1, 2] : vector<1x64x256xf32> to vector<1xf32>
    %45 = vector.shape_cast %44 : vector<1xf32> to vector<1x1x1xf32>
    %46 = vector.extract %45[0, 0, 0] : f32 from vector<1x1x1xf32>
    %cst_14 = arith.constant 0.000000e+00 : f32
    %47 = vector.broadcast %cst_14 : f32 to vector<320x128xf32>
    %c0_15 = arith.constant 0 : index
    %c0_16 = arith.constant 0 : index
    %48 = vector.load %arg11[%c0_15, %c0_16] : memref<320x512xf32, #tpu.memory_space<vmem>>, vector<320x128xf32>
    tpu.vector_store %arg11[%c0_15, %c0_16], %47 {strides = array<i32>} : memref<320x512xf32, #tpu.memory_space<vmem>>, vector<320x128xf32>,
    %cst_17 = arith.constant 0.000000e+00 : f32
    %49 = vector.broadcast %cst_17 : f32 to vector<320x128xf32>
    %c0_18 = arith.constant 0 : index
    %c384 = arith.constant 384 : index
    %50 = vector.load %arg11[%c0_18, %c384] : memref<320x512xf32, #tpu.memory_space<vmem>>, vector<320x128xf32>
    tpu.vector_store %arg11[%c0_18, %c384], %49 {strides = array<i32>} : memref<320x512xf32, #tpu.memory_space<vmem>>, vector<320x128xf32>,
    %c0_19 = arith.constant 0 : index
    %c0_20 = arith.constant 0 : index
    %51 = vector.load %arg7[%c0_19, %c0_20] : memref<64x80xf32, #tpu.memory_space<vmem>>, vector<64x80xf32>
    %cst_21 = arith.constant dense<0.000000e+00> : vector<64x256xf32>
    %52 = tpu.matmul %51, %4, %cst_21 {dimension_numbers = #tpu.dot_dimension_numbers<[1], [0], [0], [1], [0, 0, 1, 1], [], []>} : vector<64x80xf32>, vector<80x256xf32>, vector<64x256xf32> -> vector<64x256xf32>
    %c0_22 = arith.constant 0 : index
    %c128 = arith.constant 128 : index
    %53 = vector.load %arg11[%c0_22, %c128] : memref<320x512xf32, #tpu.memory_space<vmem>>, vector<64x256xf32>
    tpu.vector_store %arg11[%c0_22, %c128], %52 {strides = array<i32>} : memref<320x512xf32, #tpu.memory_space<vmem>>, vector<64x256xf32>,
    %cst_23 = arith.constant dense<0.000000e+00> : vector<64x256xf32>
    %54 = tpu.matmul %51, %32, %cst_23 {dimension_numbers = #tpu.dot_dimension_numbers<[1], [0], [0], [1], [0, 0, 1, 1], [], []>} : vector<64x80xf32>, vector<80x256xf32>, vector<64x256xf32> -> vector<64x256xf32>
    %c64 = arith.constant 64 : index
    %c128_24 = arith.constant 128 : index
    %55 = vector.load %arg11[%c64, %c128_24] : memref<320x512xf32, #tpu.memory_space<vmem>>, vector<64x256xf32>
    tpu.vector_store %arg11[%c64, %c128_24], %54 {strides = array<i32>} : memref<320x512xf32, #tpu.memory_space<vmem>>, vector<64x256xf32>,
    %56 = arith.mulf %4, %4 : vector<80x256xf32>
    %cst_25 = arith.constant dense<0.000000e+00> : vector<64x256xf32>
    %57 = tpu.matmul %51, %56, %cst_25 {dimension_numbers = #tpu.dot_dimension_numbers<[1], [0], [0], [1], [0, 0, 1, 1], [], []>} : vector<64x80xf32>, vector<80x256xf32>, vector<64x256xf32> -> vector<64x256xf32>
    %c128_26 = arith.constant 128 : index
    %c128_27 = arith.constant 128 : index
    %58 = vector.load %arg11[%c128_26, %c128_27] : memref<320x512xf32, #tpu.memory_space<vmem>>, vector<64x256xf32>
    tpu.vector_store %arg11[%c128_26, %c128_27], %57 {strides = array<i32>} : memref<320x512xf32, #tpu.memory_space<vmem>>, vector<64x256xf32>,
    %59 = arith.mulf %32, %32 : vector<80x256xf32>
    %cst_28 = arith.constant dense<0.000000e+00> : vector<64x256xf32>
    %60 = tpu.matmul %51, %59, %cst_28 {dimension_numbers = #tpu.dot_dimension_numbers<[1], [0], [0], [1], [0, 0, 1, 1], [], []>} : vector<64x80xf32>, vector<80x256xf32>, vector<64x256xf32> -> vector<64x256xf32>
    %c192 = arith.constant 192 : index
    %c128_29 = arith.constant 128 : index
    %61 = vector.load %arg11[%c192, %c128_29] : memref<320x512xf32, #tpu.memory_space<vmem>>, vector<64x256xf32>
    tpu.vector_store %arg11[%c192, %c128_29], %60 {strides = array<i32>} : memref<320x512xf32, #tpu.memory_space<vmem>>, vector<64x256xf32>,
    %62 = arith.mulf %4, %32 : vector<80x256xf32>
    %cst_30 = arith.constant dense<0.000000e+00> : vector<64x256xf32>
    %63 = tpu.matmul %51, %62, %cst_30 {dimension_numbers = #tpu.dot_dimension_numbers<[1], [0], [0], [1], [0, 0, 1, 1], [], []>} : vector<64x80xf32>, vector<80x256xf32>, vector<64x256xf32> -> vector<64x256xf32>
    %c256 = arith.constant 256 : index
    %c128_31 = arith.constant 128 : index
    %64 = vector.load %arg11[%c256, %c128_31] : memref<320x512xf32, #tpu.memory_space<vmem>>, vector<64x256xf32>
    tpu.vector_store %arg11[%c256, %c128_31], %63 {strides = array<i32>} : memref<320x512xf32, #tpu.memory_space<vmem>>, vector<64x256xf32>,
    %c0_32 = arith.constant 0 : index
    %c0_33 = arith.constant 0 : index
    %65 = vector.load %arg8[%c0_32, %c0_33] : memref<512x256xf32, #tpu.memory_space<vmem>>, vector<512x256xf32>
    %66 = tpu.iota {dimensions = array<i32: 0>} : vector<64x256xi32>
    %67 = vector.broadcast %1 : i32 to vector<64x256xi32>
    %68 = arith.addi %66, %67 : vector<64x256xi32>
    %69 = tpu.iota {dimensions = array<i32: 1>} : vector<64x256xi32>
    %c64_i32_34 = arith.constant 64 : i32
    %70 = vector.broadcast %c64_i32_34 : i32 to vector<64x256xi32>
    %71 = arith.cmpi slt, %68, %70 : vector<64x256xi32>
    %c0_35 = arith.constant 0 : index
    %c0_36 = arith.constant 0 : index
    %72 = vector.load %arg11[%c0_35, %c0_36] : memref<320x512xf32, #tpu.memory_space<vmem>>, vector<320x512xf32>
    %cst_37 = arith.constant dense<0.000000e+00> : vector<320x256xf32>
    %73 = tpu.matmul %72, %65, %cst_37 {dimension_numbers = #tpu.dot_dimension_numbers<[1], [0], [0], [1], [0, 0, 1, 1], [], []>} : vector<320x512xf32>, vector<512x256xf32>, vector<320x256xf32> -> vector<320x256xf32>
    %74 = vector.extract_strided_slice %73 {offsets = [0, 0], sizes = [64, 256], strides = [1, 1]} : vector<320x256xf32> to vector<64x256xf32>
    %75 = vector.extract_strided_slice %73 {offsets = [64, 0], sizes = [64, 256], strides = [1, 1]} : vector<320x256xf32> to vector<64x256xf32>
    %76 = vector.extract_strided_slice %73 {offsets = [128, 0], sizes = [64, 256], strides = [1, 1]} : vector<320x256xf32> to vector<64x256xf32>
    %77 = vector.extract_strided_slice %73 {offsets = [192, 0], sizes = [64, 256], strides = [1, 1]} : vector<320x256xf32> to vector<64x256xf32>
    %78 = vector.extract_strided_slice %73 {offsets = [256, 0], sizes = [64, 256], strides = [1, 1]} : vector<320x256xf32> to vector<64x256xf32>
    %79 = arith.mulf %74, %74 : vector<64x256xf32>
    %80 = arith.mulf %75, %75 : vector<64x256xf32>
    %81 = arith.mulf %74, %75 : vector<64x256xf32>
    %82 = arith.subf %76, %79 : vector<64x256xf32>
    %83 = arith.subf %77, %80 : vector<64x256xf32>
    %84 = arith.subf %78, %81 : vector<64x256xf32>
    %cst_38 = arith.constant 2.000000e+00 : f32
    %85 = vector.broadcast %cst_38 : f32 to vector<64x256xf32>
    %86 = arith.mulf %85, %81 : vector<64x256xf32>
    %cst_39 = arith.constant 9.99999974E-5 : f32
    %87 = vector.broadcast %cst_39 : f32 to vector<64x256xf32>
    %88 = arith.addf %86, %87 : vector<64x256xf32>
    %cst_40 = arith.constant 2.000000e+00 : f32
    %89 = vector.broadcast %cst_40 : f32 to vector<64x256xf32>
    %90 = arith.mulf %89, %84 : vector<64x256xf32>
    %cst_41 = arith.constant 8.99999984E-4 : f32
    %91 = vector.broadcast %cst_41 : f32 to vector<64x256xf32>
    %92 = arith.addf %90, %91 : vector<64x256xf32>
    %93 = arith.mulf %88, %92 : vector<64x256xf32>
    %94 = arith.addf %79, %80 : vector<64x256xf32>
    %cst_42 = arith.constant 9.99999974E-5 : f32
    %95 = vector.broadcast %cst_42 : f32 to vector<64x256xf32>
    %96 = arith.addf %94, %95 : vector<64x256xf32>
    %97 = arith.addf %82, %83 : vector<64x256xf32>
    %cst_43 = arith.constant 8.99999984E-4 : f32
    %98 = vector.broadcast %cst_43 : f32 to vector<64x256xf32>
    %99 = arith.addf %97, %98 : vector<64x256xf32>
    %100 = arith.mulf %96, %99 : vector<64x256xf32>
    %101 = tpu.reciprocal %100 {approx = true} : vector<64x256xf32> -> vector<64x256xf32>
    %102 = arith.mulf %93, %101 : vector<64x256xf32>
    %c0_i32 = arith.constant 0 : i32
    %103 = vector.broadcast %c0_i32 : i32 to vector<64x256xi32>
    %104 = arith.addi %69, %103 : vector<64x256xi32>
    %c64_i32_44 = arith.constant 64 : i32
    %105 = vector.broadcast %c64_i32_44 : i32 to vector<64x256xi32>
    %106 = arith.cmpi slt, %104, %105 : vector<64x256xi32>
    %107 = arith.andi %71, %106 : vector<64x256xi1>
    %cst_45 = arith.constant 0.000000e+00 : f32
    %108 = vector.broadcast %cst_45 : f32 to vector<64x256xf32>
    %109 = arith.select %107, %102, %108 : vector<64x256xi1>, vector<64x256xf32>
    %110 = vector.shape_cast %109 : vector<64x256xf32> to vector<1x64x256xf32>
    %cst_46 = arith.constant dense<0.000000e+00> : vector<1xf32>
    %111 = vector.multi_reduction <add>, %110, %cst_46 [1, 2] : vector<1x64x256xf32> to vector<1xf32>
    %112 = vector.shape_cast %111 : vector<1xf32> to vector<1x1x1xf32>
    %113 = vector.extract %112[0, 0, 0] : f32 from vector<1x1x1xf32>
    %cst_47 = arith.constant 0.000000e+00 : f32
    %114 = arith.addf %cst_47, %113 : f32
    %115 = tpu.iota {dimensions = array<i32: 1>} : vector<8x128xi32>
    %116 = tpu.iota {dimensions = array<i32: 0>} : vector<8x128xi32>
    %c0_i32_48 = arith.constant 0 : i32
    %117 = vector.broadcast %c0_i32_48 : i32 to vector<8x128xi32>
    %118 = arith.cmpi eq, %116, %117 : vector<8x128xi32>
    %c0_i32_49 = arith.constant 0 : i32
    %119 = vector.broadcast %c0_i32_49 : i32 to vector<8x128xi32>
    %120 = arith.cmpi eq, %115, %119 : vector<8x128xi32>
    %121 = arith.andi %118, %120 : vector<8x128xi1>
    %cst_50 = arith.constant 0.000000e+00 : f32
    %122 = vector.broadcast %46 : f32 to vector<8x128xf32>
    %123 = vector.broadcast %cst_50 : f32 to vector<8x128xf32>
    %124 = arith.select %121, %122, %123 : vector<8x128xi1>, vector<8x128xf32>
    %c0_i32_51 = arith.constant 0 : i32
    %125 = vector.broadcast %c0_i32_51 : i32 to vector<8x128xi32>
    %126 = arith.cmpi eq, %116, %125 : vector<8x128xi32>
    %c1_i32 = arith.constant 1 : i32
    %127 = vector.broadcast %c1_i32 : i32 to vector<8x128xi32>
    %128 = arith.cmpi eq, %115, %127 : vector<8x128xi32>
    %129 = arith.andi %126, %128 : vector<8x128xi1>
    %cst_52 = arith.constant 0.000000e+00 : f32
    %130 = vector.broadcast %114 : f32 to vector<8x128xf32>
    %131 = vector.broadcast %cst_52 : f32 to vector<8x128xf32>
    %132 = arith.select %129, %130, %131 : vector<8x128xi1>, vector<8x128xf32>
    %133 = arith.addf %124, %132 : vector<8x128xf32>
    %c0_53 = arith.constant 0 : index
    %c0_54 = arith.constant 0 : index
    %c0_55 = arith.constant 0 : index
    %c0_56 = arith.constant 0 : index
    %134 = vector.load %arg10[%c0_53, %c0_54, %c0_55, %c0_56] : memref<1x1x8x128xf32, #tpu.memory_space<vmem>>, vector<1x1x8x128xf32>
    %135 = vector.shape_cast %134 : vector<1x1x8x128xf32> to vector<8x128xf32>
    %136 = vector.shape_cast %133 : vector<8x128xf32> to vector<1x1x8x128xf32>
    tpu.vector_store %arg10[%c0_53, %c0_54, %c0_55, %c0_56], %136 {strides = array<i32>} : memref<1x1x8x128xf32, #tpu.memory_space<vmem>>, vector<1x1x8x128xf32>,
    %c0_i32_57 = arith.constant 0 : i32
    %137 = arith.cmpi eq, %arg0, %c0_i32_57 : i32
    %138 = arith.extui %137 : i1 to i32
    %c0_i32_58 = arith.constant 0 : i32
    %139 = arith.cmpi ne, %138, %c0_i32_58 : i32
    scf.if %139 {
      %c0_i32_59 = arith.constant 0 : i32
      %140 = vector.broadcast %c0_i32_59 : i32 to vector<8x128xi32>
      %141 = arith.cmpi eq, %116, %140 : vector<8x128xi32>
      %c2_i32 = arith.constant 2 : i32
      %142 = vector.broadcast %c2_i32 : i32 to vector<8x128xi32>
      %143 = arith.cmpi eq, %115, %142 : vector<8x128xi32>
      %144 = arith.andi %141, %143 : vector<8x128xi1>
      %145 = vector.shape_cast %36 : vector<64x256xf32> to vector<1x64x256xf32>
      %cst_60 = arith.constant dense<0.000000e+00> : vector<1xf32>
      %146 = vector.multi_reduction <add>, %145, %cst_60 [1, 2] : vector<1x64x256xf32> to vector<1xf32>
      %147 = vector.shape_cast %146 : vector<1xf32> to vector<1x1x1xf32>
      %148 = vector.extract %147[0, 0, 0] : f32 from vector<1x1x1xf32>
      %cst_61 = arith.constant 0.000000e+00 : f32
      %149 = vector.broadcast %148 : f32 to vector<8x128xf32>
      %150 = vector.broadcast %cst_61 : f32 to vector<8x128xf32>
      %151 = arith.select %144, %149, %150 : vector<8x128xi1>, vector<8x128xf32>
      %152 = arith.addf %133, %151 : vector<8x128xf32>
      %c0_62 = arith.constant 0 : index
      %c0_63 = arith.constant 0 : index
      %c0_64 = arith.constant 0 : index
      %c0_65 = arith.constant 0 : index
      %153 = vector.load %arg10[%c0_62, %c0_63, %c0_64, %c0_65] : memref<1x1x8x128xf32, #tpu.memory_space<vmem>>, vector<1x1x8x128xf32>
      %154 = vector.shape_cast %153 : vector<1x1x8x128xf32> to vector<8x128xf32>
      %155 = vector.shape_cast %152 : vector<8x128xf32> to vector<1x1x8x128xf32>
      tpu.vector_store %arg10[%c0_62, %c0_63, %c0_64, %c0_65], %155 {strides = array<i32>} : memref<1x1x8x128xf32, #tpu.memory_space<vmem>>, vector<1x1x8x128xf32>,
    } else {
    }
    return
  }
  func.func @transform_0(%arg0: i32, %arg1: i32) -> (i32, i32, i32) {
    %c0_i32 = arith.constant 0 : i32
    %c0_i32_0 = arith.constant 0 : i32
    %c0_i32_1 = arith.constant 0 : i32
    return %arg0, %c0_i32, %c0_i32_0 : i32, i32, i32
  }
  func.func @transform_1(%arg0: i32, %arg1: i32) -> (i32, i32, i32) {
    %c0_i32 = arith.constant 0 : i32
    %c0_i32_0 = arith.constant 0 : i32
    %c0_i32_1 = arith.constant 0 : i32
    return %arg0, %c0_i32, %c0_i32_0 : i32, i32, i32
  }
  func.func @transform_2(%arg0: i32, %arg1: i32) -> (i32, i32, i32) {
    %c0_i32 = arith.constant 0 : i32
    %c0_i32_0 = arith.constant 0 : i32
    %c0_i32_1 = arith.constant 0 : i32
    %c0_i32_2 = arith.constant 0 : i32
    return %c0_i32, %c0_i32_0, %c0_i32_1 : i32, i32, i32
  }
  func.func @transform_3(%arg0: i32, %arg1: i32) -> (i32, i32, i32) {
    %c0_i32 = arith.constant 0 : i32
    %c0_i32_0 = arith.constant 0 : i32
    %c0_i32_1 = arith.constant 0 : i32
    return %c0_i32, %arg1, %c0_i32_0 : i32, i32, i32
  }
  func.func @transform_4(%arg0: i32, %arg1: i32) -> i32 {
    %c0_i32 = arith.constant 0 : i32
    %c0_i32_0 = arith.constant 0 : i32
    return %c0_i32 : i32
  }
  func.func @transform_5(%arg0: i32, %arg1: i32) -> (i32, i32) {
    %c0_i32 = arith.constant 0 : i32
    %c0_i32_0 = arith.constant 0 : i32
    %c0_i32_1 = arith.constant 0 : i32
    return %c0_i32, %c0_i32_0 : i32, i32
  }
  func.func @transform_6(%arg0: i32, %arg1: i32) -> (i32, i32) {
    %c0_i32 = arith.constant 0 : i32
    %c0_i32_0 = arith.constant 0 : i32
    %c0_i32_1 = arith.constant 0 : i32
    return %c0_i32, %c0_i32_0 : i32, i32
  }
  func.func @transform_7(%arg0: i32, %arg1: i32) -> (i32, i32, i32) {
    %c0_i32 = arith.constant 0 : i32
    %c0_i32_0 = arith.constant 0 : i32
    return %arg0, %arg1, %c0_i32 : i32, i32, i32
  }
  func.func @transform_8(%arg0: i32, %arg1: i32) -> (i32, i32, i32, i32) {
    %c0_i32 = arith.constant 0 : i32
    %c0_i32_0 = arith.constant 0 : i32
    %c0_i32_1 = arith.constant 0 : i32
    return %arg0, %arg1, %c0_i32, %c0_i32_0 : i32, i32, i32, i32
  }
}

</mosaic_0001>

<llo_original>
// kernel: human_scene_loss.1
$region0: #{human_scene_loss.1}
  #allocation0 [shape = 'u32[]', space=smem, size = 0x4, offset = 0x4, fixed_abs, tag = 'smem constant byte address 0x4 - core index']
  #allocation1 [shape = 'u32[72,128]{1,0:T(1,128)}', space=vmem, size = 0x9000, scoped, tag = 'internal scratch']
  #allocation2 [shape = 'f32[320,512]{1,0:T(8,128)}', space=vmem, size = 0xa0000, scoped, tag = 'scratch operand']
  %s0 = inlined_call_operand.vmem [shape: f32[3,80,256], index: 0, kind: input, shape index: {}]
  %s1 = inlined_call_operand.vmem [shape: f32[3,80,256], index: 1, kind: input, shape index: {}]
  %s2 = inlined_call_operand.vmem [shape: f32[1,80,256], index: 2, kind: input, shape index: {}]
  %s3 = inlined_call_operand.vmem [shape: f32[1,64,256], index: 3, kind: input, shape index: {}]
  %s4 = inlined_call_operand.vmem [shape: f32[3], index: 4, kind: input, shape index: {}]
  %s5 = inlined_call_operand.vmem [shape: f32[64,80], index: 5, kind: input, shape index: {}]
  %s6 = inlined_call_operand.vmem [shape: f32[512,256], index: 6, kind: input, shape index: {}]
  %s7 = inlined_call_operand.vmem [shape: f32[3,64,256], index: 7, kind: output, shape index: {0}]
  %s8 = inlined_call_operand.vmem [shape: f32[3,1,8,128], index: 8, kind: output, shape index: {1}]
  %9 = xla_tuple %s7, %s8
  %s10 = sld [smem:[#allocation0]]
  $region77: #{human_scene_loss.1} parent=0
    _
  %s12 = ssub.s32 1, %s10
  %s13 = scalar_select 0, %s12, %s10
  $region1: #{human_scene_loss.1} parent=0
    #allocation3 [shape = 'u8[512]{0}', space=smem, size = 0x200, scoped, tag = 'input window, operand 4, single buffered']
    #allocation4 [shape = 's32[2]{0}', space=sflag, size = 0x8, scoped, tag = 'scoped memory for human_scene_loss.1']
    %14 = vsyncpa [#allocation4], 0
    loop: start=0, step=1, limit=5
    $region2: #{human_scene_loss.1} parent=1 // loop_pre_header
      _
    $region3: #{human_scene_loss.1} parent=1 // loop_header
      %s16 = sphi 0, %s20
      %p17 = scmp.ge.s32.totalorder %s16, 5
      %s23 = sphi 0, %s35
      %s24 = sphi 0, %s31
      %s25 = sphi 0, %s23
      %s26 = sphi 0, %s24
      %s27 = sphi 0, %s25
      %s28 = sphi 0, %s26
      %s38 = sphi 0, %s40
      %s41 = sphi 0, %s38
      %s42 = sphi 0, %s41
      %s58 = sphi 0, %s42
      %s64 = sphi 0, %s66
      %s67 = sphi 0, %s64
      %s68 = sphi 0, %s67
      %s84 = sphi 0, %s68
      %s88 = sphi 0, %s88
      %s90 = sphi 0, %s88
      %s91 = sphi 0, %s90
      %s105 = sphi 0, %s91
      %s111 = sphi 0, %s113
      %s114 = sphi 0, %s111
      %s115 = sphi 0, %s114
      %s131 = sphi 0, %s115
      %s135 = sphi 0, %s135
      %s137 = sphi 0, %s135
      %s138 = sphi 0, %s137
      %s152 = sphi 0, %s138
      %s156 = sphi 0, %s156
      %s158 = sphi 0, %s156
      %s159 = sphi 0, %s158
      %s173 = sphi 0, %s159
      %s177 = sphi 0, %s177
      %s179 = sphi 0, %s177
      %s180 = sphi 0, %s179
      %s194 = sphi 0, %s180
      %s202 = sphi 0, %s204
      %s205 = sphi 0, %s202
      %s206 = sphi 0, %s205
      %s222 = sphi 0, %s206
      %s230 = sphi 0, %s232
      %s233 = sphi 0, %s230
      %s234 = sphi 0, %s233
      %s250 = sphi 0, %s234
    $region4: #{human_scene_loss.1} parent=1 // loop_header_branch
      %19 = sbr.rel (%p17) target = $region8
    $region5: #{human_scene_loss.1} parent=1 // loop_body
      %s21 = ssub.s32 %s16, 1
      %s22 = ssub.s32 %s16, 2
      %s29 = sadd.s32 1, %s24
      %p30 = scmp.ge.s32.totalorder %s29, 1
      %s31 = scalar_select %p30, 0, %s29
      %s32 = sadd.s32 1, %s23
      %s33 = scalar_select %p30, %s32, %s23
      %p34 = scmp.ge.s32.totalorder %s33, 3
      %s35 = scalar_select %p34, 0, %s33
      %s36 = ssub.s32 %s23, %s35
      %p37 = scmp.eq.s32.totalorder %s36, 0
      %s39 = sadd.s32 %s38, 1
      %s40 = scalar_select %p37, %s38, %s39
      %p43 = pneg %p37
      %p44 = scmp.eq.s32.totalorder %s16, 2
      %p45 = por %p43, %p44
      %p46 = scmp.ne.s32.totalorder %s38, %s41
      %p47 = scmp.eq.s32.totalorder %s16, 0
      %p48 = por %p46, %p47
      %p49 = scmp.ne.s32.totalorder %s38, %s41
      %p50 = scmp.eq.s32.totalorder %s21, 2
      %p51 = por %p49, %p50
      %p52 = scmp.ne.s32.totalorder %s41, %s42
      %p53 = scmp.eq.s32.totalorder %s21, 0
      %p54 = por %p52, %p53
      %p55 = scmp.ne.s32.totalorder %s41, %s42
      %p56 = scmp.eq.s32.totalorder %s22, 2
      %p57 = por %p55, %p56
      %p59 = scmp.ne.s32.totalorder %s42, %s58
      %p60 = scmp.eq.s32.totalorder %s22, 0
      %p61 = por %p59, %p60
      %s62 = ssub.s32 %s23, %s35
      %p63 = scmp.eq.s32.totalorder %s62, 0
      %s65 = sadd.s32 %s64, 1
      %s66 = scalar_select %p63, %s64, %s65
      %p69 = pneg %p63
      %p70 = scmp.eq.s32.totalorder %s16, 2
      %p71 = por %p69, %p70
      %p72 = scmp.ne.s32.totalorder %s64, %s67
      %p73 = scmp.eq.s32.totalorder %s16, 0
      %p74 = por %p72, %p73
      %p75 = scmp.ne.s32.totalorder %s64, %s67
      %p76 = scmp.eq.s32.totalorder %s21, 2
      %p77 = por %p75, %p76
      %p78 = scmp.ne.s32.totalorder %s67, %s68
      %p79 = scmp.eq.s32.totalorder %s21, 0
      %p80 = por %p78, %p79
      %p81 = scmp.ne.s32.totalorder %s67, %s68
      %p82 = scmp.eq.s32.totalorder %s22, 2
      %p83 = por %p81, %p82
      %p85 = scmp.ne.s32.totalorder %s68, %s84
      %p86 = scmp.eq.s32.totalorder %s22, 0
      %p87 = por %p85, %p86
      %s89 = sadd.s32 %s88, 1
      %p92 = scmp.eq.s32.totalorder %s16, 2
      %p93 = scmp.ne.s32.totalorder %s88, %s90
      %p94 = scmp.eq.s32.totalorder %s16, 0
      %p95 = por %p93, %p94
      %p96 = scmp.ne.s32.totalorder %s88, %s90
      %p97 = scmp.eq.s32.totalorder %s21, 2
      %p98 = por %p96, %p97
      %p99 = scmp.ne.s32.totalorder %s90, %s91
      %p100 = scmp.eq.s32.totalorder %s21, 0
      %p101 = por %p99, %p100
      %p102 = scmp.ne.s32.totalorder %s90, %s91
      %p103 = scmp.eq.s32.totalorder %s22, 2
      %p104 = por %p102, %p103
      %p106 = scmp.ne.s32.totalorder %s91, %s105
      %p107 = scmp.eq.s32.totalorder %s22, 0
      %p108 = por %p106, %p107
      %s109 = ssub.s32 %s24, %s31
      %p110 = scmp.eq.s32.totalorder %s109, 0
      %s112 = sadd.s32 %s111, 1
      %s113 = scalar_select %p110, %s111, %s112
      %p116 = pneg %p110
      %p117 = scmp.eq.s32.totalorder %s16, 2
      %p118 = por %p116, %p117
      %p119 = scmp.ne.s32.totalorder %s111, %s114
      %p120 = scmp.eq.s32.totalorder %s16, 0
      %p121 = por %p119, %p120
      %p122 = scmp.ne.s32.totalorder %s111, %s114
      %p123 = scmp.eq.s32.totalorder %s21, 2
      %p124 = por %p122, %p123
      %p125 = scmp.ne.s32.totalorder %s114, %s115
      %p126 = scmp.eq.s32.totalorder %s21, 0
      %p127 = por %p125, %p126
      %p128 = scmp.ne.s32.totalorder %s114, %s115
      %p129 = scmp.eq.s32.totalorder %s22, 2
      %p130 = por %p128, %p129
      %p132 = scmp.ne.s32.totalorder %s115, %s131
      %p133 = scmp.eq.s32.totalorder %s22, 0
      %p134 = por %p132, %p133
      %s136 = sadd.s32 %s135, 1
      %p139 = scmp.eq.s32.totalorder %s16, 2
      %p140 = scmp.ne.s32.totalorder %s135, %s137
      %p141 = scmp.eq.s32.totalorder %s16, 0
      %p142 = por %p140, %p141
      %p143 = scmp.ne.s32.totalorder %s135, %s137
      %p144 = scmp.eq.s32.totalorder %s21, 2
      %p145 = por %p143, %p144
      %p146 = scmp.ne.s32.totalorder %s137, %s138
      %p147 = scmp.eq.s32.totalorder %s21, 0
      %p148 = por %p146, %p147
      %p149 = scmp.ne.s32.totalorder %s137, %s138
      %p150 = scmp.eq.s32.totalorder %s22, 2
      %p151 = por %p149, %p150
      %p153 = scmp.ne.s32.totalorder %s138, %s152
      %p154 = scmp.eq.s32.totalorder %s22, 0
      %p155 = por %p153, %p154
      %s157 = sadd.s32 %s156, 1
      %p160 = scmp.eq.s32.totalorder %s16, 2
      %p161 = scmp.ne.s32.totalorder %s156, %s158
      %p162 = scmp.eq.s32.totalorder %s16, 0
      %p163 = por %p161, %p162
      %p164 = scmp.ne.s32.totalorder %s156, %s158
      %p165 = scmp.eq.s32.totalorder %s21, 2
      %p166 = por %p164, %p165
      %p167 = scmp.ne.s32.totalorder %s158, %s159
      %p168 = scmp.eq.s32.totalorder %s21, 0
      %p169 = por %p167, %p168
      %p170 = scmp.ne.s32.totalorder %s158, %s159
      %p171 = scmp.eq.s32.totalorder %s22, 2
      %p172 = por %p170, %p171
      %p174 = scmp.ne.s32.totalorder %s159, %s173
      %p175 = scmp.eq.s32.totalorder %s22, 0
      %p176 = por %p174, %p175
      %s178 = sadd.s32 %s177, 1
      %p181 = scmp.eq.s32.totalorder %s16, 2
      %p182 = scmp.ne.s32.totalorder %s177, %s179
      %p183 = scmp.eq.s32.totalorder %s16, 0
      %p184 = por %p182, %p183
      %p185 = scmp.ne.s32.totalorder %s177, %s179
      %p186 = scmp.eq.s32.totalorder %s21, 2
      %p187 = por %p185, %p186
      %p188 = scmp.ne.s32.totalorder %s179, %s180
      %p189 = scmp.eq.s32.totalorder %s21, 0
      %p190 = por %p188, %p189
      %p191 = scmp.ne.s32.totalorder %s179, %s180
      %p192 = scmp.eq.s32.totalorder %s22, 2
      %p193 = por %p191, %p192
      %p195 = scmp.ne.s32.totalorder %s180, %s194
      %p196 = scmp.eq.s32.totalorder %s22, 0
      %p197 = por %p195, %p196
      %s198 = ssub.s32 %s23, %s35
      %s199 = ssub.s32 %s24, %s31
      %s200 = sor.u32 %s198, %s199
      %p201 = scmp.eq.s32.totalorder %s200, 0
      %s203 = sadd.s32 %s202, 1
      %s204 = scalar_select %p201, %s202, %s203
      %p207 = pneg %p201
      %p208 = scmp.eq.s32.totalorder %s16, 2
      %p209 = por %p207, %p208
      %p210 = scmp.ne.s32.totalorder %s202, %s205
      %p211 = scmp.eq.s32.totalorder %s16, 0
      %p212 = por %p210, %p211
      %p213 = scmp.ne.s32.totalorder %s202, %s205
      %p214 = scmp.eq.s32.totalorder %s21, 2
      %p215 = por %p213, %p214
      %p216 = scmp.ne.s32.totalorder %s205, %s206
      %p217 = scmp.eq.s32.totalorder %s21, 0
      %p218 = por %p216, %p217
      %p219 = scmp.ne.s32.totalorder %s205, %s206
      %p220 = scmp.eq.s32.totalorder %s22, 2
      %p221 = por %p219, %p220
      %p223 = scmp.ne.s32.totalorder %s206, %s222
      %p224 = scmp.eq.s32.totalorder %s22, 0
      %p225 = por %p223, %p224
      %s226 = ssub.s32 %s23, %s35
      %s227 = ssub.s32 %s24, %s31
      %s228 = sor.u32 %s226, %s227
      %p229 = scmp.eq.s32.totalorder %s228, 0
      %s231 = sadd.s32 %s230, 1
      %s232 = scalar_select %p229, %s230, %s231
      %p235 = pneg %p229
      %p236 = scmp.eq.s32.totalorder %s16, 2
      %p237 = por %p235, %p236
      %p238 = scmp.ne.s32.totalorder %s230, %s233
      %p239 = scmp.eq.s32.totalorder %s16, 0
      %p240 = por %p238, %p239
      %p241 = scmp.ne.s32.totalorder %s230, %s233
      %p242 = scmp.eq.s32.totalorder %s21, 2
      %p243 = por %p241, %p242
      %p244 = scmp.ne.s32.totalorder %s233, %s234
      %p245 = scmp.eq.s32.totalorder %s21, 0
      %p246 = por %p244, %p245
      %p247 = scmp.ne.s32.totalorder %s233, %s234
      %p248 = scmp.eq.s32.totalorder %s22, 2
      %p249 = por %p247, %p248
      %p251 = scmp.ne.s32.totalorder %s234, %s250
      %p252 = scmp.eq.s32.totalorder %s22, 0
      %p253 = por %p251, %p252
      %p254 = scmp.le.s32.totalorder 1, %s16
      %p255 = scmp.lt.s32.totalorder %s16, 4
      %p256 = pnand %p254, %p255
      %p257 = pneg %p256
      // Predicated region
      $region9: #{human_scene_loss.1} parent=5 // pred_check
        _
      $region10: #{human_scene_loss.1} parent=5 // pred_check_branch
        %259 = sbr.rel (%p256) target = $region12
      $region11: #{human_scene_loss.1} parent=5 // pred_region
        %s260 = ssub.s32 %s16, 1
        // Predicated region
        $region13: #{human_scene_loss.1} parent=11 // pred_check
          %p261 = pneg %p101
        $region14: #{human_scene_loss.1} parent=11 // pred_check_branch
          %263 = sbr.rel (%p261) target = $region16
        $region15: #{human_scene_loss.1} parent=11 // pred_region
          _
        $region16: #{human_scene_loss.1} parent=11 // pred_fallthru
          _
        // Predicated region
        $region17: #{human_scene_loss.1} parent=11 // pred_check
          %p264 = pneg %p127
        $region18: #{human_scene_loss.1} parent=11 // pred_check_branch
          %266 = sbr.rel (%p264) target = $region20
        $region19: #{human_scene_loss.1} parent=11 // pred_region
          %s267 = smul.u32 8, %s26
          %p268 = scmp.lt.s32.totalorder %s267, 7
          %s269 = scalar_select %p268, %s267, 7
          %s270 = smul.addr %s269, 2
          %s271 = smul.addr %s270, 8
          %s272 = scalar_lea.vmem %s3, %s271
          %s273 = smul.u32 8, %s26
        $region20: #{human_scene_loss.1} parent=11 // pred_fallthru
          _
        // Predicated region
        $region21: #{human_scene_loss.1} parent=11 // pred_check
          %p274 = pneg %p148
        $region22: #{human_scene_loss.1} parent=11 // pred_check_branch
          %276 = sbr.rel (%p274) target = $region24
        $region23: #{human_scene_loss.1} parent=11 // pred_region
          %278 = vsyncadd [#allocation4], 0
          %s280 = sshll.u32 %s4, 4
          %s281 = int_to_ptr.vmem [resolvable:$true] %s280
          %283 = dma.vmem_to_smem %s281, 16, [#allocation3], [#allocation4]
        $region24: #{human_scene_loss.1} parent=11 // pred_fallthru
          _
        // Predicated region
        $region25: #{human_scene_loss.1} parent=11 // pred_check
          %p284 = pneg %p169
        $region26: #{human_scene_loss.1} parent=11 // pred_check_branch
          %286 = sbr.rel (%p284) target = $region28
        $region27: #{human_scene_loss.1} parent=11 // pred_region
          _
        $region28: #{human_scene_loss.1} parent=11 // pred_fallthru
          _
        // Predicated region
        $region29: #{human_scene_loss.1} parent=11 // pred_check
          %p287 = pneg %p190
        $region30: #{human_scene_loss.1} parent=11 // pred_check_branch
          %289 = sbr.rel (%p287) target = $region32
        $region31: #{human_scene_loss.1} parent=11 // pred_region
          _
        $region32: #{human_scene_loss.1} parent=11 // pred_fallthru
          _
      $region12: #{human_scene_loss.1} parent=5 // pred_fallthru
        _
      %p290 = scmp.lt.s32.totalorder %s16, 3
      // Predicated region
      $region33: #{human_scene_loss.1} parent=5 // pred_check
        %p291 = pneg %p290
      $region34: #{human_scene_loss.1} parent=5 // pred_check_branch
        %293 = sbr.rel (%p291) target = $region36
      $region35: #{human_scene_loss.1} parent=5 // pred_region
        // Predicated region
        $region37: #{human_scene_loss.1} parent=35 // pred_check
          %p294 = pneg %p48
        $region38: #{human_scene_loss.1} parent=35 // pred_check_branch
          %296 = sbr.rel (%p294) target = $region40
        $region39: #{human_scene_loss.1} parent=35 // pred_region
          %p297 = scmp.lt.s32.totalorder %s23, 2
          %s298 = scalar_select %p297, %s23, 2
          %s299 = smul.addr %s298, 20
          %s300 = smul.addr %s299, 8
          %s301 = scalar_lea.vmem %s0, %s300
        $region40: #{human_scene_loss.1} parent=35 // pred_fallthru
          _
        // Predicated region
        $region41: #{human_scene_loss.1} parent=35 // pred_check
          %p302 = pneg %p74
        $region42: #{human_scene_loss.1} parent=35 // pred_check_branch
          %304 = sbr.rel (%p302) target = $region44
        $region43: #{human_scene_loss.1} parent=35 // pred_region
          %p305 = scmp.lt.s32.totalorder %s23, 2
          %s306 = scalar_select %p305, %s23, 2
          %s307 = smul.addr %s306, 20
          %s308 = smul.addr %s307, 8
          %s309 = scalar_lea.vmem %s1, %s308
        $region44: #{human_scene_loss.1} parent=35 // pred_fallthru
          _
      $region36: #{human_scene_loss.1} parent=5 // pred_fallthru
        _
      %p310 = scmp.le.s32.totalorder 1, %s16
      %p311 = scmp.lt.s32.totalorder %s16, 4
      %p312 = pnand %p310, %p311
      %p313 = pneg %p312
      // Predicated region
      $region45: #{human_scene_loss.1} parent=5 // pred_check
        _
      $region46: #{human_scene_loss.1} parent=5 // pred_check_branch
        %315 = sbr.rel (%p312) target = $region48
      $region47: #{human_scene_loss.1} parent=5 // pred_region
        %s316 = ssub.s32 %s16, 1
        // Predicated region
        $region49: #{human_scene_loss.1} parent=47 // pred_check
          %p317 = pneg %p148
        $region50: #{human_scene_loss.1} parent=47 // pred_check_branch
          %319 = sbr.rel (%p317) target = $region52
        $region51: #{human_scene_loss.1} parent=47 // pred_region
          %321 = dma.done [#allocation4], 16
        $region52: #{human_scene_loss.1} parent=47 // pred_fallthru
          _
        %322 = sfence
        %p323 = scmp.lt.s32.totalorder %s25, 2
        %s324 = scalar_select %p323, %s25, 2
        %s325 = smul.addr %s324, 20
        %s326 = smul.addr %s325, 8
        %s327 = scalar_lea.vmem %s0, %s326
        %p328 = pneg %p54
        %p329 = pneg %p51
        %p330 = scmp.lt.s32.totalorder %s25, 2
        %s331 = scalar_select %p330, %s25, 2
        %s332 = smul.addr %s331, 20
        %s333 = smul.addr %s332, 8
        %s334 = scalar_lea.vmem %s1, %s333
        %p335 = pneg %p80
        %p336 = pneg %p77
        %p337 = pneg %p101
        %p338 = pneg %p98
        %s339 = smul.u32 8, %s26
        %p340 = scmp.lt.s32.totalorder %s339, 7
        %s341 = scalar_select %p340, %s339, 7
        %s342 = smul.addr %s341, 2
        %s343 = smul.addr %s342, 8
        %s344 = scalar_lea.vmem %s3, %s343
        %p345 = pneg %p127
        %p346 = pneg %p124
        %p347 = pneg %p148
        %p348 = pneg %p145
        %p349 = pneg %p169
        %p350 = pneg %p166
        %p351 = pneg %p190
        %p352 = pneg %p187
        %p353 = pneg %p218
        %p354 = pneg %p215
        %s355 = smul.u32 8, %s26
        %p356 = scmp.lt.s32.totalorder %s25, 2
        %s357 = scalar_select %p356, %s25, 2
        %p358 = scmp.lt.s32.totalorder %s355, 7
        %s359 = scalar_select %p358, %s355, 7
        %s360 = smul.addr %s359, 2
        %s361 = smul.addr %s357, 16
        %s362 = sadd.s32 %s360, %s361
        %s363 = smul.addr %s362, 8
        %s364 = scalar_lea.vmem %s7, %s363
        %p365 = pneg %p246
        %p366 = pneg %p243
        %p367 = scmp.lt.s32.totalorder %s25, 2
        %s368 = scalar_select %p367, %s25, 2
        %p369 = scmp.lt.s32.totalorder %s26, 0
        %s370 = scalar_select %p369, %s26, 0
        %s371 = sadd.s32 %s370, %s368
        %s372 = smul.addr %s371, 8
        %s373 = scalar_lea.vmem %s8, %s372
        %p374 = scmp.lt.s32.totalorder %s25, 2
        %s375 = scalar_select %p374, %s25, 2
        %s376 = smul.addr %s375, 20
        %s377 = smul.addr %s376, 8
        %s378 = scalar_lea.vmem %s0, %s377
        %p379 = scmp.lt.s32.totalorder %s25, 2
        %s380 = scalar_select %p379, %s25, 2
        %s381 = smul.addr %s380, 20
        %s382 = smul.addr %s381, 8
        %s383 = scalar_lea.vmem %s1, %s382
        %s384 = smul.u32 8, %s26
        %p385 = scmp.lt.s32.totalorder %s384, 7
        %s386 = scalar_select %p385, %s384, 7
        %s387 = smul.addr %s386, 2
        %s388 = smul.addr %s387, 8
        %s389 = scalar_lea.vmem %s3, %s388
        %s390 = smul.u32 8, %s26
        %s391 = smul.u32 8, %s26
        %p392 = scmp.lt.s32.totalorder %s25, 2
        %s393 = scalar_select %p392, %s25, 2
        %p394 = scmp.lt.s32.totalorder %s391, 7
        %s395 = scalar_select %p394, %s391, 7
        %s396 = smul.addr %s395, 2
        %s397 = smul.addr %s393, 16
        %s398 = sadd.s32 %s396, %s397
        %s399 = smul.addr %s398, 8
        %s400 = scalar_lea.vmem %s7, %s399
        %s401 = smul.u32 8, %s26
        %p402 = scmp.lt.s32.totalorder %s25, 2
        %s403 = scalar_select %p402, %s25, 2
        %p404 = scmp.lt.s32.totalorder %s26, 0
        %s405 = scalar_select %p404, %s26, 0
        %s406 = sadd.s32 %s405, %s403
        %s407 = smul.addr %s406, 8
        %s408 = scalar_lea.vmem %s8, %s407
        %s409 = smul.u32 %s26, 64
        %s410 = sshra.s32 %s409, 3
        %s411 = sand.u32 %s409, 7
        %s412 = smul.u32 %s410, 2
        %s413 = smul.addr %s412, 8
        %s414 = scalar_lea.vmem %s378, %s413
        %v415 = vld [vmem:[%s414] sm:$0xff]
        %v416 = vld [vmem:[%s414 + $0x8] sm:$0xff]
        %v417 = vld [vmem:[%s414 + $0x10] sm:$0xff]
        %v418 = vld [vmem:[%s414 + $0x18] sm:$0xff]
        %v419 = vld [vmem:[%s414 + $0x20] sm:$0xff]
        %v420 = vld [vmem:[%s414 + $0x28] sm:$0xff]
        %v421 = vld [vmem:[%s414 + $0x30] sm:$0xff]
        %v422 = vld [vmem:[%s414 + $0x38] sm:$0xff]
        %v423 = vld [vmem:[%s414 + $0x40] sm:$0xff]
        %v424 = vld [vmem:[%s414 + $0x48] sm:$0xff]
        %v425 = vld [vmem:[%s414 + $0x50] sm:$0xff]
        %v426 = vld [vmem:[%s414 + $0x58] sm:$0xff]
        %v427 = vld [vmem:[%s414 + $0x60] sm:$0xff]
        %v428 = vld [vmem:[%s414 + $0x68] sm:$0xff]
        %v429 = vld [vmem:[%s414 + $0x70] sm:$0xff]
        %v430 = vld [vmem:[%s414 + $0x78] sm:$0xff]
        %v431 = vld [vmem:[%s414 + $0x80] sm:$0xff]
        %v432 = vld [vmem:[%s414 + $0x88] sm:$0xff]
        %v433 = vld [vmem:[%s414 + $0x90] sm:$0xff]
        %v434 = vld [vmem:[%s414 + $0x98] sm:$0xff]
        %s435 = smul.addr %s412, 8
        %s436 = scalar_lea.vmem %s383, %s435
        %v437 = vld [vmem:[%s436] sm:$0xff]
        %v438 = vld [vmem:[%s436 + $0x8] sm:$0xff]
        %v439 = vld [vmem:[%s436 + $0x10] sm:$0xff]
        %v440 = vld [vmem:[%s436 + $0x18] sm:$0xff]
        %v441 = vld [vmem:[%s436 + $0x20] sm:$0xff]
        %v442 = vld [vmem:[%s436 + $0x28] sm:$0xff]
        %v443 = vld [vmem:[%s436 + $0x30] sm:$0xff]
        %v444 = vld [vmem:[%s436 + $0x38] sm:$0xff]
        %v445 = vld [vmem:[%s436 + $0x40] sm:$0xff]
        %v446 = vld [vmem:[%s436 + $0x48] sm:$0xff]
        %v447 = vld [vmem:[%s436 + $0x50] sm:$0xff]
        %v448 = vld [vmem:[%s436 + $0x58] sm:$0xff]
        %v449 = vld [vmem:[%s436 + $0x60] sm:$0xff]
        %v450 = vld [vmem:[%s436 + $0x68] sm:$0xff]
        %v451 = vld [vmem:[%s436 + $0x70] sm:$0xff]
        %v452 = vld [vmem:[%s436 + $0x78] sm:$0xff]
        %v453 = vld [vmem:[%s436 + $0x80] sm:$0xff]
        %v454 = vld [vmem:[%s436 + $0x88] sm:$0xff]
        %v455 = vld [vmem:[%s436 + $0x90] sm:$0xff]
        %v456 = vld [vmem:[%s436 + $0x98] sm:$0xff]
        %s457 = smul.addr %s412, 8
        %s458 = scalar_lea.vmem %s2, %s457
        %v459 = vld [vmem:[%s458] sm:$0xff]
        %v460 = vld [vmem:[%s458 + $0x8] sm:$0xff]
        %v461 = vld [vmem:[%s458 + $0x10] sm:$0xff]
        %v462 = vld [vmem:[%s458 + $0x18] sm:$0xff]
        %v463 = vld [vmem:[%s458 + $0x20] sm:$0xff]
        %v464 = vld [vmem:[%s458 + $0x28] sm:$0xff]
        %v465 = vld [vmem:[%s458 + $0x30] sm:$0xff]
        %v466 = vld [vmem:[%s458 + $0x38] sm:$0xff]
        %v467 = vld [vmem:[%s458 + $0x40] sm:$0xff]
        %v468 = vld [vmem:[%s458 + $0x48] sm:$0xff]
        %v469 = vld [vmem:[%s458 + $0x50] sm:$0xff]
        %v470 = vld [vmem:[%s458 + $0x58] sm:$0xff]
        %v471 = vld [vmem:[%s458 + $0x60] sm:$0xff]
        %v472 = vld [vmem:[%s458 + $0x68] sm:$0xff]
        %v473 = vld [vmem:[%s458 + $0x70] sm:$0xff]
        %v474 = vld [vmem:[%s458 + $0x78] sm:$0xff]
        %v475 = vld [vmem:[%s458 + $0x80] sm:$0xff]
        %v476 = vld [vmem:[%s458 + $0x88] sm:$0xff]
        %v477 = vld [vmem:[%s458 + $0x90] sm:$0xff]
        %v478 = vld [vmem:[%s458 + $0x98] sm:$0xff]
        %s479 = sld [smem:[#allocation3 + %s25]]
        %v480 = vlaneseq
        %v481 = vshrl.u32 %v480, 7
        %v482 = vadd.s32 %v481, 8
        %v483 = vadd.s32 %v481, 16
        %v484 = vadd.s32 %v481, 24
        %v485 = vadd.s32 %v481, 32
        %v486 = vadd.s32 %v481, 40
        %v487 = vadd.s32 %v481, 48
        %v488 = vadd.s32 %v481, 56
        %v489 = vadd.s32 %v481, 64
        %v490 = vadd.s32 %v481, 72
        %v491 = vstv %s409
        %v492 = vadd.s32 %v481, %v491
        %v493 = vadd.s32 %v482, %v491
        %v494 = vadd.s32 %v483, %v491
        %v495 = vadd.s32 %v484, %v491
        %v496 = vadd.s32 %v485, %v491
        %v497 = vadd.s32 %v486, %v491
        %v498 = vadd.s32 %v487, %v491
        %v499 = vadd.s32 %v488, %v491
        %v500 = vadd.s32 %v489, %v491
        %v501 = vadd.s32 %v490, %v491
        %v502 = vlaneseq
        %v503 = vand.u32 %v502, 127
        %v504 = vadd.s32 %v503, 128
        %vm505 = vcmp.ge.s32.totalorder %v492, 8
        %vm506 = vcmp.ge.s32.totalorder %v493, 8
        %vm507 = vcmp.ge.s32.totalorder %v494, 8
        %vm508 = vcmp.ge.s32.totalorder %v495, 8
        %vm509 = vcmp.ge.s32.totalorder %v496, 8
        %vm510 = vcmp.ge.s32.totalorder %v497, 8
        %vm511 = vcmp.ge.s32.totalorder %v498, 8
        %vm512 = vcmp.ge.s32.totalorder %v499, 8
        %vm513 = vcmp.ge.s32.totalorder %v500, 8
        %vm514 = vcmp.ge.s32.totalorder %v501, 8
        %vm515 = vcmp.lt.s32.totalorder %v492, 72
        %vm516 = vcmp.lt.s32.totalorder %v493, 72
        %vm517 = vcmp.lt.s32.totalorder %v494, 72
        %vm518 = vcmp.lt.s32.totalorder %v495, 72
        %vm519 = vcmp.lt.s32.totalorder %v496, 72
        %vm520 = vcmp.lt.s32.totalorder %v497, 72
        %vm521 = vcmp.lt.s32.totalorder %v498, 72
        %vm522 = vcmp.lt.s32.totalorder %v499, 72
        %vm523 = vcmp.lt.s32.totalorder %v500, 72
        %vm524 = vcmp.lt.s32.totalorder %v501, 72
        %vm525 = vmand %vm505, %vm515
        %vm526 = vmand %vm506, %vm516
        %vm527 = vmand %vm507, %vm517
        %vm528 = vmand %vm508, %vm518
        %vm529 = vmand %vm509, %vm519
        %vm530 = vmand %vm510, %vm520
        %vm531 = vmand %vm511, %vm521
        %vm532 = vmand %vm512, %vm522
        %vm533 = vmand %vm513, %vm523
        %vm534 = vmand %vm514, %vm524
        %vm535 = vcmp.lt.s32.totalorder %v503, 64
        %vm536 = vcmp.lt.s32.totalorder %v504, 64
        %vm537 = vmand %vm525, %vm535
        %vm538 = vmand %vm525, %vm536
        %vm539 = vmand %vm526, %vm535
        %vm540 = vmand %vm526, %vm536
        %vm541 = vmand %vm527, %vm535
        %vm542 = vmand %vm527, %vm536
        %vm543 = vmand %vm528, %vm535
        %vm544 = vmand %vm528, %vm536
        %vm545 = vmand %vm529, %vm535
        %vm546 = vmand %vm529, %vm536
        %vm547 = vmand %vm530, %vm535
        %vm548 = vmand %vm530, %vm536
        %vm549 = vmand %vm531, %vm535
        %vm550 = vmand %vm531, %vm536
        %vm551 = vmand %vm532, %vm535
        %vm552 = vmand %vm532, %vm536
        %vm553 = vmand %vm533, %vm535
        %vm554 = vmand %vm533, %vm536
        %vm555 = vmand %vm534, %vm535
        %vm556 = vmand %vm534, %vm536
        %v557 = vmul.f32 %v437, %v459
        %v558 = vmul.f32 %v438, %v460
        %v559 = vmul.f32 %v439, %v461
        %v560 = vmul.f32 %v440, %v462
        %v561 = vmul.f32 %v441, %v463
        %v562 = vmul.f32 %v442, %v464
        %v563 = vmul.f32 %v443, %v465
        %v564 = vmul.f32 %v444, %v466
        %v565 = vmul.f32 %v445, %v467
        %v566 = vmul.f32 %v446, %v468
        %v567 = vmul.f32 %v447, %v469
        %v568 = vmul.f32 %v448, %v470
        %v569 = vmul.f32 %v449, %v471
        %v570 = vmul.f32 %v450, %v472
        %v571 = vmul.f32 %v451, %v473
        %v572 = vmul.f32 %v452, %v474
        %v573 = vmul.f32 %v453, %v475
        %v574 = vmul.f32 %v454, %v476
        %v575 = vmul.f32 %v455, %v477
        %v576 = vmul.f32 %v456, %v478
        %v577 = vsub.f32 1.0, %v459
        %v578 = vsub.f32 1.0, %v460
        %v579 = vsub.f32 1.0, %v461
        %v580 = vsub.f32 1.0, %v462
        %v581 = vsub.f32 1.0, %v463
        %v582 = vsub.f32 1.0, %v464
        %v583 = vsub.f32 1.0, %v465
        %v584 = vsub.f32 1.0, %v466
        %v585 = vsub.f32 1.0, %v467
        %v586 = vsub.f32 1.0, %v468
        %v587 = vsub.f32 1.0, %v469
        %v588 = vsub.f32 1.0, %v470
        %v589 = vsub.f32 1.0, %v471
        %v590 = vsub.f32 1.0, %v472
        %v591 = vsub.f32 1.0, %v473
        %v592 = vsub.f32 1.0, %v474
        %v593 = vsub.f32 1.0, %v475
        %v594 = vsub.f32 1.0, %v476
        %v595 = vsub.f32 1.0, %v477
        %v596 = vsub.f32 1.0, %v478
        %v597 = vstv %s479
        %v598 = vmul.f32 %v597, %v577
        %v599 = vmul.f32 %v597, %v578
        %v600 = vmul.f32 %v597, %v579
        %v601 = vmul.f32 %v597, %v580
        %v602 = vmul.f32 %v597, %v581
        %v603 = vmul.f32 %v597, %v582
        %v604 = vmul.f32 %v597, %v583
        %v605 = vmul.f32 %v597, %v584
        %v606 = vmul.f32 %v597, %v585
        %v607 = vmul.f32 %v597, %v586
        %v608 = vmul.f32 %v597, %v587
        %v609 = vmul.f32 %v597, %v588
        %v610 = vmul.f32 %v597, %v589
        %v611 = vmul.f32 %v597, %v590
        %v612 = vmul.f32 %v597, %v591
        %v613 = vmul.f32 %v597, %v592
        %v614 = vmul.f32 %v597, %v593
        %v615 = vmul.f32 %v597, %v594
        %v616 = vmul.f32 %v597, %v595
        %v617 = vmul.f32 %v597, %v596
        %v618 = vadd.f32 %v557, %v598
        %v619 = vadd.f32 %v558, %v599
        %v620 = vadd.f32 %v559, %v600
        %v621 = vadd.f32 %v560, %v601
        %v622 = vadd.f32 %v561, %v602
        %v623 = vadd.f32 %v562, %v603
        %v624 = vadd.f32 %v563, %v604
        %v625 = vadd.f32 %v564, %v605
        %v626 = vadd.f32 %v565, %v606
        %v627 = vadd.f32 %v566, %v607
        %v628 = vadd.f32 %v567, %v608
        %v629 = vadd.f32 %v568, %v609
        %v630 = vadd.f32 %v569, %v610
        %v631 = vadd.f32 %v570, %v611
        %v632 = vadd.f32 %v571, %v612
        %v633 = vadd.f32 %v572, %v613
        %v634 = vadd.f32 %v573, %v614
        %v635 = vadd.f32 %v574, %v615
        %v636 = vadd.f32 %v575, %v616
        %v637 = vadd.f32 %v576, %v617
        %v638 = vsel %vm537, %v618, 0.0
        %v639 = vsel %vm538, %v619, 0.0
        %v640 = vsel %vm539, %v620, 0.0
        %v641 = vsel %vm540, %v621, 0.0
        %v642 = vsel %vm541, %v622, 0.0
        %v643 = vsel %vm542, %v623, 0.0
        %v644 = vsel %vm543, %v624, 0.0
        %v645 = vsel %vm544, %v625, 0.0
        %v646 = vsel %vm545, %v626, 0.0
        %v647 = vsel %vm546, %v627, 0.0
        %v648 = vsel %vm547, %v628, 0.0
        %v649 = vsel %vm548, %v629, 0.0
        %v650 = vsel %vm549, %v630, 0.0
        %v651 = vsel %vm550, %v631, 0.0
        %v652 = vsel %vm551, %v632, 0.0
        %v653 = vsel %vm552, %v633, 0.0
        %v654 = vsel %vm553, %v634, 0.0
        %v655 = vsel %vm554, %v635, 0.0
        %v656 = vsel %vm555, %v636, 0.0
        %v657 = vsel %vm556, %v637, 0.0
        %v658 = vld [vmem:[%s389] sm:$0xff]
        %v659 = vld [vmem:[%s389 + $0x8] sm:$0xff]
        %v660 = vld [vmem:[%s389 + $0x10] sm:$0xff]
        %v661 = vld [vmem:[%s389 + $0x18] sm:$0xff]
        %v662 = vld [vmem:[%s389 + $0x20] sm:$0xff]
        %v663 = vld [vmem:[%s389 + $0x28] sm:$0xff]
        %v664 = vld [vmem:[%s389 + $0x30] sm:$0xff]
        %v665 = vld [vmem:[%s389 + $0x38] sm:$0xff]
        %v666 = vld [vmem:[%s389 + $0x40] sm:$0xff]
        %v667 = vld [vmem:[%s389 + $0x48] sm:$0xff]
        %v668 = vld [vmem:[%s389 + $0x50] sm:$0xff]
        %v669 = vld [vmem:[%s389 + $0x58] sm:$0xff]
        %v670 = vld [vmem:[%s389 + $0x60] sm:$0xff]
        %v671 = vld [vmem:[%s389 + $0x68] sm:$0xff]
        %v672 = vld [vmem:[%s389 + $0x70] sm:$0xff]
        %v673 = vld [vmem:[%s389 + $0x78] sm:$0xff]
        %674 = vst [vmem:[%s400] sm:$0xff] %v640
        %675 = vst [vmem:[%s400 + $0x8] sm:$0xff] %v641
        %676 = vst [vmem:[%s400 + $0x10] sm:$0xff] %v642
        %677 = vst [vmem:[%s400 + $0x18] sm:$0xff] %v643
        %678 = vst [vmem:[%s400 + $0x20] sm:$0xff] %v644
        %679 = vst [vmem:[%s400 + $0x28] sm:$0xff] %v645
        %680 = vst [vmem:[%s400 + $0x30] sm:$0xff] %v646
        %681 = vst [vmem:[%s400 + $0x38] sm:$0xff] %v647
        %682 = vst [vmem:[%s400 + $0x40] sm:$0xff] %v648
        %683 = vst [vmem:[%s400 + $0x48] sm:$0xff] %v649
        %684 = vst [vmem:[%s400 + $0x50] sm:$0xff] %v650
        %685 = vst [vmem:[%s400 + $0x58] sm:$0xff] %v651
        %686 = vst [vmem:[%s400 + $0x60] sm:$0xff] %v652
        %687 = vst [vmem:[%s400 + $0x68] sm:$0xff] %v653
        %688 = vst [vmem:[%s400 + $0x70] sm:$0xff] %v654
        %689 = vst [vmem:[%s400 + $0x78] sm:$0xff] %v655
        %v690 = vsub.f32 %v417, %v640
        %v691 = vsub.f32 %v418, %v641
        %v692 = vsub.f32 %v419, %v642
        %v693 = vsub.f32 %v420, %v643
        %v694 = vsub.f32 %v421, %v644
        %v695 = vsub.f32 %v422, %v645
        %v696 = vsub.f32 %v423, %v646
        %v697 = vsub.f32 %v424, %v647
        %v698 = vsub.f32 %v425, %v648
        %v699 = vsub.f32 %v426, %v649
        %v700 = vsub.f32 %v427, %v650
        %v701 = vsub.f32 %v428, %v651
        %v702 = vsub.f32 %v429, %v652
        %v703 = vsub.f32 %v430, %v653
        %v704 = vsub.f32 %v431, %v654
        %v705 = vsub.f32 %v432, %v655
        %v706 = vand.u32 2147483647, %v690
        %v707 = vand.u32 2147483647, %v691
        %v708 = vand.u32 2147483647, %v692
        %v709 = vand.u32 2147483647, %v693
        %v710 = vand.u32 2147483647, %v694
        %v711 = vand.u32 2147483647, %v695
        %v712 = vand.u32 2147483647, %v696
        %v713 = vand.u32 2147483647, %v697
        %v714 = vand.u32 2147483647, %v698
        %v715 = vand.u32 2147483647, %v699
        %v716 = vand.u32 2147483647, %v700
        %v717 = vand.u32 2147483647, %v701
        %v718 = vand.u32 2147483647, %v702
        %v719 = vand.u32 2147483647, %v703
        %v720 = vand.u32 2147483647, %v704
        %v721 = vand.u32 2147483647, %v705
        %v722 = vmul.f32 %v706, %v658
        %v723 = vmul.f32 %v707, %v659
        %v724 = vmul.f32 %v708, %v660
        %v725 = vmul.f32 %v709, %v661
        %v726 = vmul.f32 %v710, %v662
        %v727 = vmul.f32 %v711, %v663
        %v728 = vmul.f32 %v712, %v664
        %v729 = vmul.f32 %v713, %v665
        %v730 = vmul.f32 %v714, %v666
        %v731 = vmul.f32 %v715, %v667
        %v732 = vmul.f32 %v716, %v668
        %v733 = vmul.f32 %v717, %v669
        %v734 = vmul.f32 %v718, %v670
        %v735 = vmul.f32 %v719, %v671
        %v736 = vmul.f32 %v720, %v672
        %v737 = vmul.f32 %v721, %v673
        %v738 = vadd.f32 %v722, %v723
        %v739 = vadd.f32 %v738, %v724
        %v740 = vadd.f32 %v739, %v725
        %v741 = vadd.f32 %v740, %v726
        %v742 = vadd.f32 %v741, %v727
        %v743 = vadd.f32 %v742, %v728
        %v744 = vadd.f32 %v743, %v729
        %v745 = vadd.f32 %v744, %v730
        %v746 = vadd.f32 %v745, %v731
        %v747 = vadd.f32 %v746, %v732
        %v748 = vadd.f32 %v747, %v733
        %v749 = vadd.f32 %v748, %v734
        %v750 = vadd.f32 %v749, %v735
        %v751 = vadd.f32 %v750, %v736
        %v752 = vadd.f32 %v751, %v737
        %753 = vadd.xlane.f32.xlu0 %v752
        %v754 = vpop.xlane.xlu0 %753
        %v755 = vrot.slane %v754, 4
        %v756 = vadd.f32 %v754, %v755
        %v757 = vrot.slane %v756, 2
        %v758 = vadd.f32 %v756, %v757
        %v759 = vrot.slane %v758, 1
        %v760 = vadd.f32 %v758, %v759
        %s761 = vtos %v760
        %762 = vst [vmem:[#allocation2] sm:$0xff] 0.0
        %763 = vst [vmem:[#allocation2 + $0x20] sm:$0xff] 0.0
        %764 = vst [vmem:[#allocation2 + $0x40] sm:$0xff] 0.0
        %765 = vst [vmem:[#allocation2 + $0x60] sm:$0xff] 0.0
        %766 = vst [vmem:[#allocation2 + $0x80] sm:$0xff] 0.0
        %767 = vst [vmem:[#allocation2 + $0xa0] sm:$0xff] 0.0
        %768 = vst [vmem:[#allocation2 + $0xc0] sm:$0xff] 0.0
        %769 = vst [vmem:[#allocation2 + $0xe0] sm:$0xff] 0.0
        %770 = vst [vmem:[#allocation2 + $0x100] sm:$0xff] 0.0
        %771 = vst [vmem:[#allocation2 + $0x120] sm:$0xff] 0.0
        %772 = vst [vmem:[#allocation2 + $0x140] sm:$0xff] 0.0
        %773 = vst [vmem:[#allocation2 + $0x160] sm:$0xff] 0.0
        %774 = vst [vmem:[#allocation2 + $0x180] sm:$0xff] 0.0
        %775 = vst [vmem:[#allocation2 + $0x1a0] sm:$0xff] 0.0
        %776 = vst [vmem:[#allocation2 + $0x1c0] sm:$0xff] 0.0
        %777 = vst [vmem:[#allocation2 + $0x1e0] sm:$0xff] 0.0
        %778 = vst [vmem:[#allocation2 + $0x200] sm:$0xff] 0.0
        %779 = vst [vmem:[#allocation2 + $0x220] sm:$0xff] 0.0
        %780 = vst [vmem:[#allocation2 + $0x240] sm:$0xff] 0.0
        %781 = vst [vmem:[#allocation2 + $0x260] sm:$0xff] 0.0
        %782 = vst [vmem:[#allocation2 + $0x280] sm:$0xff] 0.0
        %783 = vst [vmem:[#allocation2 + $0x2a0] sm:$0xff] 0.0
        %784 = vst [vmem:[#allocation2 + $0x2c0] sm:$0xff] 0.0
        %785 = vst [vmem:[#allocation2 + $0x2e0] sm:$0xff] 0.0
        %786 = vst [vmem:[#allocation2 + $0x300] sm:$0xff] 0.0
        %787 = vst [vmem:[#allocation2 + $0x320] sm:$0xff] 0.0
        %788 = vst [vmem:[#allocation2 + $0x340] sm:$0xff] 0.0
        %789 = vst [vmem:[#allocation2 + $0x360] sm:$0xff] 0.0
        %790 = vst [vmem:[#allocation2 + $0x380] sm:$0xff] 0.0
        %791 = vst [vmem:[#allocation2 + $0x3a0] sm:$0xff] 0.0
        %792 = vst [vmem:[#allocation2 + $0x3c0] sm:$0xff] 0.0
        %793 = vst [vmem:[#allocation2 + $0x3e0] sm:$0xff] 0.0
        %794 = vst [vmem:[#allocation2 + $0x400] sm:$0xff] 0.0
        %795 = vst [vmem:[#allocation2 + $0x420] sm:$0xff] 0.0
        %796 = vst [vmem:[#allocation2 + $0x440] sm:$0xff] 0.0
        %797 = vst [vmem:[#allocation2 + $0x460] sm:$0xff] 0.0
        %798 = vst [vmem:[#allocation2 + $0x480] sm:$0xff] 0.0
        %799 = vst [vmem:[#allocation2 + $0x4a0] sm:$0xff] 0.0
        %800 = vst [vmem:[#allocation2 + $0x4c0] sm:$0xff] 0.0
        %801 = vst [vmem:[#allocation2 + $0x4e0] sm:$0xff] 0.0
        %802 = vst [vmem:[#allocation2 + $0x18] sm:$0xff] 0.0
        %803 = vst [vmem:[#allocation2 + $0x38] sm:$0xff] 0.0
        %804 = vst [vmem:[#allocation2 + $0x58] sm:$0xff] 0.0
        %805 = vst [vmem:[#allocation2 + $0x78] sm:$0xff] 0.0
        %806 = vst [vmem:[#allocation2 + $0x98] sm:$0xff] 0.0
        %807 = vst [vmem:[#allocation2 + $0xb8] sm:$0xff] 0.0
        %808 = vst [vmem:[#allocation2 + $0xd8] sm:$0xff] 0.0
        %809 = vst [vmem:[#allocation2 + $0xf8] sm:$0xff] 0.0
        %810 = vst [vmem:[#allocation2 + $0x118] sm:$0xff] 0.0
        %811 = vst [vmem:[#allocation2 + $0x138] sm:$0xff] 0.0
        %812 = vst [vmem:[#allocation2 + $0x158] sm:$0xff] 0.0
        %813 = vst [vmem:[#allocation2 + $0x178] sm:$0xff] 0.0
        %814 = vst [vmem:[#allocation2 + $0x198] sm:$0xff] 0.0
        %815 = vst [vmem:[#allocation2 + $0x1b8] sm:$0xff] 0.0
        %816 = vst [vmem:[#allocation2 + $0x1d8] sm:$0xff] 0.0
        %817 = vst [vmem:[#allocation2 + $0x1f8] sm:$0xff] 0.0
        %818 = vst [vmem:[#allocation2 + $0x218] sm:$0xff] 0.0
        %819 = vst [vmem:[#allocation2 + $0x238] sm:$0xff] 0.0
        %820 = vst [vmem:[#allocation2 + $0x258] sm:$0xff] 0.0
        %821 = vst [vmem:[#allocation2 + $0x278] sm:$0xff] 0.0
        %822 = vst [vmem:[#allocation2 + $0x298] sm:$0xff] 0.0
        %823 = vst [vmem:[#allocation2 + $0x2b8] sm:$0xff] 0.0
        %824 = vst [vmem:[#allocation2 + $0x2d8] sm:$0xff] 0.0
        %825 = vst [vmem:[#allocation2 + $0x2f8] sm:$0xff] 0.0
        %826 = vst [vmem:[#allocation2 + $0x318] sm:$0xff] 0.0
        %827 = vst [vmem:[#allocation2 + $0x338] sm:$0xff] 0.0
        %828 = vst [vmem:[#allocation2 + $0x358] sm:$0xff] 0.0
        %829 = vst [vmem:[#allocation2 + $0x378] sm:$0xff] 0.0
        %830 = vst [vmem:[#allocation2 + $0x398] sm:$0xff] 0.0
        %831 = vst [vmem:[#allocation2 + $0x3b8] sm:$0xff] 0.0
        %832 = vst [vmem:[#allocation2 + $0x3d8] sm:$0xff] 0.0
        %833 = vst [vmem:[#allocation2 + $0x3f8] sm:$0xff] 0.0
        %834 = vst [vmem:[#allocation2 + $0x418] sm:$0xff] 0.0
        %835 = vst [vmem:[#allocation2 + $0x438] sm:$0xff] 0.0
        %836 = vst [vmem:[#allocation2 + $0x458] sm:$0xff] 0.0
        %837 = vst [vmem:[#allocation2 + $0x478] sm:$0xff] 0.0
        %838 = vst [vmem:[#allocation2 + $0x498] sm:$0xff] 0.0
        %839 = vst [vmem:[#allocation2 + $0x4b8] sm:$0xff] 0.0
        %840 = vst [vmem:[#allocation2 + $0x4d8] sm:$0xff] 0.0
        %841 = vst [vmem:[#allocation2 + $0x4f8] sm:$0xff] 0.0
        %v842 = vld [vmem:[%s5] sm:$0xff]
        %v843 = vld [vmem:[%s5 + $0x8] sm:$0xff]
        %v844 = vld [vmem:[%s5 + $0x10] sm:$0xff]
        %v845 = vld [vmem:[%s5 + $0x18] sm:$0xff]
        %v846 = vld [vmem:[%s5 + $0x20] sm:$0xff]
        %v847 = vld [vmem:[%s5 + $0x28] sm:$0xff]
        %v848 = vld [vmem:[%s5 + $0x30] sm:$0xff]
        %v849 = vld [vmem:[%s5 + $0x38] sm:$0xff]
        %vm850 = vcmask 654336
        %v852 = vsel %vm850, %v842, 0
        %v855 = vsel %vm850, %v843, 0
        %v858 = vsel %vm850, %v844, 0
        %v861 = vsel %vm850, %v845, 0
        %v864 = vsel %vm850, %v846, 0
        %v867 = vsel %vm850, %v847, 0
        %v870 = vsel %vm850, %v848, 0
        %v873 = vsel %vm850, %v849, 0
        %875 = vmatpush.msra.mxu0 0.0
        %876 = vmatpush.msra.mxu0 0.0
        %877 = vmatpush.msra.mxu0 0.0
        %878 = vmatpush.msra.mxu0 0.0
        %879 = vmatpush.msra.mxu0 0.0
        %880 = vmatpush.msra.mxu0 0.0
        %881 = vmatpush.msra.mxu0 %v433
        %882 = vmatpush.msra.mxu0 %v431
        %883 = vmatpush.msra.mxu0 %v429
        %884 = vmatpush.msra.mxu0 %v427
        %885 = vmatpush.msra.mxu0 %v425
        %886 = vmatpush.msra.mxu0 %v423
        %887 = vmatpush.msra.mxu0 %v421
        %888 = vmatpush.msra.mxu0 %v419
        %889 = vmatpush.msra.mxu0 %v417
        %890 = vmatpush.msra.mxu0 %v415
        %891 = vmatmul.f32.gmra.mxu0 %v852
        %v892 = vpop.f32.mrf.mxu0
        %v893 = vadd.f32 0.0, %v892
        %894 = vmatmul.f32.gmra.mxu0 %v855
        %v895 = vpop.f32.mrf.mxu0
        %v896 = vadd.f32 0.0, %v895
        %897 = vmatmul.f32.gmra.mxu0 %v858
        %v898 = vpop.f32.mrf.mxu0
        %v899 = vadd.f32 0.0, %v898
        %900 = vmatmul.f32.gmra.mxu0 %v861
        %v901 = vpop.f32.mrf.mxu0
        %v902 = vadd.f32 0.0, %v901
        %903 = vmatmul.f32.gmra.mxu0 %v864
        %v904 = vpop.f32.mrf.mxu0
        %v905 = vadd.f32 0.0, %v904
        %906 = vmatmul.f32.gmra.mxu0 %v867
        %v907 = vpop.f32.mrf.mxu0
        %v908 = vadd.f32 0.0, %v907
        %909 = vmatmul.f32.gmra.mxu0 %v870
        %v910 = vpop.f32.mrf.mxu0
        %v911 = vadd.f32 0.0, %v910
        %912 = vmatmul.f32.gmra.mxu0 %v873
        %v913 = vpop.f32.mrf.mxu0
        %v914 = vadd.f32 0.0, %v913
        %915 = vdwg.mxu0
        %916 = vmatpush.msra.mxu0 0.0
        %917 = vmatpush.msra.mxu0 0.0
        %918 = vmatpush.msra.mxu0 0.0
        %919 = vmatpush.msra.mxu0 0.0
        %920 = vmatpush.msra.mxu0 0.0
        %921 = vmatpush.msra.mxu0 0.0
        %922 = vmatpush.msra.mxu0 %v434
        %923 = vmatpush.msra.mxu0 %v432
        %924 = vmatpush.msra.mxu0 %v430
        %925 = vmatpush.msra.mxu0 %v428
        %926 = vmatpush.msra.mxu0 %v426
        %927 = vmatpush.msra.mxu0 %v424
        %928 = vmatpush.msra.mxu0 %v422
        %929 = vmatpush.msra.mxu0 %v420
        %930 = vmatpush.msra.mxu0 %v418
        %931 = vmatpush.msra.mxu0 %v416
        %932 = vmatmul.f32.gmra.mxu0 %v852
        %v933 = vpop.f32.mrf.mxu0
        %v934 = vadd.f32 0.0, %v933
        %935 = vmatmul.f32.gmra.mxu0 %v855
        %v936 = vpop.f32.mrf.mxu0
        %v937 = vadd.f32 0.0, %v936
        %938 = vmatmul.f32.gmra.mxu0 %v858
        %v939 = vpop.f32.mrf.mxu0
        %v940 = vadd.f32 0.0, %v939
        %941 = vmatmul.f32.gmra.mxu0 %v861
        %v942 = vpop.f32.mrf.mxu0
        %v943 = vadd.f32 0.0, %v942
        %944 = vmatmul.f32.gmra.mxu0 %v864
        %v945 = vpop.f32.mrf.mxu0
        %v946 = vadd.f32 0.0, %v945
        %947 = vmatmul.f32.gmra.mxu0 %v867
        %v948 = vpop.f32.mrf.mxu0
        %v949 = vadd.f32 0.0, %v948
        %950 = vmatmul.f32.gmra.mxu0 %v870
        %v951 = vpop.f32.mrf.mxu0
        %v952 = vadd.f32 0.0, %v951
        %953 = vmatmul.f32.gmra.mxu0 %v873
        %v954 = vpop.f32.mrf.mxu0
        %v955 = vadd.f32 0.0, %v954
        %956 = vdwg.mxu0
        %957 = vst [vmem:[#allocation2 + $0x8] sm:$0xff] %v893
        %958 = vst [vmem:[#allocation2 + $0x10] sm:$0xff] %v934
        %959 = vst [vmem:[#allocation2 + $0x28] sm:$0xff] %v896
        %960 = vst [vmem:[#allocation2 + $0x30] sm:$0xff] %v937
        %961 = vst [vmem:[#allocation2 + $0x48] sm:$0xff] %v899
        %962 = vst [vmem:[#allocation2 + $0x50] sm:$0xff] %v940
        %963 = vst [vmem:[#allocation2 + $0x68] sm:$0xff] %v902
        %964 = vst [vmem:[#allocation2 + $0x70] sm:$0xff] %v943
        %965 = vst [vmem:[#allocation2 + $0x88] sm:$0xff] %v905
        %966 = vst [vmem:[#allocation2 + $0x90] sm:$0xff] %v946
        %967 = vst [vmem:[#allocation2 + $0xa8] sm:$0xff] %v908
        %968 = vst [vmem:[#allocation2 + $0xb0] sm:$0xff] %v949
        %969 = vst [vmem:[#allocation2 + $0xc8] sm:$0xff] %v911
        %970 = vst [vmem:[#allocation2 + $0xd0] sm:$0xff] %v952
        %971 = vst [vmem:[#allocation2 + $0xe8] sm:$0xff] %v914
        %972 = vst [vmem:[#allocation2 + $0xf0] sm:$0xff] %v955
        %973 = vmatpush.msra.mxu0 0.0
        %974 = vmatpush.msra.mxu0 0.0
        %975 = vmatpush.msra.mxu0 0.0
        %976 = vmatpush.msra.mxu0 0.0
        %977 = vmatpush.msra.mxu0 0.0
        %978 = vmatpush.msra.mxu0 0.0
        %979 = vmatpush.msra.mxu0 %v656
        %980 = vmatpush.msra.mxu0 %v654
        %981 = vmatpush.msra.mxu0 %v652
        %982 = vmatpush.msra.mxu0 %v650
        %983 = vmatpush.msra.mxu0 %v648
        %984 = vmatpush.msra.mxu0 %v646
        %985 = vmatpush.msra.mxu0 %v644
        %986 = vmatpush.msra.mxu0 %v642
        %987 = vmatpush.msra.mxu0 %v640
        %988 = vmatpush.msra.mxu0 %v638
        %989 = vmatmul.f32.gmra.mxu0 %v852
        %v990 = vpop.f32.mrf.mxu0
        %v991 = vadd.f32 0.0, %v990
        %992 = vmatmul.f32.gmra.mxu0 %v855
        %v993 = vpop.f32.mrf.mxu0
        %v994 = vadd.f32 0.0, %v993
        %995 = vmatmul.f32.gmra.mxu0 %v858
        %v996 = vpop.f32.mrf.mxu0
        %v997 = vadd.f32 0.0, %v996
        %998 = vmatmul.f32.gmra.mxu0 %v861
        %v999 = vpop.f32.mrf.mxu0
        %v1000 = vadd.f32 0.0, %v999
        %1001 = vmatmul.f32.gmra.mxu0 %v864
        %v1002 = vpop.f32.mrf.mxu0
        %v1003 = vadd.f32 0.0, %v1002
        %1004 = vmatmul.f32.gmra.mxu0 %v867
        %v1005 = vpop.f32.mrf.mxu0
        %v1006 = vadd.f32 0.0, %v1005
        %1007 = vmatmul.f32.gmra.mxu0 %v870
        %v1008 = vpop.f32.mrf.mxu0
        %v1009 = vadd.f32 0.0, %v1008
        %1010 = vmatmul.f32.gmra.mxu0 %v873
        %v1011 = vpop.f32.mrf.mxu0
        %v1012 = vadd.f32 0.0, %v1011
        %1013 = vdwg.mxu0
        %1014 = vmatpush.msra.mxu0 0.0
        %1015 = vmatpush.msra.mxu0 0.0
        %1016 = vmatpush.msra.mxu0 0.0
        %1017 = vmatpush.msra.mxu0 0.0
        %1018 = vmatpush.msra.mxu0 0.0
        %1019 = vmatpush.msra.mxu0 0.0
        %1020 = vmatpush.msra.mxu0 %v657
        %1021 = vmatpush.msra.mxu0 %v655
        %1022 = vmatpush.msra.mxu0 %v653
        %1023 = vmatpush.msra.mxu0 %v651
        %1024 = vmatpush.msra.mxu0 %v649
        %1025 = vmatpush.msra.mxu0 %v647
        %1026 = vmatpush.msra.mxu0 %v645
        %1027 = vmatpush.msra.mxu0 %v643
        %1028 = vmatpush.msra.mxu0 %v641
        %1029 = vmatpush.msra.mxu0 %v639
        %1030 = vmatmul.f32.gmra.mxu0 %v852
        %v1031 = vpop.f32.mrf.mxu0
        %v1032 = vadd.f32 0.0, %v1031
        %1033 = vmatmul.f32.gmra.mxu0 %v855
        %v1034 = vpop.f32.mrf.mxu0
        %v1035 = vadd.f32 0.0, %v1034
        %1036 = vmatmul.f32.gmra.mxu0 %v858
        %v1037 = vpop.f32.mrf.mxu0
        %v1038 = vadd.f32 0.0, %v1037
        %1039 = vmatmul.f32.gmra.mxu0 %v861
        %v1040 = vpop.f32.mrf.mxu0
        %v1041 = vadd.f32 0.0, %v1040
        %1042 = vmatmul.f32.gmra.mxu0 %v864
        %v1043 = vpop.f32.mrf.mxu0
        %v1044 = vadd.f32 0.0, %v1043
        %1045 = vmatmul.f32.gmra.mxu0 %v867
        %v1046 = vpop.f32.mrf.mxu0
        %v1047 = vadd.f32 0.0, %v1046
        %1048 = vmatmul.f32.gmra.mxu0 %v870
        %v1049 = vpop.f32.mrf.mxu0
        %v1050 = vadd.f32 0.0, %v1049
        %1051 = vmatmul.f32.gmra.mxu0 %v873
        %v1052 = vpop.f32.mrf.mxu0
        %v1053 = vadd.f32 0.0, %v1052
        %1054 = vdwg.mxu0
        %1055 = vst [vmem:[#allocation2 + $0x108] sm:$0xff] %v991
        %1056 = vst [vmem:[#allocation2 + $0x110] sm:$0xff] %v1032
        %1057 = vst [vmem:[#allocation2 + $0x128] sm:$0xff] %v994
        %1058 = vst [vmem:[#allocation2 + $0x130] sm:$0xff] %v1035
        %1059 = vst [vmem:[#allocation2 + $0x148] sm:$0xff] %v997
        %1060 = vst [vmem:[#allocation2 + $0x150] sm:$0xff] %v1038
        %1061 = vst [vmem:[#allocation2 + $0x168] sm:$0xff] %v1000
        %1062 = vst [vmem:[#allocation2 + $0x170] sm:$0xff] %v1041
        %1063 = vst [vmem:[#allocation2 + $0x188] sm:$0xff] %v1003
        %1064 = vst [vmem:[#allocation2 + $0x190] sm:$0xff] %v1044
        %1065 = vst [vmem:[#allocation2 + $0x1a8] sm:$0xff] %v1006
        %1066 = vst [vmem:[#allocation2 + $0x1b0] sm:$0xff] %v1047
        %1067 = vst [vmem:[#allocation2 + $0x1c8] sm:$0xff] %v1009
        %1068 = vst [vmem:[#allocation2 + $0x1d0] sm:$0xff] %v1050
        %1069 = vst [vmem:[#allocation2 + $0x1e8] sm:$0xff] %v1012
        %1070 = vst [vmem:[#allocation2 + $0x1f0] sm:$0xff] %v1053
        %v1071 = vmul.f32 %v415, %v415
        %v1072 = vmul.f32 %v416, %v416
        %v1073 = vmul.f32 %v417, %v417
        %v1074 = vmul.f32 %v418, %v418
        %v1075 = vmul.f32 %v419, %v419
        %v1076 = vmul.f32 %v420, %v420
        %v1077 = vmul.f32 %v421, %v421
        %v1078 = vmul.f32 %v422, %v422
        %v1079 = vmul.f32 %v423, %v423
        %v1080 = vmul.f32 %v424, %v424
        %v1081 = vmul.f32 %v425, %v425
        %v1082 = vmul.f32 %v426, %v426
        %v1083 = vmul.f32 %v427, %v427
        %v1084 = vmul.f32 %v428, %v428
        %v1085 = vmul.f32 %v429, %v429
        %v1086 = vmul.f32 %v430, %v430
        %v1087 = vmul.f32 %v431, %v431
        %v1088 = vmul.f32 %v432, %v432
        %v1089 = vmul.f32 %v433, %v433
        %v1090 = vmul.f32 %v434, %v434
        %1091 = vmatpush.msra.mxu0 0.0
        %1092 = vmatpush.msra.mxu0 0.0
        %1093 = vmatpush.msra.mxu0 0.0
        %1094 = vmatpush.msra.mxu0 0.0
        %1095 = vmatpush.msra.mxu0 0.0
        %1096 = vmatpush.msra.mxu0 0.0
        %1097 = vmatpush.msra.mxu0 %v1089
        %1098 = vmatpush.msra.mxu0 %v1087
        %1099 = vmatpush.msra.mxu0 %v1085
        %1100 = vmatpush.msra.mxu0 %v1083
        %1101 = vmatpush.msra.mxu0 %v1081
        %1102 = vmatpush.msra.mxu0 %v1079
        %1103 = vmatpush.msra.mxu0 %v1077
        %1104 = vmatpush.msra.mxu0 %v1075
        %1105 = vmatpush.msra.mxu0 %v1073
        %1106 = vmatpush.msra.mxu0 %v1071
        %1107 = vmatmul.f32.gmra.mxu0 %v852
        %v1108 = vpop.f32.mrf.mxu0
        %v1109 = vadd.f32 0.0, %v1108
        %1110 = vmatmul.f32.gmra.mxu0 %v855
        %v1111 = vpop.f32.mrf.mxu0
        %v1112 = vadd.f32 0.0, %v1111
        %1113 = vmatmul.f32.gmra.mxu0 %v858
        %v1114 = vpop.f32.mrf.mxu0
        %v1115 = vadd.f32 0.0, %v1114
        %1116 = vmatmul.f32.gmra.mxu0 %v861
        %v1117 = vpop.f32.mrf.mxu0
        %v1118 = vadd.f32 0.0, %v1117
        %1119 = vmatmul.f32.gmra.mxu0 %v864
        %v1120 = vpop.f32.mrf.mxu0
        %v1121 = vadd.f32 0.0, %v1120
        %1122 = vmatmul.f32.gmra.mxu0 %v867
        %v1123 = vpop.f32.mrf.mxu0
        %v1124 = vadd.f32 0.0, %v1123
        %1125 = vmatmul.f32.gmra.mxu0 %v870
        %v1126 = vpop.f32.mrf.mxu0
        %v1127 = vadd.f32 0.0, %v1126
        %1128 = vmatmul.f32.gmra.mxu0 %v873
        %v1129 = vpop.f32.mrf.mxu0
        %v1130 = vadd.f32 0.0, %v1129
        %1131 = vdwg.mxu0
        %1132 = vmatpush.msra.mxu0 0.0
        %1133 = vmatpush.msra.mxu0 0.0
        %1134 = vmatpush.msra.mxu0 0.0
        %1135 = vmatpush.msra.mxu0 0.0
        %1136 = vmatpush.msra.mxu0 0.0
        %1137 = vmatpush.msra.mxu0 0.0
        %1138 = vmatpush.msra.mxu0 %v1090
        %1139 = vmatpush.msra.mxu0 %v1088
        %1140 = vmatpush.msra.mxu0 %v1086
        %1141 = vmatpush.msra.mxu0 %v1084
        %1142 = vmatpush.msra.mxu0 %v1082
        %1143 = vmatpush.msra.mxu0 %v1080
        %1144 = vmatpush.msra.mxu0 %v1078
        %1145 = vmatpush.msra.mxu0 %v1076
        %1146 = vmatpush.msra.mxu0 %v1074
        %1147 = vmatpush.msra.mxu0 %v1072
        %1148 = vmatmul.f32.gmra.mxu0 %v852
        %v1149 = vpop.f32.mrf.mxu0
        %v1150 = vadd.f32 0.0, %v1149
        %1151 = vmatmul.f32.gmra.mxu0 %v855
        %v1152 = vpop.f32.mrf.mxu0
        %v1153 = vadd.f32 0.0, %v1152
        %1154 = vmatmul.f32.gmra.mxu0 %v858
        %v1155 = vpop.f32.mrf.mxu0
        %v1156 = vadd.f32 0.0, %v1155
        %1157 = vmatmul.f32.gmra.mxu0 %v861
        %v1158 = vpop.f32.mrf.mxu0
        %v1159 = vadd.f32 0.0, %v1158
        %1160 = vmatmul.f32.gmra.mxu0 %v864
        %v1161 = vpop.f32.mrf.mxu0
        %v1162 = vadd.f32 0.0, %v1161
        %1163 = vmatmul.f32.gmra.mxu0 %v867
        %v1164 = vpop.f32.mrf.mxu0
        %v1165 = vadd.f32 0.0, %v1164
        %1166 = vmatmul.f32.gmra.mxu0 %v870
        %v1167 = vpop.f32.mrf.mxu0
        %v1168 = vadd.f32 0.0, %v1167
        %1169 = vmatmul.f32.gmra.mxu0 %v873
        %v1170 = vpop.f32.mrf.mxu0
        %v1171 = vadd.f32 0.0, %v1170
        %1172 = vdwg.mxu0
        %1173 = vst [vmem:[#allocation2 + $0x208] sm:$0xff] %v1109
        %1174 = vst [vmem:[#allocation2 + $0x210] sm:$0xff] %v1150
        %1175 = vst [vmem:[#allocation2 + $0x228] sm:$0xff] %v1112
        %1176 = vst [vmem:[#allocation2 + $0x230] sm:$0xff] %v1153
        %1177 = vst [vmem:[#allocation2 + $0x248] sm:$0xff] %v1115
        %1178 = vst [vmem:[#allocation2 + $0x250] sm:$0xff] %v1156
        %1179 = vst [vmem:[#allocation2 + $0x268] sm:$0xff] %v1118
        %1180 = vst [vmem:[#allocation2 + $0x270] sm:$0xff] %v1159
        %1181 = vst [vmem:[#allocation2 + $0x288] sm:$0xff] %v1121
        %1182 = vst [vmem:[#allocation2 + $0x290] sm:$0xff] %v1162
        %1183 = vst [vmem:[#allocation2 + $0x2a8] sm:$0xff] %v1124
        %1184 = vst [vmem:[#allocation2 + $0x2b0] sm:$0xff] %v1165
        %1185 = vst [vmem:[#allocation2 + $0x2c8] sm:$0xff] %v1127
        %1186 = vst [vmem:[#allocation2 + $0x2d0] sm:$0xff] %v1168
        %1187 = vst [vmem:[#allocation2 + $0x2e8] sm:$0xff] %v1130
        %1188 = vst [vmem:[#allocation2 + $0x2f0] sm:$0xff] %v1171
        %v1189 = vmul.f32 %v638, %v638
        %v1190 = vmul.f32 %v639, %v639
        %v1191 = vmul.f32 %v640, %v640
        %v1192 = vmul.f32 %v641, %v641
        %v1193 = vmul.f32 %v642, %v642
        %v1194 = vmul.f32 %v643, %v643
        %v1195 = vmul.f32 %v644, %v644
        %v1196 = vmul.f32 %v645, %v645
        %v1197 = vmul.f32 %v646, %v646
        %v1198 = vmul.f32 %v647, %v647
        %v1199 = vmul.f32 %v648, %v648
        %v1200 = vmul.f32 %v649, %v649
        %v1201 = vmul.f32 %v650, %v650
        %v1202 = vmul.f32 %v651, %v651
        %v1203 = vmul.f32 %v652, %v652
        %v1204 = vmul.f32 %v653, %v653
        %v1205 = vmul.f32 %v654, %v654
        %v1206 = vmul.f32 %v655, %v655
        %v1207 = vmul.f32 %v656, %v656
        %v1208 = vmul.f32 %v657, %v657
        %1209 = vmatpush.msra.mxu0 0.0
        %1210 = vmatpush.msra.mxu0 0.0
        %1211 = vmatpush.msra.mxu0 0.0
        %1212 = vmatpush.msra.mxu0 0.0
        %1213 = vmatpush.msra.mxu0 0.0
        %1214 = vmatpush.msra.mxu0 0.0
        %1215 = vmatpush.msra.mxu0 %v1207
        %1216 = vmatpush.msra.mxu0 %v1205
        %1217 = vmatpush.msra.mxu0 %v1203
        %1218 = vmatpush.msra.mxu0 %v1201
        %1219 = vmatpush.msra.mxu0 %v1199
        %1220 = vmatpush.msra.mxu0 %v1197
        %1221 = vmatpush.msra.mxu0 %v1195
        %1222 = vmatpush.msra.mxu0 %v1193
        %1223 = vmatpush.msra.mxu0 %v1191
        %1224 = vmatpush.msra.mxu0 %v1189
        %1225 = vmatmul.f32.gmra.mxu0 %v852
        %v1226 = vpop.f32.mrf.mxu0
        %v1227 = vadd.f32 0.0, %v1226
        %1228 = vmatmul.f32.gmra.mxu0 %v855
        %v1229 = vpop.f32.mrf.mxu0
        %v1230 = vadd.f32 0.0, %v1229
        %1231 = vmatmul.f32.gmra.mxu0 %v858
        %v1232 = vpop.f32.mrf.mxu0
        %v1233 = vadd.f32 0.0, %v1232
        %1234 = vmatmul.f32.gmra.mxu0 %v861
        %v1235 = vpop.f32.mrf.mxu0
        %v1236 = vadd.f32 0.0, %v1235
        %1237 = vmatmul.f32.gmra.mxu0 %v864
        %v1238 = vpop.f32.mrf.mxu0
        %v1239 = vadd.f32 0.0, %v1238
        %1240 = vmatmul.f32.gmra.mxu0 %v867
        %v1241 = vpop.f32.mrf.mxu0
        %v1242 = vadd.f32 0.0, %v1241
        %1243 = vmatmul.f32.gmra.mxu0 %v870
        %v1244 = vpop.f32.mrf.mxu0
        %v1245 = vadd.f32 0.0, %v1244
        %1246 = vmatmul.f32.gmra.mxu0 %v873
        %v1247 = vpop.f32.mrf.mxu0
        %v1248 = vadd.f32 0.0, %v1247
        %1249 = vdwg.mxu0
        %1250 = vmatpush.msra.mxu0 0.0
        %1251 = vmatpush.msra.mxu0 0.0
        %1252 = vmatpush.msra.mxu0 0.0
        %1253 = vmatpush.msra.mxu0 0.0
        %1254 = vmatpush.msra.mxu0 0.0
        %1255 = vmatpush.msra.mxu0 0.0
        %1256 = vmatpush.msra.mxu0 %v1208
        %1257 = vmatpush.msra.mxu0 %v1206
        %1258 = vmatpush.msra.mxu0 %v1204
        %1259 = vmatpush.msra.mxu0 %v1202
        %1260 = vmatpush.msra.mxu0 %v1200
        %1261 = vmatpush.msra.mxu0 %v1198
        %1262 = vmatpush.msra.mxu0 %v1196
        %1263 = vmatpush.msra.mxu0 %v1194
        %1264 = vmatpush.msra.mxu0 %v1192
        %1265 = vmatpush.msra.mxu0 %v1190
        %1266 = vmatmul.f32.gmra.mxu0 %v852
        %v1267 = vpop.f32.mrf.mxu0
        %v1268 = vadd.f32 0.0, %v1267
        %1269 = vmatmul.f32.gmra.mxu0 %v855
        %v1270 = vpop.f32.mrf.mxu0
        %v1271 = vadd.f32 0.0, %v1270
        %1272 = vmatmul.f32.gmra.mxu0 %v858
        %v1273 = vpop.f32.mrf.mxu0
        %v1274 = vadd.f32 0.0, %v1273
        %1275 = vmatmul.f32.gmra.mxu0 %v861
        %v1276 = vpop.f32.mrf.mxu0
        %v1277 = vadd.f32 0.0, %v1276
        %1278 = vmatmul.f32.gmra.mxu0 %v864
        %v1279 = vpop.f32.mrf.mxu0
        %v1280 = vadd.f32 0.0, %v1279
        %1281 = vmatmul.f32.gmra.mxu0 %v867
        %v1282 = vpop.f32.mrf.mxu0
        %v1283 = vadd.f32 0.0, %v1282
        %1284 = vmatmul.f32.gmra.mxu0 %v870
        %v1285 = vpop.f32.mrf.mxu0
        %v1286 = vadd.f32 0.0, %v1285
        %1287 = vmatmul.f32.gmra.mxu0 %v873
        %v1288 = vpop.f32.mrf.mxu0
        %v1289 = vadd.f32 0.0, %v1288
        %1290 = vdwg.mxu0
        %1291 = vst [vmem:[#allocation2 + $0x308] sm:$0xff] %v1227
        %1292 = vst [vmem:[#allocation2 + $0x310] sm:$0xff] %v1268
        %1293 = vst [vmem:[#allocation2 + $0x328] sm:$0xff] %v1230
        %1294 = vst [vmem:[#allocation2 + $0x330] sm:$0xff] %v1271
        %1295 = vst [vmem:[#allocation2 + $0x348] sm:$0xff] %v1233
        %1296 = vst [vmem:[#allocation2 + $0x350] sm:$0xff] %v1274
        %1297 = vst [vmem:[#allocation2 + $0x368] sm:$0xff] %v1236
        %1298 = vst [vmem:[#allocation2 + $0x370] sm:$0xff] %v1277
        %1299 = vst [vmem:[#allocation2 + $0x388] sm:$0xff] %v1239
        %1300 = vst [vmem:[#allocation2 + $0x390] sm:$0xff] %v1280
        %1301 = vst [vmem:[#allocation2 + $0x3a8] sm:$0xff] %v1242
        %1302 = vst [vmem:[#allocation2 + $0x3b0] sm:$0xff] %v1283
        %1303 = vst [vmem:[#allocation2 + $0x3c8] sm:$0xff] %v1245
        %1304 = vst [vmem:[#allocation2 + $0x3d0] sm:$0xff] %v1286
        %1305 = vst [vmem:[#allocation2 + $0x3e8] sm:$0xff] %v1248
        %1306 = vst [vmem:[#allocation2 + $0x3f0] sm:$0xff] %v1289
        %v1307 = vmul.f32 %v415, %v638
        %v1308 = vmul.f32 %v416, %v639
        %v1309 = vmul.f32 %v417, %v640
        %v1310 = vmul.f32 %v418, %v641
        %v1311 = vmul.f32 %v419, %v642
        %v1312 = vmul.f32 %v420, %v643
        %v1313 = vmul.f32 %v421, %v644
        %v1314 = vmul.f32 %v422, %v645
        %v1315 = vmul.f32 %v423, %v646
        %v1316 = vmul.f32 %v424, %v647
        %v1317 = vmul.f32 %v425, %v648
        %v1318 = vmul.f32 %v426, %v649
        %v1319 = vmul.f32 %v427, %v650
        %v1320 = vmul.f32 %v428, %v651
        %v1321 = vmul.f32 %v429, %v652
        %v1322 = vmul.f32 %v430, %v653
        %v1323 = vmul.f32 %v431, %v654
        %v1324 = vmul.f32 %v432, %v655
        %v1325 = vmul.f32 %v433, %v656
        %v1326 = vmul.f32 %v434, %v657
        %1327 = vmatpush.msra.mxu0 0.0
        %1328 = vmatpush.msra.mxu0 0.0
        %1329 = vmatpush.msra.mxu0 0.0
        %1330 = vmatpush.msra.mxu0 0.0
        %1331 = vmatpush.msra.mxu0 0.0
        %1332 = vmatpush.msra.mxu0 0.0
        %1333 = vmatpush.msra.mxu0 %v1325
        %1334 = vmatpush.msra.mxu0 %v1323
        %1335 = vmatpush.msra.mxu0 %v1321
        %1336 = vmatpush.msra.mxu0 %v1319
        %1337 = vmatpush.msra.mxu0 %v1317
        %1338 = vmatpush.msra.mxu0 %v1315
        %1339 = vmatpush.msra.mxu0 %v1313
        %1340 = vmatpush.msra.mxu0 %v1311
        %1341 = vmatpush.msra.mxu0 %v1309
        %1342 = vmatpush.msra.mxu0 %v1307
        %1343 = vmatmul.f32.gmra.mxu0 %v852
        %v1344 = vpop.f32.mrf.mxu0
        %v1345 = vadd.f32 0.0, %v1344
        %1346 = vmatmul.f32.gmra.mxu0 %v855
        %v1347 = vpop.f32.mrf.mxu0
        %v1348 = vadd.f32 0.0, %v1347
        %1349 = vmatmul.f32.gmra.mxu0 %v858
        %v1350 = vpop.f32.mrf.mxu0
        %v1351 = vadd.f32 0.0, %v1350
        %1352 = vmatmul.f32.gmra.mxu0 %v861
        %v1353 = vpop.f32.mrf.mxu0
        %v1354 = vadd.f32 0.0, %v1353
        %1355 = vmatmul.f32.gmra.mxu0 %v864
        %v1356 = vpop.f32.mrf.mxu0
        %v1357 = vadd.f32 0.0, %v1356
        %1358 = vmatmul.f32.gmra.mxu0 %v867
        %v1359 = vpop.f32.mrf.mxu0
        %v1360 = vadd.f32 0.0, %v1359
        %1361 = vmatmul.f32.gmra.mxu0 %v870
        %v1362 = vpop.f32.mrf.mxu0
        %v1363 = vadd.f32 0.0, %v1362
        %1364 = vmatmul.f32.gmra.mxu0 %v873
        %v1365 = vpop.f32.mrf.mxu0
        %v1366 = vadd.f32 0.0, %v1365
        %1367 = vdwg.mxu0
        %1368 = vmatpush.msra.mxu0 0.0
        %1369 = vmatpush.msra.mxu0 0.0
        %1370 = vmatpush.msra.mxu0 0.0
        %1371 = vmatpush.msra.mxu0 0.0
        %1372 = vmatpush.msra.mxu0 0.0
        %1373 = vmatpush.msra.mxu0 0.0
        %1374 = vmatpush.msra.mxu0 %v1326
        %1375 = vmatpush.msra.mxu0 %v1324
        %1376 = vmatpush.msra.mxu0 %v1322
        %1377 = vmatpush.msra.mxu0 %v1320
        %1378 = vmatpush.msra.mxu0 %v1318
        %1379 = vmatpush.msra.mxu0 %v1316
        %1380 = vmatpush.msra.mxu0 %v1314
        %1381 = vmatpush.msra.mxu0 %v1312
        %1382 = vmatpush.msra.mxu0 %v1310
        %1383 = vmatpush.msra.mxu0 %v1308
        %1384 = vmatmul.f32.gmra.mxu0 %v852
        %v1385 = vpop.f32.mrf.mxu0
        %v1386 = vadd.f32 0.0, %v1385
        %1387 = vmatmul.f32.gmra.mxu0 %v855
        %v1388 = vpop.f32.mrf.mxu0
        %v1389 = vadd.f32 0.0, %v1388
        %1390 = vmatmul.f32.gmra.mxu0 %v858
        %v1391 = vpop.f32.mrf.mxu0
        %v1392 = vadd.f32 0.0, %v1391
        %1393 = vmatmul.f32.gmra.mxu0 %v861
        %v1394 = vpop.f32.mrf.mxu0
        %v1395 = vadd.f32 0.0, %v1394
        %1396 = vmatmul.f32.gmra.mxu0 %v864
        %v1397 = vpop.f32.mrf.mxu0
        %v1398 = vadd.f32 0.0, %v1397
        %1399 = vmatmul.f32.gmra.mxu0 %v867
        %v1400 = vpop.f32.mrf.mxu0
        %v1401 = vadd.f32 0.0, %v1400
        %1402 = vmatmul.f32.gmra.mxu0 %v870
        %v1403 = vpop.f32.mrf.mxu0
        %v1404 = vadd.f32 0.0, %v1403
        %1405 = vmatmul.f32.gmra.mxu0 %v873
        %v1406 = vpop.f32.mrf.mxu0
        %v1407 = vadd.f32 0.0, %v1406
        %1408 = vdwg.mxu0
        %1409 = vst [vmem:[#allocation2 + $0x408] sm:$0xff] %v1345
        %1410 = vst [vmem:[#allocation2 + $0x410] sm:$0xff] %v1386
        %1411 = vst [vmem:[#allocation2 + $0x428] sm:$0xff] %v1348
        %1412 = vst [vmem:[#allocation2 + $0x430] sm:$0xff] %v1389
        %1413 = vst [vmem:[#allocation2 + $0x448] sm:$0xff] %v1351
        %1414 = vst [vmem:[#allocation2 + $0x450] sm:$0xff] %v1392
        %1415 = vst [vmem:[#allocation2 + $0x468] sm:$0xff] %v1354
        %1416 = vst [vmem:[#allocation2 + $0x470] sm:$0xff] %v1395
        %1417 = vst [vmem:[#allocation2 + $0x488] sm:$0xff] %v1357
        %1418 = vst [vmem:[#allocation2 + $0x490] sm:$0xff] %v1398
        %1419 = vst [vmem:[#allocation2 + $0x4a8] sm:$0xff] %v1360
        %1420 = vst [vmem:[#allocation2 + $0x4b0] sm:$0xff] %v1401
        %1421 = vst [vmem:[#allocation2 + $0x4c8] sm:$0xff] %v1363
        %1422 = vst [vmem:[#allocation2 + $0x4d0] sm:$0xff] %v1404
        %1423 = vst [vmem:[#allocation2 + $0x4e8] sm:$0xff] %v1366
        %1424 = vst [vmem:[#allocation2 + $0x4f0] sm:$0xff] %v1407
        %v1425 = vld [vmem:[%s6] sm:$0xff]
        %v1426 = vld [vmem:[%s6 + $0x8] sm:$0xff]
        %v1427 = vld [vmem:[%s6 + $0x10] sm:$0xff]
        %v1428 = vld [vmem:[%s6 + $0x18] sm:$0xff]
        %v1429 = vld [vmem:[%s6 + $0x20] sm:$0xff]
        %v1430 = vld [vmem:[%s6 + $0x28] sm:$0xff]
        %v1431 = vld [vmem:[%s6 + $0x30] sm:$0xff]
        %v1432 = vld [vmem:[%s6 + $0x38] sm:$0xff]
        %v1433 = vld [vmem:[%s6 + $0x40] sm:$0xff]
        %v1434 = vld [vmem:[%s6 + $0x48] sm:$0xff]
        %v1435 = vld [vmem:[%s6 + $0x50] sm:$0xff]
        %v1436 = vld [vmem:[%s6 + $0x58] sm:$0xff]
        %v1437 = vld [vmem:[%s6 + $0x60] sm:$0xff]
        %v1438 = vld [vmem:[%s6 + $0x68] sm:$0xff]
        %v1439 = vld [vmem:[%s6 + $0x70] sm:$0xff]
        %v1440 = vld [vmem:[%s6 + $0x78] sm:$0xff]
        %v1441 = vld [vmem:[%s6 + $0x80] sm:$0xff]
        %v1442 = vld [vmem:[%s6 + $0x88] sm:$0xff]
        %v1443 = vld [vmem:[%s6 + $0x90] sm:$0xff]
        %v1444 = vld [vmem:[%s6 + $0x98] sm:$0xff]
        %v1445 = vld [vmem:[%s6 + $0xa0] sm:$0xff]
        %v1446 = vld [vmem:[%s6 + $0xa8] sm:$0xff]
        %v1447 = vld [vmem:[%s6 + $0xb0] sm:$0xff]
        %v1448 = vld [vmem:[%s6 + $0xb8] sm:$0xff]
        %v1449 = vld [vmem:[%s6 + $0xc0] sm:$0xff]
        %v1450 = vld [vmem:[%s6 + $0xc8] sm:$0xff]
        %v1451 = vld [vmem:[%s6 + $0xd0] sm:$0xff]
        %v1452 = vld [vmem:[%s6 + $0xd8] sm:$0xff]
        %v1453 = vld [vmem:[%s6 + $0xe0] sm:$0xff]
        %v1454 = vld [vmem:[%s6 + $0xe8] sm:$0xff]
        %v1455 = vld [vmem:[%s6 + $0xf0] sm:$0xff]
        %v1456 = vld [vmem:[%s6 + $0xf8] sm:$0xff]
        %v1457 = vld [vmem:[%s6 + $0x100] sm:$0xff]
        %v1458 = vld [vmem:[%s6 + $0x108] sm:$0xff]
        %v1459 = vld [vmem:[%s6 + $0x110] sm:$0xff]
        %v1460 = vld [vmem:[%s6 + $0x118] sm:$0xff]
        %v1461 = vld [vmem:[%s6 + $0x120] sm:$0xff]
        %v1462 = vld [vmem:[%s6 + $0x128] sm:$0xff]
        %v1463 = vld [vmem:[%s6 + $0x130] sm:$0xff]
        %v1464 = vld [vmem:[%s6 + $0x138] sm:$0xff]
        %v1465 = vld [vmem:[%s6 + $0x140] sm:$0xff]
        %v1466 = vld [vmem:[%s6 + $0x148] sm:$0xff]
        %v1467 = vld [vmem:[%s6 + $0x150] sm:$0xff]
        %v1468 = vld [vmem:[%s6 + $0x158] sm:$0xff]
        %v1469 = vld [vmem:[%s6 + $0x160] sm:$0xff]
        %v1470 = vld [vmem:[%s6 + $0x168] sm:$0xff]
        %v1471 = vld [vmem:[%s6 + $0x170] sm:$0xff]
        %v1472 = vld [vmem:[%s6 + $0x178] sm:$0xff]
        %v1473 = vld [vmem:[%s6 + $0x180] sm:$0xff]
        %v1474 = vld [vmem:[%s6 + $0x188] sm:$0xff]
        %v1475 = vld [vmem:[%s6 + $0x190] sm:$0xff]
        %v1476 = vld [vmem:[%s6 + $0x198] sm:$0xff]
        %v1477 = vld [vmem:[%s6 + $0x1a0] sm:$0xff]
        %v1478 = vld [vmem:[%s6 + $0x1a8] sm:$0xff]
        %v1479 = vld [vmem:[%s6 + $0x1b0] sm:$0xff]
        %v1480 = vld [vmem:[%s6 + $0x1b8] sm:$0xff]
        %v1481 = vld [vmem:[%s6 + $0x1c0] sm:$0xff]
        %v1482 = vld [vmem:[%s6 + $0x1c8] sm:$0xff]
        %v1483 = vld [vmem:[%s6 + $0x1d0] sm:$0xff]
        %v1484 = vld [vmem:[%s6 + $0x1d8] sm:$0xff]
        %v1485 = vld [vmem:[%s6 + $0x1e0] sm:$0xff]
        %v1486 = vld [vmem:[%s6 + $0x1e8] sm:$0xff]
        %v1487 = vld [vmem:[%s6 + $0x1f0] sm:$0xff]
        %v1488 = vld [vmem:[%s6 + $0x1f8] sm:$0xff]
        %v1489 = vld [vmem:[%s6 + $0x200] sm:$0xff]
        %v1490 = vld [vmem:[%s6 + $0x208] sm:$0xff]
        %v1491 = vld [vmem:[%s6 + $0x210] sm:$0xff]
        %v1492 = vld [vmem:[%s6 + $0x218] sm:$0xff]
        %v1493 = vld [vmem:[%s6 + $0x220] sm:$0xff]
        %v1494 = vld [vmem:[%s6 + $0x228] sm:$0xff]
        %v1495 = vld [vmem:[%s6 + $0x230] sm:$0xff]
        %v1496 = vld [vmem:[%s6 + $0x238] sm:$0xff]
        %v1497 = vld [vmem:[%s6 + $0x240] sm:$0xff]
        %v1498 = vld [vmem:[%s6 + $0x248] sm:$0xff]
        %v1499 = vld [vmem:[%s6 + $0x250] sm:$0xff]
        %v1500 = vld [vmem:[%s6 + $0x258] sm:$0xff]
        %v1501 = vld [vmem:[%s6 + $0x260] sm:$0xff]
        %v1502 = vld [vmem:[%s6 + $0x268] sm:$0xff]
        %v1503 = vld [vmem:[%s6 + $0x270] sm:$0xff]
        %v1504 = vld [vmem:[%s6 + $0x278] sm:$0xff]
        %v1505 = vld [vmem:[%s6 + $0x280] sm:$0xff]
        %v1506 = vld [vmem:[%s6 + $0x288] sm:$0xff]
        %v1507 = vld [vmem:[%s6 + $0x290] sm:$0xff]
        %v1508 = vld [vmem:[%s6 + $0x298] sm:$0xff]
        %v1509 = vld [vmem:[%s6 + $0x2a0] sm:$0xff]
        %v1510 = vld [vmem:[%s6 + $0x2a8] sm:$0xff]
        %v1511 = vld [vmem:[%s6 + $0x2b0] sm:$0xff]
        %v1512 = vld [vmem:[%s6 + $0x2b8] sm:$0xff]
        %v1513 = vld [vmem:[%s6 + $0x2c0] sm:$0xff]
        %v1514 = vld [vmem:[%s6 + $0x2c8] sm:$0xff]
        %v1515 = vld [vmem:[%s6 + $0x2d0] sm:$0xff]
        %v1516 = vld [vmem:[%s6 + $0x2d8] sm:$0xff]
        %v1517 = vld [vmem:[%s6 + $0x2e0] sm:$0xff]
        %v1518 = vld [vmem:[%s6 + $0x2e8] sm:$0xff]
        %v1519 = vld [vmem:[%s6 + $0x2f0] sm:$0xff]
        %v1520 = vld [vmem:[%s6 + $0x2f8] sm:$0xff]
        %v1521 = vld [vmem:[%s6 + $0x300] sm:$0xff]
        %v1522 = vld [vmem:[%s6 + $0x308] sm:$0xff]
        %v1523 = vld [vmem:[%s6 + $0x310] sm:$0xff]
        %v1524 = vld [vmem:[%s6 + $0x318] sm:$0xff]
        %v1525 = vld [vmem:[%s6 + $0x320] sm:$0xff]
        %v1526 = vld [vmem:[%s6 + $0x328] sm:$0xff]
        %v1527 = vld [vmem:[%s6 + $0x330] sm:$0xff]
        %v1528 = vld [vmem:[%s6 + $0x338] sm:$0xff]
        %v1529 = vld [vmem:[%s6 + $0x340] sm:$0xff]
        %v1530 = vld [vmem:[%s6 + $0x348] sm:$0xff]
        %v1531 = vld [vmem:[%s6 + $0x350] sm:$0xff]
        %v1532 = vld [vmem:[%s6 + $0x358] sm:$0xff]
        %v1533 = vld [vmem:[%s6 + $0x360] sm:$0xff]
        %v1534 = vld [vmem:[%s6 + $0x368] sm:$0xff]
        %v1535 = vld [vmem:[%s6 + $0x370] sm:$0xff]
        %v1536 = vld [vmem:[%s6 + $0x378] sm:$0xff]
        %v1537 = vld [vmem:[%s6 + $0x380] sm:$0xff]
        %v1538 = vld [vmem:[%s6 + $0x388] sm:$0xff]
        %v1539 = vld [vmem:[%s6 + $0x390] sm:$0xff]
        %v1540 = vld [vmem:[%s6 + $0x398] sm:$0xff]
        %v1541 = vld [vmem:[%s6 + $0x3a0] sm:$0xff]
        %v1542 = vld [vmem:[%s6 + $0x3a8] sm:$0xff]
        %v1543 = vld [vmem:[%s6 + $0x3b0] sm:$0xff]
        %v1544 = vld [vmem:[%s6 + $0x3b8] sm:$0xff]
        %v1545 = vld [vmem:[%s6 + $0x3c0] sm:$0xff]
        %v1546 = vld [vmem:[%s6 + $0x3c8] sm:$0xff]
        %v1547 = vld [vmem:[%s6 + $0x3d0] sm:$0xff]
        %v1548 = vld [vmem:[%s6 + $0x3d8] sm:$0xff]
        %v1549 = vld [vmem:[%s6 + $0x3e0] sm:$0xff]
        %v1550 = vld [vmem:[%s6 + $0x3e8] sm:$0xff]
        %v1551 = vld [vmem:[%s6 + $0x3f0] sm:$0xff]
        %v1552 = vld [vmem:[%s6 + $0x3f8] sm:$0xff]
        %vm1553 = vcmp.lt.s32.totalorder %v492, 64
        %vm1554 = vcmp.lt.s32.totalorder %v493, 64
        %vm1555 = vcmp.lt.s32.totalorder %v494, 64
        %vm1556 = vcmp.lt.s32.totalorder %v495, 64
        %vm1557 = vcmp.lt.s32.totalorder %v496, 64
        %vm1558 = vcmp.lt.s32.totalorder %v497, 64
        %vm1559 = vcmp.lt.s32.totalorder %v498, 64
        %vm1560 = vcmp.lt.s32.totalorder %v499, 64
        %v1561 = vld [vmem:[#allocation2] sm:$0xff]
        %v1562 = vld [vmem:[#allocation2 + $0x8] sm:$0xff]
        %v1563 = vld [vmem:[#allocation2 + $0x10] sm:$0xff]
        %v1564 = vld [vmem:[#allocation2 + $0x18] sm:$0xff]
        %v1565 = vld [vmem:[#allocation2 + $0x20] sm:$0xff]
        %v1566 = vld [vmem:[#allocation2 + $0x28] sm:$0xff]
        %v1567 = vld [vmem:[#allocation2 + $0x30] sm:$0xff]
        %v1568 = vld [vmem:[#allocation2 + $0x38] sm:$0xff]
        %v1569 = vld [vmem:[#allocation2 + $0x40] sm:$0xff]
        %v1570 = vld [vmem:[#allocation2 + $0x48] sm:$0xff]
        %v1571 = vld [vmem:[#allocation2 + $0x50] sm:$0xff]
        %v1572 = vld [vmem:[#allocation2 + $0x58] sm:$0xff]
        %v1573 = vld [vmem:[#allocation2 + $0x60] sm:$0xff]
        %v1574 = vld [vmem:[#allocation2 + $0x68] sm:$0xff]
        %v1575 = vld [vmem:[#allocation2 + $0x70] sm:$0xff]
        %v1576 = vld [vmem:[#allocation2 + $0x78] sm:$0xff]
        %v1577 = vld [vmem:[#allocation2 + $0x80] sm:$0xff]
        %v1578 = vld [vmem:[#allocation2 + $0x88] sm:$0xff]
        %v1579 = vld [vmem:[#allocation2 + $0x90] sm:$0xff]
        %v1580 = vld [vmem:[#allocation2 + $0x98] sm:$0xff]
        %v1581 = vld [vmem:[#allocation2 + $0xa0] sm:$0xff]
        %v1582 = vld [vmem:[#allocation2 + $0xa8] sm:$0xff]
        %v1583 = vld [vmem:[#allocation2 + $0xb0] sm:$0xff]
        %v1584 = vld [vmem:[#allocation2 + $0xb8] sm:$0xff]
        %v1585 = vld [vmem:[#allocation2 + $0xc0] sm:$0xff]
        %v1586 = vld [vmem:[#allocation2 + $0xc8] sm:$0xff]
        %v1587 = vld [vmem:[#allocation2 + $0xd0] sm:$0xff]
        %v1588 = vld [vmem:[#allocation2 + $0xd8] sm:$0xff]
        %v1589 = vld [vmem:[#allocation2 + $0xe0] sm:$0xff]
        %v1590 = vld [vmem:[#allocation2 + $0xe8] sm:$0xff]
        %v1591 = vld [vmem:[#allocation2 + $0xf0] sm:$0xff]
        %v1592 = vld [vmem:[#allocation2 + $0xf8] sm:$0xff]
        %v1593 = vld [vmem:[#allocation2 + $0x100] sm:$0xff]
        %v1594 = vld [vmem:[#allocation2 + $0x108] sm:$0xff]
        %v1595 = vld [vmem:[#allocation2 + $0x110] sm:$0xff]
        %v1596 = vld [vmem:[#allocation2 + $0x118] sm:$0xff]
        %v1597 = vld [vmem:[#allocation2 + $0x120] sm:$0xff]
        %v1598 = vld [vmem:[#allocation2 + $0x128] sm:$0xff]
        %v1599 = vld [vmem:[#allocation2 + $0x130] sm:$0xff]
        %v1600 = vld [vmem:[#allocation2 + $0x138] sm:$0xff]
        %v1601 = vld [vmem:[#allocation2 + $0x140] sm:$0xff]
        %v1602 = vld [vmem:[#allocation2 + $0x148] sm:$0xff]
        %v1603 = vld [vmem:[#allocation2 + $0x150] sm:$0xff]
        %v1604 = vld [vmem:[#allocation2 + $0x158] sm:$0xff]
        %v1605 = vld [vmem:[#allocation2 + $0x160] sm:$0xff]
        %v1606 = vld [vmem:[#allocation2 + $0x168] sm:$0xff]
        %v1607 = vld [vmem:[#allocation2 + $0x170] sm:$0xff]
        %v1608 = vld [vmem:[#allocation2 + $0x178] sm:$0xff]
        %v1609 = vld [vmem:[#allocation2 + $0x180] sm:$0xff]
        %v1610 = vld [vmem:[#allocation2 + $0x188] sm:$0xff]
        %v1611 = vld [vmem:[#allocation2 + $0x190] sm:$0xff]
        %v1612 = vld [vmem:[#allocation2 + $0x198] sm:$0xff]
        %v1613 = vld [vmem:[#allocation2 + $0x1a0] sm:$0xff]
        %v1614 = vld [vmem:[#allocation2 + $0x1a8] sm:$0xff]
        %v1615 = vld [vmem:[#allocation2 + $0x1b0] sm:$0xff]
        %v1616 = vld [vmem:[#allocation2 + $0x1b8] sm:$0xff]
        %v1617 = vld [vmem:[#allocation2 + $0x1c0] sm:$0xff]
        %v1618 = vld [vmem:[#allocation2 + $0x1c8] sm:$0xff]
        %v1619 = vld [vmem:[#allocation2 + $0x1d0] sm:$0xff]
        %v1620 = vld [vmem:[#allocation2 + $0x1d8] sm:$0xff]
        %v1621 = vld [vmem:[#allocation2 + $0x1e0] sm:$0xff]
        %v1622 = vld [vmem:[#allocation2 + $0x1e8] sm:$0xff]
        %v1623 = vld [vmem:[#allocation2 + $0x1f0] sm:$0xff]
        %v1624 = vld [vmem:[#allocation2 + $0x1f8] sm:$0xff]
        %v1625 = vld [vmem:[#allocation2 + $0x200] sm:$0xff]
        %v1626 = vld [vmem:[#allocation2 + $0x208] sm:$0xff]
        %v1627 = vld [vmem:[#allocation2 + $0x210] sm:$0xff]
        %v1628 = vld [vmem:[#allocation2 + $0x218] sm:$0xff]
        %v1629 = vld [vmem:[#allocation2 + $0x220] sm:$0xff]
        %v1630 = vld [vmem:[#allocation2 + $0x228] sm:$0xff]
        %v1631 = vld [vmem:[#allocation2 + $0x230] sm:$0xff]
        %v1632 = vld [vmem:[#allocation2 + $0x238] sm:$0xff]
        %v1633 = vld [vmem:[#allocation2 + $0x240] sm:$0xff]
        %v1634 = vld [vmem:[#allocation2 + $0x248] sm:$0xff]
        %v1635 = vld [vmem:[#allocation2 + $0x250] sm:$0xff]
        %v1636 = vld [vmem:[#allocation2 + $0x258] sm:$0xff]
        %v1637 = vld [vmem:[#allocation2 + $0x260] sm:$0xff]
        %v1638 = vld [vmem:[#allocation2 + $0x268] sm:$0xff]
        %v1639 = vld [vmem:[#allocation2 + $0x270] sm:$0xff]
        %v1640 = vld [vmem:[#allocation2 + $0x278] sm:$0xff]
        %v1641 = vld [vmem:[#allocation2 + $0x280] sm:$0xff]
        %v1642 = vld [vmem:[#allocation2 + $0x288] sm:$0xff]
        %v1643 = vld [vmem:[#allocation2 + $0x290] sm:$0xff]
        %v1644 = vld [vmem:[#allocation2 + $0x298] sm:$0xff]
        %v1645 = vld [vmem:[#allocation2 + $0x2a0] sm:$0xff]
        %v1646 = vld [vmem:[#allocation2 + $0x2a8] sm:$0xff]
        %v1647 = vld [vmem:[#allocation2 + $0x2b0] sm:$0xff]
        %v1648 = vld [vmem:[#allocation2 + $0x2b8] sm:$0xff]
        %v1649 = vld [vmem:[#allocation2 + $0x2c0] sm:$0xff]
        %v1650 = vld [vmem:[#allocation2 + $0x2c8] sm:$0xff]
        %v1651 = vld [vmem:[#allocation2 + $0x2d0] sm:$0xff]
        %v1652 = vld [vmem:[#allocation2 + $0x2d8] sm:$0xff]
        %v1653 = vld [vmem:[#allocation2 + $0x2e0] sm:$0xff]
        %v1654 = vld [vmem:[#allocation2 + $0x2e8] sm:$0xff]
        %v1655 = vld [vmem:[#allocation2 + $0x2f0] sm:$0xff]
        %v1656 = vld [vmem:[#allocation2 + $0x2f8] sm:$0xff]
        %v1657 = vld [vmem:[#allocation2 + $0x300] sm:$0xff]
        %v1658 = vld [vmem:[#allocation2 + $0x308] sm:$0xff]
        %v1659 = vld [vmem:[#allocation2 + $0x310] sm:$0xff]
        %v1660 = vld [vmem:[#allocation2 + $0x318] sm:$0xff]
        %v1661 = vld [vmem:[#allocation2 + $0x320] sm:$0xff]
        %v1662 = vld [vmem:[#allocation2 + $0x328] sm:$0xff]
        %v1663 = vld [vmem:[#allocation2 + $0x330] sm:$0xff]
        %v1664 = vld [vmem:[#allocation2 + $0x338] sm:$0xff]
        %v1665 = vld [vmem:[#allocation2 + $0x340] sm:$0xff]
        %v1666 = vld [vmem:[#allocation2 + $0x348] sm:$0xff]
        %v1667 = vld [vmem:[#allocation2 + $0x350] sm:$0xff]
        %v1668 = vld [vmem:[#allocation2 + $0x358] sm:$0xff]
        %v1669 = vld [vmem:[#allocation2 + $0x360] sm:$0xff]
        %v1670 = vld [vmem:[#allocation2 + $0x368] sm:$0xff]
        %v1671 = vld [vmem:[#allocation2 + $0x370] sm:$0xff]
        %v1672 = vld [vmem:[#allocation2 + $0x378] sm:$0xff]
        %v1673 = vld [vmem:[#allocation2 + $0x380] sm:$0xff]
        %v1674 = vld [vmem:[#allocation2 + $0x388] sm:$0xff]
        %v1675 = vld [vmem:[#allocation2 + $0x390] sm:$0xff]
        %v1676 = vld [vmem:[#allocation2 + $0x398] sm:$0xff]
        %v1677 = vld [vmem:[#allocation2 + $0x3a0] sm:$0xff]
        %v1678 = vld [vmem:[#allocation2 + $0x3a8] sm:$0xff]
        %v1679 = vld [vmem:[#allocation2 + $0x3b0] sm:$0xff]
        %v1680 = vld [vmem:[#allocation2 + $0x3b8] sm:$0xff]
        %v1681 = vld [vmem:[#allocation2 + $0x3c0] sm:$0xff]
        %v1682 = vld [vmem:[#allocation2 + $0x3c8] sm:$0xff]
        %v1683 = vld [vmem:[#allocation2 + $0x3d0] sm:$0xff]
        %v1684 = vld [vmem:[#allocation2 + $0x3d8] sm:$0xff]
        %v1685 = vld [vmem:[#allocation2 + $0x3e0] sm:$0xff]
        %v1686 = vld [vmem:[#allocation2 + $0x3e8] sm:$0xff]
        %v1687 = vld [vmem:[#allocation2 + $0x3f0] sm:$0xff]
        %v1688 = vld [vmem:[#allocation2 + $0x3f8] sm:$0xff]
        %v1689 = vld [vmem:[#allocation2 + $0x400] sm:$0xff]
        %v1690 = vld [vmem:[#allocation2 + $0x408] sm:$0xff]
        %v1691 = vld [vmem:[#allocation2 + $0x410] sm:$0xff]
        %v1692 = vld [vmem:[#allocation2 + $0x418] sm:$0xff]
        %v1693 = vld [vmem:[#allocation2 + $0x420] sm:$0xff]
        %v1694 = vld [vmem:[#allocation2 + $0x428] sm:$0xff]
        %v1695 = vld [vmem:[#allocation2 + $0x430] sm:$0xff]
        %v1696 = vld [vmem:[#allocation2 + $0x438] sm:$0xff]
        %v1697 = vld [vmem:[#allocation2 + $0x440] sm:$0xff]
        %v1698 = vld [vmem:[#allocation2 + $0x448] sm:$0xff]
        %v1699 = vld [vmem:[#allocation2 + $0x450] sm:$0xff]
        %v1700 = vld [vmem:[#allocation2 + $0x458] sm:$0xff]
        %v1701 = vld [vmem:[#allocation2 + $0x460] sm:$0xff]
        %v1702 = vld [vmem:[#allocation2 + $0x468] sm:$0xff]
        %v1703 = vld [vmem:[#allocation2 + $0x470] sm:$0xff]
        %v1704 = vld [vmem:[#allocation2 + $0x478] sm:$0xff]
        %v1705 = vld [vmem:[#allocation2 + $0x480] sm:$0xff]
        %v1706 = vld [vmem:[#allocation2 + $0x488] sm:$0xff]
        %v1707 = vld [vmem:[#allocation2 + $0x490] sm:$0xff]
        %v1708 = vld [vmem:[#allocation2 + $0x498] sm:$0xff]
        %v1709 = vld [vmem:[#allocation2 + $0x4a0] sm:$0xff]
        %v1710 = vld [vmem:[#allocation2 + $0x4a8] sm:$0xff]
        %v1711 = vld [vmem:[#allocation2 + $0x4b0] sm:$0xff]
        %v1712 = vld [vmem:[#allocation2 + $0x4b8] sm:$0xff]
        %v1713 = vld [vmem:[#allocation2 + $0x4c0] sm:$0xff]
        %v1714 = vld [vmem:[#allocation2 + $0x4c8] sm:$0xff]
        %v1715 = vld [vmem:[#allocation2 + $0x4d0] sm:$0xff]
        %v1716 = vld [vmem:[#allocation2 + $0x4d8] sm:$0xff]
        %v1717 = vld [vmem:[#allocation2 + $0x4e0] sm:$0xff]
        %v1718 = vld [vmem:[#allocation2 + $0x4e8] sm:$0xff]
        %v1719 = vld [vmem:[#allocation2 + $0x4f0] sm:$0xff]
        %v1720 = vld [vmem:[#allocation2 + $0x4f8] sm:$0xff]
        %1721 = vmatpush.msra.mxu0 %v1455
        %1722 = vmatpush.msra.mxu0 %v1453
        %1723 = vmatpush.msra.mxu0 %v1451
        %1724 = vmatpush.msra.mxu0 %v1449
        %1725 = vmatpush.msra.mxu0 %v1447
        %1726 = vmatpush.msra.mxu0 %v1445
        %1727 = vmatpush.msra.mxu0 %v1443
        %1728 = vmatpush.msra.mxu0 %v1441
        %1729 = vmatpush.msra.mxu0 %v1439
        %1730 = vmatpush.msra.mxu0 %v1437
        %1731 = vmatpush.msra.mxu0 %v1435
        %1732 = vmatpush.msra.mxu0 %v1433
        %1733 = vmatpush.msra.mxu0 %v1431
        %1734 = vmatpush.msra.mxu0 %v1429
        %1735 = vmatpush.msra.mxu0 %v1427
        %1736 = vmatpush.msra.mxu0 %v1425
        %1737 = vmatmul.f32.gmra.mxu0 %v1561
        %v1738 = vpop.f32.mrf.mxu0
        %v1739 = vadd.f32 0.0, %v1738
        %1740 = vmatmul.f32.gmra.mxu0 %v1565
        %v1741 = vpop.f32.mrf.mxu0
        %v1742 = vadd.f32 0.0, %v1741
        %1743 = vmatmul.f32.gmra.mxu0 %v1569
        %v1744 = vpop.f32.mrf.mxu0
        %v1745 = vadd.f32 0.0, %v1744
        %1746 = vmatmul.f32.gmra.mxu0 %v1573
        %v1747 = vpop.f32.mrf.mxu0
        %v1748 = vadd.f32 0.0, %v1747
        %1749 = vmatmul.f32.gmra.mxu0 %v1577
        %v1750 = vpop.f32.mrf.mxu0
        %v1751 = vadd.f32 0.0, %v1750
        %1752 = vmatmul.f32.gmra.mxu0 %v1581
        %v1753 = vpop.f32.mrf.mxu0
        %v1754 = vadd.f32 0.0, %v1753
        %1755 = vmatmul.f32.gmra.mxu0 %v1585
        %v1756 = vpop.f32.mrf.mxu0
        %v1757 = vadd.f32 0.0, %v1756
        %1758 = vmatmul.f32.gmra.mxu0 %v1589
        %v1759 = vpop.f32.mrf.mxu0
        %v1760 = vadd.f32 0.0, %v1759
        %1761 = vmatmul.f32.gmra.mxu0 %v1593
        %v1762 = vpop.f32.mrf.mxu0
        %v1763 = vadd.f32 0.0, %v1762
        %1764 = vmatmul.f32.gmra.mxu0 %v1597
        %v1765 = vpop.f32.mrf.mxu0
        %v1766 = vadd.f32 0.0, %v1765
        %1767 = vmatmul.f32.gmra.mxu0 %v1601
        %v1768 = vpop.f32.mrf.mxu0
        %v1769 = vadd.f32 0.0, %v1768
        %1770 = vmatmul.f32.gmra.mxu0 %v1605
        %v1771 = vpop.f32.mrf.mxu0
        %v1772 = vadd.f32 0.0, %v1771
        %1773 = vmatmul.f32.gmra.mxu0 %v1609
        %v1774 = vpop.f32.mrf.mxu0
        %v1775 = vadd.f32 0.0, %v1774
        %1776 = vmatmul.f32.gmra.mxu0 %v1613
        %v1777 = vpop.f32.mrf.mxu0
        %v1778 = vadd.f32 0.0, %v1777
        %1779 = vmatmul.f32.gmra.mxu0 %v1617
        %v1780 = vpop.f32.mrf.mxu0
        %v1781 = vadd.f32 0.0, %v1780
        %1782 = vmatmul.f32.gmra.mxu0 %v1621
        %v1783 = vpop.f32.mrf.mxu0
        %v1784 = vadd.f32 0.0, %v1783
        %1785 = vmatmul.f32.gmra.mxu0 %v1625
        %v1786 = vpop.f32.mrf.mxu0
        %v1787 = vadd.f32 0.0, %v1786
        %1788 = vmatmul.f32.gmra.mxu0 %v1629
        %v1789 = vpop.f32.mrf.mxu0
        %v1790 = vadd.f32 0.0, %v1789
        %1791 = vmatmul.f32.gmra.mxu0 %v1633
        %v1792 = vpop.f32.mrf.mxu0
        %v1793 = vadd.f32 0.0, %v1792
        %1794 = vmatmul.f32.gmra.mxu0 %v1637
        %v1795 = vpop.f32.mrf.mxu0
        %v1796 = vadd.f32 0.0, %v1795
        %1797 = vmatmul.f32.gmra.mxu0 %v1641
        %v1798 = vpop.f32.mrf.mxu0
        %v1799 = vadd.f32 0.0, %v1798
        %1800 = vmatmul.f32.gmra.mxu0 %v1645
        %v1801 = vpop.f32.mrf.mxu0
        %v1802 = vadd.f32 0.0, %v1801
        %1803 = vmatmul.f32.gmra.mxu0 %v1649
        %v1804 = vpop.f32.mrf.mxu0
        %v1805 = vadd.f32 0.0, %v1804
        %1806 = vmatmul.f32.gmra.mxu0 %v1653
        %v1807 = vpop.f32.mrf.mxu0
        %v1808 = vadd.f32 0.0, %v1807
        %1809 = vmatmul.f32.gmra.mxu0 %v1657
        %v1810 = vpop.f32.mrf.mxu0
        %v1811 = vadd.f32 0.0, %v1810
        %1812 = vmatmul.f32.gmra.mxu0 %v1661
        %v1813 = vpop.f32.mrf.mxu0
        %v1814 = vadd.f32 0.0, %v1813
        %1815 = vmatmul.f32.gmra.mxu0 %v1665
        %v1816 = vpop.f32.mrf.mxu0
        %v1817 = vadd.f32 0.0, %v1816
        %1818 = vmatmul.f32.gmra.mxu0 %v1669
        %v1819 = vpop.f32.mrf.mxu0
        %v1820 = vadd.f32 0.0, %v1819
        %1821 = vmatmul.f32.gmra.mxu0 %v1673
        %v1822 = vpop.f32.mrf.mxu0
        %v1823 = vadd.f32 0.0, %v1822
        %1824 = vmatmul.f32.gmra.mxu0 %v1677
        %v1825 = vpop.f32.mrf.mxu0
        %v1826 = vadd.f32 0.0, %v1825
        %1827 = vmatmul.f32.gmra.mxu0 %v1681
        %v1828 = vpop.f32.mrf.mxu0
        %v1829 = vadd.f32 0.0, %v1828
        %1830 = vmatmul.f32.gmra.mxu0 %v1685
        %v1831 = vpop.f32.mrf.mxu0
        %v1832 = vadd.f32 0.0, %v1831
        %1833 = vmatmul.f32.gmra.mxu0 %v1689
        %v1834 = vpop.f32.mrf.mxu0
        %v1835 = vadd.f32 0.0, %v1834
        %1836 = vmatmul.f32.gmra.mxu0 %v1693
        %v1837 = vpop.f32.mrf.mxu0
        %v1838 = vadd.f32 0.0, %v1837
        %1839 = vmatmul.f32.gmra.mxu0 %v1697
        %v1840 = vpop.f32.mrf.mxu0
        %v1841 = vadd.f32 0.0, %v1840
        %1842 = vmatmul.f32.gmra.mxu0 %v1701
        %v1843 = vpop.f32.mrf.mxu0
        %v1844 = vadd.f32 0.0, %v1843
        %1845 = vmatmul.f32.gmra.mxu0 %v1705
        %v1846 = vpop.f32.mrf.mxu0
        %v1847 = vadd.f32 0.0, %v1846
        %1848 = vmatmul.f32.gmra.mxu0 %v1709
        %v1849 = vpop.f32.mrf.mxu0
        %v1850 = vadd.f32 0.0, %v1849
        %1851 = vmatmul.f32.gmra.mxu0 %v1713
        %v1852 = vpop.f32.mrf.mxu0
        %v1853 = vadd.f32 0.0, %v1852
        %1854 = vmatmul.f32.gmra.mxu0 %v1717
        %v1855 = vpop.f32.mrf.mxu0
        %v1856 = vadd.f32 0.0, %v1855
        %1857 = vdwg.mxu0
        %1858 = vmatpush.msra.mxu0 %v1487
        %1859 = vmatpush.msra.mxu0 %v1485
        %1860 = vmatpush.msra.mxu0 %v1483
        %1861 = vmatpush.msra.mxu0 %v1481
        %1862 = vmatpush.msra.mxu0 %v1479
        %1863 = vmatpush.msra.mxu0 %v1477
        %1864 = vmatpush.msra.mxu0 %v1475
        %1865 = vmatpush.msra.mxu0 %v1473
        %1866 = vmatpush.msra.mxu0 %v1471
        %1867 = vmatpush.msra.mxu0 %v1469
        %1868 = vmatpush.msra.mxu0 %v1467
        %1869 = vmatpush.msra.mxu0 %v1465
        %1870 = vmatpush.msra.mxu0 %v1463
        %1871 = vmatpush.msra.mxu0 %v1461
        %1872 = vmatpush.msra.mxu0 %v1459
        %1873 = vmatpush.msra.mxu0 %v1457
        %1874 = vmatmul.f32.gmra.mxu0 %v1562
        %v1875 = vpop.f32.mrf.mxu0
        %v1876 = vadd.f32 %v1739, %v1875
        %1877 = vmatmul.f32.gmra.mxu0 %v1566
        %v1878 = vpop.f32.mrf.mxu0
        %v1879 = vadd.f32 %v1742, %v1878
        %1880 = vmatmul.f32.gmra.mxu0 %v1570
        %v1881 = vpop.f32.mrf.mxu0
        %v1882 = vadd.f32 %v1745, %v1881
        %1883 = vmatmul.f32.gmra.mxu0 %v1574
        %v1884 = vpop.f32.mrf.mxu0
        %v1885 = vadd.f32 %v1748, %v1884
        %1886 = vmatmul.f32.gmra.mxu0 %v1578
        %v1887 = vpop.f32.mrf.mxu0
        %v1888 = vadd.f32 %v1751, %v1887
        %1889 = vmatmul.f32.gmra.mxu0 %v1582
        %v1890 = vpop.f32.mrf.mxu0
        %v1891 = vadd.f32 %v1754, %v1890
        %1892 = vmatmul.f32.gmra.mxu0 %v1586
        %v1893 = vpop.f32.mrf.mxu0
        %v1894 = vadd.f32 %v1757, %v1893
        %1895 = vmatmul.f32.gmra.mxu0 %v1590
        %v1896 = vpop.f32.mrf.mxu0
        %v1897 = vadd.f32 %v1760, %v1896
        %1898 = vmatmul.f32.gmra.mxu0 %v1594
        %v1899 = vpop.f32.mrf.mxu0
        %v1900 = vadd.f32 %v1763, %v1899
        %1901 = vmatmul.f32.gmra.mxu0 %v1598
        %v1902 = vpop.f32.mrf.mxu0
        %v1903 = vadd.f32 %v1766, %v1902
        %1904 = vmatmul.f32.gmra.mxu0 %v1602
        %v1905 = vpop.f32.mrf.mxu0
        %v1906 = vadd.f32 %v1769, %v1905
        %1907 = vmatmul.f32.gmra.mxu0 %v1606
        %v1908 = vpop.f32.mrf.mxu0
        %v1909 = vadd.f32 %v1772, %v1908
        %1910 = vmatmul.f32.gmra.mxu0 %v1610
        %v1911 = vpop.f32.mrf.mxu0
        %v1912 = vadd.f32 %v1775, %v1911
        %1913 = vmatmul.f32.gmra.mxu0 %v1614
        %v1914 = vpop.f32.mrf.mxu0
        %v1915 = vadd.f32 %v1778, %v1914
        %1916 = vmatmul.f32.gmra.mxu0 %v1618
        %v1917 = vpop.f32.mrf.mxu0
        %v1918 = vadd.f32 %v1781, %v1917
        %1919 = vmatmul.f32.gmra.mxu0 %v1622
        %v1920 = vpop.f32.mrf.mxu0
        %v1921 = vadd.f32 %v1784, %v1920
        %1922 = vmatmul.f32.gmra.mxu0 %v1626
        %v1923 = vpop.f32.mrf.mxu0
        %v1924 = vadd.f32 %v1787, %v1923
        %1925 = vmatmul.f32.gmra.mxu0 %v1630
        %v1926 = vpop.f32.mrf.mxu0
        %v1927 = vadd.f32 %v1790, %v1926
        %1928 = vmatmul.f32.gmra.mxu0 %v1634
        %v1929 = vpop.f32.mrf.mxu0
        %v1930 = vadd.f32 %v1793, %v1929
        %1931 = vmatmul.f32.gmra.mxu0 %v1638
        %v1932 = vpop.f32.mrf.mxu0
        %v1933 = vadd.f32 %v1796, %v1932
        %1934 = vmatmul.f32.gmra.mxu0 %v1642
        %v1935 = vpop.f32.mrf.mxu0
        %v1936 = vadd.f32 %v1799, %v1935
        %1937 = vmatmul.f32.gmra.mxu0 %v1646
        %v1938 = vpop.f32.mrf.mxu0
        %v1939 = vadd.f32 %v1802, %v1938
        %1940 = vmatmul.f32.gmra.mxu0 %v1650
        %v1941 = vpop.f32.mrf.mxu0
        %v1942 = vadd.f32 %v1805, %v1941
        %1943 = vmatmul.f32.gmra.mxu0 %v1654
        %v1944 = vpop.f32.mrf.mxu0
        %v1945 = vadd.f32 %v1808, %v1944
        %1946 = vmatmul.f32.gmra.mxu0 %v1658
        %v1947 = vpop.f32.mrf.mxu0
        %v1948 = vadd.f32 %v1811, %v1947
        %1949 = vmatmul.f32.gmra.mxu0 %v1662
        %v1950 = vpop.f32.mrf.mxu0
        %v1951 = vadd.f32 %v1814, %v1950
        %1952 = vmatmul.f32.gmra.mxu0 %v1666
        %v1953 = vpop.f32.mrf.mxu0
        %v1954 = vadd.f32 %v1817, %v1953
        %1955 = vmatmul.f32.gmra.mxu0 %v1670
        %v1956 = vpop.f32.mrf.mxu0
        %v1957 = vadd.f32 %v1820, %v1956
        %1958 = vmatmul.f32.gmra.mxu0 %v1674
        %v1959 = vpop.f32.mrf.mxu0
        %v1960 = vadd.f32 %v1823, %v1959
        %1961 = vmatmul.f32.gmra.mxu0 %v1678
        %v1962 = vpop.f32.mrf.mxu0
        %v1963 = vadd.f32 %v1826, %v1962
        %1964 = vmatmul.f32.gmra.mxu0 %v1682
        %v1965 = vpop.f32.mrf.mxu0
        %v1966 = vadd.f32 %v1829, %v1965
        %1967 = vmatmul.f32.gmra.mxu0 %v1686
        %v1968 = vpop.f32.mrf.mxu0
        %v1969 = vadd.f32 %v1832, %v1968
        %1970 = vmatmul.f32.gmra.mxu0 %v1690
        %v1971 = vpop.f32.mrf.mxu0
        %v1972 = vadd.f32 %v1835, %v1971
        %1973 = vmatmul.f32.gmra.mxu0 %v1694
        %v1974 = vpop.f32.mrf.mxu0
        %v1975 = vadd.f32 %v1838, %v1974
        %1976 = vmatmul.f32.gmra.mxu0 %v1698
        %v1977 = vpop.f32.mrf.mxu0
        %v1978 = vadd.f32 %v1841, %v1977
        %1979 = vmatmul.f32.gmra.mxu0 %v1702
        %v1980 = vpop.f32.mrf.mxu0
        %v1981 = vadd.f32 %v1844, %v1980
        %1982 = vmatmul.f32.gmra.mxu0 %v1706
        %v1983 = vpop.f32.mrf.mxu0
        %v1984 = vadd.f32 %v1847, %v1983
        %1985 = vmatmul.f32.gmra.mxu0 %v1710
        %v1986 = vpop.f32.mrf.mxu0
        %v1987 = vadd.f32 %v1850, %v1986
        %1988 = vmatmul.f32.gmra.mxu0 %v1714
        %v1989 = vpop.f32.mrf.mxu0
        %v1990 = vadd.f32 %v1853, %v1989
        %1991 = vmatmul.f32.gmra.mxu0 %v1718
        %v1992 = vpop.f32.mrf.mxu0
        %v1993 = vadd.f32 %v1856, %v1992
        %1994 = vdwg.mxu0
        %1995 = vmatpush.msra.mxu0 %v1519
        %1996 = vmatpush.msra.mxu0 %v1517
        %1997 = vmatpush.msra.mxu0 %v1515
        %1998 = vmatpush.msra.mxu0 %v1513
        %1999 = vmatpush.msra.mxu0 %v1511
        %2000 = vmatpush.msra.mxu0 %v1509
        %2001 = vmatpush.msra.mxu0 %v1507
        %2002 = vmatpush.msra.mxu0 %v1505
        %2003 = vmatpush.msra.mxu0 %v1503
        %2004 = vmatpush.msra.mxu0 %v1501
        %2005 = vmatpush.msra.mxu0 %v1499
        %2006 = vmatpush.msra.mxu0 %v1497
        %2007 = vmatpush.msra.mxu0 %v1495
        %2008 = vmatpush.msra.mxu0 %v1493
        %2009 = vmatpush.msra.mxu0 %v1491
        %2010 = vmatpush.msra.mxu0 %v1489
        %2011 = vmatmul.f32.gmra.mxu0 %v1563
        %v2012 = vpop.f32.mrf.mxu0
        %v2013 = vadd.f32 %v1876, %v2012
        %2014 = vmatmul.f32.gmra.mxu0 %v1567
        %v2015 = vpop.f32.mrf.mxu0
        %v2016 = vadd.f32 %v1879, %v2015
        %2017 = vmatmul.f32.gmra.mxu0 %v1571
        %v2018 = vpop.f32.mrf.mxu0
        %v2019 = vadd.f32 %v1882, %v2018
        %2020 = vmatmul.f32.gmra.mxu0 %v1575
        %v2021 = vpop.f32.mrf.mxu0
        %v2022 = vadd.f32 %v1885, %v2021
        %2023 = vmatmul.f32.gmra.mxu0 %v1579
        %v2024 = vpop.f32.mrf.mxu0
        %v2025 = vadd.f32 %v1888, %v2024
        %2026 = vmatmul.f32.gmra.mxu0 %v1583
        %v2027 = vpop.f32.mrf.mxu0
        %v2028 = vadd.f32 %v1891, %v2027
        %2029 = vmatmul.f32.gmra.mxu0 %v1587
        %v2030 = vpop.f32.mrf.mxu0
        %v2031 = vadd.f32 %v1894, %v2030
        %2032 = vmatmul.f32.gmra.mxu0 %v1591
        %v2033 = vpop.f32.mrf.mxu0
        %v2034 = vadd.f32 %v1897, %v2033
        %2035 = vmatmul.f32.gmra.mxu0 %v1595
        %v2036 = vpop.f32.mrf.mxu0
        %v2037 = vadd.f32 %v1900, %v2036
        %2038 = vmatmul.f32.gmra.mxu0 %v1599
        %v2039 = vpop.f32.mrf.mxu0
        %v2040 = vadd.f32 %v1903, %v2039
        %2041 = vmatmul.f32.gmra.mxu0 %v1603
        %v2042 = vpop.f32.mrf.mxu0
        %v2043 = vadd.f32 %v1906, %v2042
        %2044 = vmatmul.f32.gmra.mxu0 %v1607
        %v2045 = vpop.f32.mrf.mxu0
        %v2046 = vadd.f32 %v1909, %v2045
        %2047 = vmatmul.f32.gmra.mxu0 %v1611
        %v2048 = vpop.f32.mrf.mxu0
        %v2049 = vadd.f32 %v1912, %v2048
        %2050 = vmatmul.f32.gmra.mxu0 %v1615
        %v2051 = vpop.f32.mrf.mxu0
        %v2052 = vadd.f32 %v1915, %v2051
        %2053 = vmatmul.f32.gmra.mxu0 %v1619
        %v2054 = vpop.f32.mrf.mxu0
        %v2055 = vadd.f32 %v1918, %v2054
        %2056 = vmatmul.f32.gmra.mxu0 %v1623
        %v2057 = vpop.f32.mrf.mxu0
        %v2058 = vadd.f32 %v1921, %v2057
        %2059 = vmatmul.f32.gmra.mxu0 %v1627
        %v2060 = vpop.f32.mrf.mxu0
        %v2061 = vadd.f32 %v1924, %v2060
        %2062 = vmatmul.f32.gmra.mxu0 %v1631
        %v2063 = vpop.f32.mrf.mxu0
        %v2064 = vadd.f32 %v1927, %v2063
        %2065 = vmatmul.f32.gmra.mxu0 %v1635
        %v2066 = vpop.f32.mrf.mxu0
        %v2067 = vadd.f32 %v1930, %v2066
        %2068 = vmatmul.f32.gmra.mxu0 %v1639
        %v2069 = vpop.f32.mrf.mxu0
        %v2070 = vadd.f32 %v1933, %v2069
        %2071 = vmatmul.f32.gmra.mxu0 %v1643
        %v2072 = vpop.f32.mrf.mxu0
        %v2073 = vadd.f32 %v1936, %v2072
        %2074 = vmatmul.f32.gmra.mxu0 %v1647
        %v2075 = vpop.f32.mrf.mxu0
        %v2076 = vadd.f32 %v1939, %v2075
        %2077 = vmatmul.f32.gmra.mxu0 %v1651
        %v2078 = vpop.f32.mrf.mxu0
        %v2079 = vadd.f32 %v1942, %v2078
        %2080 = vmatmul.f32.gmra.mxu0 %v1655
        %v2081 = vpop.f32.mrf.mxu0
        %v2082 = vadd.f32 %v1945, %v2081
        %2083 = vmatmul.f32.gmra.mxu0 %v1659
        %v2084 = vpop.f32.mrf.mxu0
        %v2085 = vadd.f32 %v1948, %v2084
        %2086 = vmatmul.f32.gmra.mxu0 %v1663
        %v2087 = vpop.f32.mrf.mxu0
        %v2088 = vadd.f32 %v1951, %v2087
        %2089 = vmatmul.f32.gmra.mxu0 %v1667
        %v2090 = vpop.f32.mrf.mxu0
        %v2091 = vadd.f32 %v1954, %v2090
        %2092 = vmatmul.f32.gmra.mxu0 %v1671
        %v2093 = vpop.f32.mrf.mxu0
        %v2094 = vadd.f32 %v1957, %v2093
        %2095 = vmatmul.f32.gmra.mxu0 %v1675
        %v2096 = vpop.f32.mrf.mxu0
        %v2097 = vadd.f32 %v1960, %v2096
        %2098 = vmatmul.f32.gmra.mxu0 %v1679
        %v2099 = vpop.f32.mrf.mxu0
        %v2100 = vadd.f32 %v1963, %v2099
        %2101 = vmatmul.f32.gmra.mxu0 %v1683
        %v2102 = vpop.f32.mrf.mxu0
        %v2103 = vadd.f32 %v1966, %v2102
        %2104 = vmatmul.f32.gmra.mxu0 %v1687
        %v2105 = vpop.f32.mrf.mxu0
        %v2106 = vadd.f32 %v1969, %v2105
        %2107 = vmatmul.f32.gmra.mxu0 %v1691
        %v2108 = vpop.f32.mrf.mxu0
        %v2109 = vadd.f32 %v1972, %v2108
        %2110 = vmatmul.f32.gmra.mxu0 %v1695
        %v2111 = vpop.f32.mrf.mxu0
        %v2112 = vadd.f32 %v1975, %v2111
        %2113 = vmatmul.f32.gmra.mxu0 %v1699
        %v2114 = vpop.f32.mrf.mxu0
        %v2115 = vadd.f32 %v1978, %v2114
        %2116 = vmatmul.f32.gmra.mxu0 %v1703
        %v2117 = vpop.f32.mrf.mxu0
        %v2118 = vadd.f32 %v1981, %v2117
        %2119 = vmatmul.f32.gmra.mxu0 %v1707
        %v2120 = vpop.f32.mrf.mxu0
        %v2121 = vadd.f32 %v1984, %v2120
        %2122 = vmatmul.f32.gmra.mxu0 %v1711
        %v2123 = vpop.f32.mrf.mxu0
        %v2124 = vadd.f32 %v1987, %v2123
        %2125 = vmatmul.f32.gmra.mxu0 %v1715
        %v2126 = vpop.f32.mrf.mxu0
        %v2127 = vadd.f32 %v1990, %v2126
        %2128 = vmatmul.f32.gmra.mxu0 %v1719
        %v2129 = vpop.f32.mrf.mxu0
        %v2130 = vadd.f32 %v1993, %v2129
        %2131 = vdwg.mxu0
        %2132 = vmatpush.msra.mxu0 %v1551
        %2133 = vmatpush.msra.mxu0 %v1549
        %2134 = vmatpush.msra.mxu0 %v1547
        %2135 = vmatpush.msra.mxu0 %v1545
        %2136 = vmatpush.msra.mxu0 %v1543
        %2137 = vmatpush.msra.mxu0 %v1541
        %2138 = vmatpush.msra.mxu0 %v1539
        %2139 = vmatpush.msra.mxu0 %v1537
        %2140 = vmatpush.msra.mxu0 %v1535
        %2141 = vmatpush.msra.mxu0 %v1533
        %2142 = vmatpush.msra.mxu0 %v1531
        %2143 = vmatpush.msra.mxu0 %v1529
        %2144 = vmatpush.msra.mxu0 %v1527
        %2145 = vmatpush.msra.mxu0 %v1525
        %2146 = vmatpush.msra.mxu0 %v1523
        %2147 = vmatpush.msra.mxu0 %v1521
        %2148 = vmatmul.f32.gmra.mxu0 %v1564
        %v2149 = vpop.f32.mrf.mxu0
        %v2150 = vadd.f32 %v2013, %v2149
        %2151 = vmatmul.f32.gmra.mxu0 %v1568
        %v2152 = vpop.f32.mrf.mxu0
        %v2153 = vadd.f32 %v2016, %v2152
        %2154 = vmatmul.f32.gmra.mxu0 %v1572
        %v2155 = vpop.f32.mrf.mxu0
        %v2156 = vadd.f32 %v2019, %v2155
        %2157 = vmatmul.f32.gmra.mxu0 %v1576
        %v2158 = vpop.f32.mrf.mxu0
        %v2159 = vadd.f32 %v2022, %v2158
        %2160 = vmatmul.f32.gmra.mxu0 %v1580
        %v2161 = vpop.f32.mrf.mxu0
        %v2162 = vadd.f32 %v2025, %v2161
        %2163 = vmatmul.f32.gmra.mxu0 %v1584
        %v2164 = vpop.f32.mrf.mxu0
        %v2165 = vadd.f32 %v2028, %v2164
        %2166 = vmatmul.f32.gmra.mxu0 %v1588
        %v2167 = vpop.f32.mrf.mxu0
        %v2168 = vadd.f32 %v2031, %v2167
        %2169 = vmatmul.f32.gmra.mxu0 %v1592
        %v2170 = vpop.f32.mrf.mxu0
        %v2171 = vadd.f32 %v2034, %v2170
        %2172 = vmatmul.f32.gmra.mxu0 %v1596
        %v2173 = vpop.f32.mrf.mxu0
        %v2174 = vadd.f32 %v2037, %v2173
        %2175 = vmatmul.f32.gmra.mxu0 %v1600
        %v2176 = vpop.f32.mrf.mxu0
        %v2177 = vadd.f32 %v2040, %v2176
        %2178 = vmatmul.f32.gmra.mxu0 %v1604
        %v2179 = vpop.f32.mrf.mxu0
        %v2180 = vadd.f32 %v2043, %v2179
        %2181 = vmatmul.f32.gmra.mxu0 %v1608
        %v2182 = vpop.f32.mrf.mxu0
        %v2183 = vadd.f32 %v2046, %v2182
        %2184 = vmatmul.f32.gmra.mxu0 %v1612
        %v2185 = vpop.f32.mrf.mxu0
        %v2186 = vadd.f32 %v2049, %v2185
        %2187 = vmatmul.f32.gmra.mxu0 %v1616
        %v2188 = vpop.f32.mrf.mxu0
        %v2189 = vadd.f32 %v2052, %v2188
        %2190 = vmatmul.f32.gmra.mxu0 %v1620
        %v2191 = vpop.f32.mrf.mxu0
        %v2192 = vadd.f32 %v2055, %v2191
        %2193 = vmatmul.f32.gmra.mxu0 %v1624
        %v2194 = vpop.f32.mrf.mxu0
        %v2195 = vadd.f32 %v2058, %v2194
        %2196 = vmatmul.f32.gmra.mxu0 %v1628
        %v2197 = vpop.f32.mrf.mxu0
        %v2198 = vadd.f32 %v2061, %v2197
        %2199 = vmatmul.f32.gmra.mxu0 %v1632
        %v2200 = vpop.f32.mrf.mxu0
        %v2201 = vadd.f32 %v2064, %v2200
        %2202 = vmatmul.f32.gmra.mxu0 %v1636
        %v2203 = vpop.f32.mrf.mxu0
        %v2204 = vadd.f32 %v2067, %v2203
        %2205 = vmatmul.f32.gmra.mxu0 %v1640
        %v2206 = vpop.f32.mrf.mxu0
        %v2207 = vadd.f32 %v2070, %v2206
        %2208 = vmatmul.f32.gmra.mxu0 %v1644
        %v2209 = vpop.f32.mrf.mxu0
        %v2210 = vadd.f32 %v2073, %v2209
        %2211 = vmatmul.f32.gmra.mxu0 %v1648
        %v2212 = vpop.f32.mrf.mxu0
        %v2213 = vadd.f32 %v2076, %v2212
        %2214 = vmatmul.f32.gmra.mxu0 %v1652
        %v2215 = vpop.f32.mrf.mxu0
        %v2216 = vadd.f32 %v2079, %v2215
        %2217 = vmatmul.f32.gmra.mxu0 %v1656
        %v2218 = vpop.f32.mrf.mxu0
        %v2219 = vadd.f32 %v2082, %v2218
        %2220 = vmatmul.f32.gmra.mxu0 %v1660
        %v2221 = vpop.f32.mrf.mxu0
        %v2222 = vadd.f32 %v2085, %v2221
        %2223 = vmatmul.f32.gmra.mxu0 %v1664
        %v2224 = vpop.f32.mrf.mxu0
        %v2225 = vadd.f32 %v2088, %v2224
        %2226 = vmatmul.f32.gmra.mxu0 %v1668
        %v2227 = vpop.f32.mrf.mxu0
        %v2228 = vadd.f32 %v2091, %v2227
        %2229 = vmatmul.f32.gmra.mxu0 %v1672
        %v2230 = vpop.f32.mrf.mxu0
        %v2231 = vadd.f32 %v2094, %v2230
        %2232 = vmatmul.f32.gmra.mxu0 %v1676
        %v2233 = vpop.f32.mrf.mxu0
        %v2234 = vadd.f32 %v2097, %v2233
        %2235 = vmatmul.f32.gmra.mxu0 %v1680
        %v2236 = vpop.f32.mrf.mxu0
        %v2237 = vadd.f32 %v2100, %v2236
        %2238 = vmatmul.f32.gmra.mxu0 %v1684
        %v2239 = vpop.f32.mrf.mxu0
        %v2240 = vadd.f32 %v2103, %v2239
        %2241 = vmatmul.f32.gmra.mxu0 %v1688
        %v2242 = vpop.f32.mrf.mxu0
        %v2243 = vadd.f32 %v2106, %v2242
        %2244 = vmatmul.f32.gmra.mxu0 %v1692
        %v2245 = vpop.f32.mrf.mxu0
        %v2246 = vadd.f32 %v2109, %v2245
        %2247 = vmatmul.f32.gmra.mxu0 %v1696
        %v2248 = vpop.f32.mrf.mxu0
        %v2249 = vadd.f32 %v2112, %v2248
        %2250 = vmatmul.f32.gmra.mxu0 %v1700
        %v2251 = vpop.f32.mrf.mxu0
        %v2252 = vadd.f32 %v2115, %v2251
        %2253 = vmatmul.f32.gmra.mxu0 %v1704
        %v2254 = vpop.f32.mrf.mxu0
        %v2255 = vadd.f32 %v2118, %v2254
        %2256 = vmatmul.f32.gmra.mxu0 %v1708
        %v2257 = vpop.f32.mrf.mxu0
        %v2258 = vadd.f32 %v2121, %v2257
        %2259 = vmatmul.f32.gmra.mxu0 %v1712
        %v2260 = vpop.f32.mrf.mxu0
        %v2261 = vadd.f32 %v2124, %v2260
        %2262 = vmatmul.f32.gmra.mxu0 %v1716
        %v2263 = vpop.f32.mrf.mxu0
        %v2264 = vadd.f32 %v2127, %v2263
        %2265 = vmatmul.f32.gmra.mxu0 %v1720
        %v2266 = vpop.f32.mrf.mxu0
        %v2267 = vadd.f32 %v2130, %v2266
        %2268 = vdwg.mxu0
        %2269 = vmatpush.msra.mxu0 %v1456
        %2270 = vmatpush.msra.mxu0 %v1454
        %2271 = vmatpush.msra.mxu0 %v1452
        %2272 = vmatpush.msra.mxu0 %v1450
        %2273 = vmatpush.msra.mxu0 %v1448
        %2274 = vmatpush.msra.mxu0 %v1446
        %2275 = vmatpush.msra.mxu0 %v1444
        %2276 = vmatpush.msra.mxu0 %v1442
        %2277 = vmatpush.msra.mxu0 %v1440
        %2278 = vmatpush.msra.mxu0 %v1438
        %2279 = vmatpush.msra.mxu0 %v1436
        %2280 = vmatpush.msra.mxu0 %v1434
        %2281 = vmatpush.msra.mxu0 %v1432
        %2282 = vmatpush.msra.mxu0 %v1430
        %2283 = vmatpush.msra.mxu0 %v1428
        %2284 = vmatpush.msra.mxu0 %v1426
        %2285 = vmatmul.f32.gmra.mxu0 %v1561
        %v2286 = vpop.f32.mrf.mxu0
        %v2287 = vadd.f32 0.0, %v2286
        %2288 = vmatmul.f32.gmra.mxu0 %v1565
        %v2289 = vpop.f32.mrf.mxu0
        %v2290 = vadd.f32 0.0, %v2289
        %2291 = vmatmul.f32.gmra.mxu0 %v1569
        %v2292 = vpop.f32.mrf.mxu0
        %v2293 = vadd.f32 0.0, %v2292
        %2294 = vmatmul.f32.gmra.mxu0 %v1573
        %v2295 = vpop.f32.mrf.mxu0
        %v2296 = vadd.f32 0.0, %v2295
        %2297 = vmatmul.f32.gmra.mxu0 %v1577
        %v2298 = vpop.f32.mrf.mxu0
        %v2299 = vadd.f32 0.0, %v2298
        %2300 = vmatmul.f32.gmra.mxu0 %v1581
        %v2301 = vpop.f32.mrf.mxu0
        %v2302 = vadd.f32 0.0, %v2301
        %2303 = vmatmul.f32.gmra.mxu0 %v1585
        %v2304 = vpop.f32.mrf.mxu0
        %v2305 = vadd.f32 0.0, %v2304
        %2306 = vmatmul.f32.gmra.mxu0 %v1589
        %v2307 = vpop.f32.mrf.mxu0
        %v2308 = vadd.f32 0.0, %v2307
        %2309 = vmatmul.f32.gmra.mxu0 %v1593
        %v2310 = vpop.f32.mrf.mxu0
        %v2311 = vadd.f32 0.0, %v2310
        %2312 = vmatmul.f32.gmra.mxu0 %v1597
        %v2313 = vpop.f32.mrf.mxu0
        %v2314 = vadd.f32 0.0, %v2313
        %2315 = vmatmul.f32.gmra.mxu0 %v1601
        %v2316 = vpop.f32.mrf.mxu0
        %v2317 = vadd.f32 0.0, %v2316
        %2318 = vmatmul.f32.gmra.mxu0 %v1605
        %v2319 = vpop.f32.mrf.mxu0
        %v2320 = vadd.f32 0.0, %v2319
        %2321 = vmatmul.f32.gmra.mxu0 %v1609
        %v2322 = vpop.f32.mrf.mxu0
        %v2323 = vadd.f32 0.0, %v2322
        %2324 = vmatmul.f32.gmra.mxu0 %v1613
        %v2325 = vpop.f32.mrf.mxu0
        %v2326 = vadd.f32 0.0, %v2325
        %2327 = vmatmul.f32.gmra.mxu0 %v1617
        %v2328 = vpop.f32.mrf.mxu0
        %v2329 = vadd.f32 0.0, %v2328
        %2330 = vmatmul.f32.gmra.mxu0 %v1621
        %v2331 = vpop.f32.mrf.mxu0
        %v2332 = vadd.f32 0.0, %v2331
        %2333 = vmatmul.f32.gmra.mxu0 %v1625
        %v2334 = vpop.f32.mrf.mxu0
        %v2335 = vadd.f32 0.0, %v2334
        %2336 = vmatmul.f32.gmra.mxu0 %v1629
        %v2337 = vpop.f32.mrf.mxu0
        %v2338 = vadd.f32 0.0, %v2337
        %2339 = vmatmul.f32.gmra.mxu0 %v1633
        %v2340 = vpop.f32.mrf.mxu0
        %v2341 = vadd.f32 0.0, %v2340
        %2342 = vmatmul.f32.gmra.mxu0 %v1637
        %v2343 = vpop.f32.mrf.mxu0
        %v2344 = vadd.f32 0.0, %v2343
        %2345 = vmatmul.f32.gmra.mxu0 %v1641
        %v2346 = vpop.f32.mrf.mxu0
        %v2347 = vadd.f32 0.0, %v2346
        %2348 = vmatmul.f32.gmra.mxu0 %v1645
        %v2349 = vpop.f32.mrf.mxu0
        %v2350 = vadd.f32 0.0, %v2349
        %2351 = vmatmul.f32.gmra.mxu0 %v1649
        %v2352 = vpop.f32.mrf.mxu0
        %v2353 = vadd.f32 0.0, %v2352
        %2354 = vmatmul.f32.gmra.mxu0 %v1653
        %v2355 = vpop.f32.mrf.mxu0
        %v2356 = vadd.f32 0.0, %v2355
        %2357 = vmatmul.f32.gmra.mxu0 %v1657
        %v2358 = vpop.f32.mrf.mxu0
        %v2359 = vadd.f32 0.0, %v2358
        %2360 = vmatmul.f32.gmra.mxu0 %v1661
        %v2361 = vpop.f32.mrf.mxu0
        %v2362 = vadd.f32 0.0, %v2361
        %2363 = vmatmul.f32.gmra.mxu0 %v1665
        %v2364 = vpop.f32.mrf.mxu0
        %v2365 = vadd.f32 0.0, %v2364
        %2366 = vmatmul.f32.gmra.mxu0 %v1669
        %v2367 = vpop.f32.mrf.mxu0
        %v2368 = vadd.f32 0.0, %v2367
        %2369 = vmatmul.f32.gmra.mxu0 %v1673
        %v2370 = vpop.f32.mrf.mxu0
        %v2371 = vadd.f32 0.0, %v2370
        %2372 = vmatmul.f32.gmra.mxu0 %v1677
        %v2373 = vpop.f32.mrf.mxu0
        %v2374 = vadd.f32 0.0, %v2373
        %2375 = vmatmul.f32.gmra.mxu0 %v1681
        %v2376 = vpop.f32.mrf.mxu0
        %v2377 = vadd.f32 0.0, %v2376
        %2378 = vmatmul.f32.gmra.mxu0 %v1685
        %v2379 = vpop.f32.mrf.mxu0
        %v2380 = vadd.f32 0.0, %v2379
        %2381 = vmatmul.f32.gmra.mxu0 %v1689
        %v2382 = vpop.f32.mrf.mxu0
        %v2383 = vadd.f32 0.0, %v2382
        %2384 = vmatmul.f32.gmra.mxu0 %v1693
        %v2385 = vpop.f32.mrf.mxu0
        %v2386 = vadd.f32 0.0, %v2385
        %2387 = vmatmul.f32.gmra.mxu0 %v1697
        %v2388 = vpop.f32.mrf.mxu0
        %v2389 = vadd.f32 0.0, %v2388
        %2390 = vmatmul.f32.gmra.mxu0 %v1701
        %v2391 = vpop.f32.mrf.mxu0
        %v2392 = vadd.f32 0.0, %v2391
        %2393 = vmatmul.f32.gmra.mxu0 %v1705
        %v2394 = vpop.f32.mrf.mxu0
        %v2395 = vadd.f32 0.0, %v2394
        %2396 = vmatmul.f32.gmra.mxu0 %v1709
        %v2397 = vpop.f32.mrf.mxu0
        %v2398 = vadd.f32 0.0, %v2397
        %2399 = vmatmul.f32.gmra.mxu0 %v1713
        %v2400 = vpop.f32.mrf.mxu0
        %v2401 = vadd.f32 0.0, %v2400
        %2402 = vmatmul.f32.gmra.mxu0 %v1717
        %v2403 = vpop.f32.mrf.mxu0
        %v2404 = vadd.f32 0.0, %v2403
        %2405 = vdwg.mxu0
        %2406 = vmatpush.msra.mxu0 %v1488
        %2407 = vmatpush.msra.mxu0 %v1486
        %2408 = vmatpush.msra.mxu0 %v1484
        %2409 = vmatpush.msra.mxu0 %v1482
        %2410 = vmatpush.msra.mxu0 %v1480
        %2411 = vmatpush.msra.mxu0 %v1478
        %2412 = vmatpush.msra.mxu0 %v1476
        %2413 = vmatpush.msra.mxu0 %v1474
        %2414 = vmatpush.msra.mxu0 %v1472
        %2415 = vmatpush.msra.mxu0 %v1470
        %2416 = vmatpush.msra.mxu0 %v1468
        %2417 = vmatpush.msra.mxu0 %v1466
        %2418 = vmatpush.msra.mxu0 %v1464
        %2419 = vmatpush.msra.mxu0 %v1462
        %2420 = vmatpush.msra.mxu0 %v1460
        %2421 = vmatpush.msra.mxu0 %v1458
        %2422 = vmatmul.f32.gmra.mxu0 %v1562
        %v2423 = vpop.f32.mrf.mxu0
        %v2424 = vadd.f32 %v2287, %v2423
        %2425 = vmatmul.f32.gmra.mxu0 %v1566
        %v2426 = vpop.f32.mrf.mxu0
        %v2427 = vadd.f32 %v2290, %v2426
        %2428 = vmatmul.f32.gmra.mxu0 %v1570
        %v2429 = vpop.f32.mrf.mxu0
        %v2430 = vadd.f32 %v2293, %v2429
        %2431 = vmatmul.f32.gmra.mxu0 %v1574
        %v2432 = vpop.f32.mrf.mxu0
        %v2433 = vadd.f32 %v2296, %v2432
        %2434 = vmatmul.f32.gmra.mxu0 %v1578
        %v2435 = vpop.f32.mrf.mxu0
        %v2436 = vadd.f32 %v2299, %v2435
        %2437 = vmatmul.f32.gmra.mxu0 %v1582
        %v2438 = vpop.f32.mrf.mxu0
        %v2439 = vadd.f32 %v2302, %v2438
        %2440 = vmatmul.f32.gmra.mxu0 %v1586
        %v2441 = vpop.f32.mrf.mxu0
        %v2442 = vadd.f32 %v2305, %v2441
        %2443 = vmatmul.f32.gmra.mxu0 %v1590
        %v2444 = vpop.f32.mrf.mxu0
        %v2445 = vadd.f32 %v2308, %v2444
        %2446 = vmatmul.f32.gmra.mxu0 %v1594
        %v2447 = vpop.f32.mrf.mxu0
        %v2448 = vadd.f32 %v2311, %v2447
        %2449 = vmatmul.f32.gmra.mxu0 %v1598
        %v2450 = vpop.f32.mrf.mxu0
        %v2451 = vadd.f32 %v2314, %v2450
        %2452 = vmatmul.f32.gmra.mxu0 %v1602
        %v2453 = vpop.f32.mrf.mxu0
        %v2454 = vadd.f32 %v2317, %v2453
        %2455 = vmatmul.f32.gmra.mxu0 %v1606
        %v2456 = vpop.f32.mrf.mxu0
        %v2457 = vadd.f32 %v2320, %v2456
        %2458 = vmatmul.f32.gmra.mxu0 %v1610
        %v2459 = vpop.f32.mrf.mxu0
        %v2460 = vadd.f32 %v2323, %v2459
        %2461 = vmatmul.f32.gmra.mxu0 %v1614
        %v2462 = vpop.f32.mrf.mxu0
        %v2463 = vadd.f32 %v2326, %v2462
        %2464 = vmatmul.f32.gmra.mxu0 %v1618
        %v2465 = vpop.f32.mrf.mxu0
        %v2466 = vadd.f32 %v2329, %v2465
        %2467 = vmatmul.f32.gmra.mxu0 %v1622
        %v2468 = vpop.f32.mrf.mxu0
        %v2469 = vadd.f32 %v2332, %v2468
        %2470 = vmatmul.f32.gmra.mxu0 %v1626
        %v2471 = vpop.f32.mrf.mxu0
        %v2472 = vadd.f32 %v2335, %v2471
        %2473 = vmatmul.f32.gmra.mxu0 %v1630
        %v2474 = vpop.f32.mrf.mxu0
        %v2475 = vadd.f32 %v2338, %v2474
        %2476 = vmatmul.f32.gmra.mxu0 %v1634
        %v2477 = vpop.f32.mrf.mxu0
        %v2478 = vadd.f32 %v2341, %v2477
        %2479 = vmatmul.f32.gmra.mxu0 %v1638
        %v2480 = vpop.f32.mrf.mxu0
        %v2481 = vadd.f32 %v2344, %v2480
        %2482 = vmatmul.f32.gmra.mxu0 %v1642
        %v2483 = vpop.f32.mrf.mxu0
        %v2484 = vadd.f32 %v2347, %v2483
        %2485 = vmatmul.f32.gmra.mxu0 %v1646
        %v2486 = vpop.f32.mrf.mxu0
        %v2487 = vadd.f32 %v2350, %v2486
        %2488 = vmatmul.f32.gmra.mxu0 %v1650
        %v2489 = vpop.f32.mrf.mxu0
        %v2490 = vadd.f32 %v2353, %v2489
        %2491 = vmatmul.f32.gmra.mxu0 %v1654
        %v2492 = vpop.f32.mrf.mxu0
        %v2493 = vadd.f32 %v2356, %v2492
        %2494 = vmatmul.f32.gmra.mxu0 %v1658
        %v2495 = vpop.f32.mrf.mxu0
        %v2496 = vadd.f32 %v2359, %v2495
        %2497 = vmatmul.f32.gmra.mxu0 %v1662
        %v2498 = vpop.f32.mrf.mxu0
        %v2499 = vadd.f32 %v2362, %v2498
        %2500 = vmatmul.f32.gmra.mxu0 %v1666
        %v2501 = vpop.f32.mrf.mxu0
        %v2502 = vadd.f32 %v2365, %v2501
        %2503 = vmatmul.f32.gmra.mxu0 %v1670
        %v2504 = vpop.f32.mrf.mxu0
        %v2505 = vadd.f32 %v2368, %v2504
        %2506 = vmatmul.f32.gmra.mxu0 %v1674
        %v2507 = vpop.f32.mrf.mxu0
        %v2508 = vadd.f32 %v2371, %v2507
        %2509 = vmatmul.f32.gmra.mxu0 %v1678
        %v2510 = vpop.f32.mrf.mxu0
        %v2511 = vadd.f32 %v2374, %v2510
        %2512 = vmatmul.f32.gmra.mxu0 %v1682
        %v2513 = vpop.f32.mrf.mxu0
        %v2514 = vadd.f32 %v2377, %v2513
        %2515 = vmatmul.f32.gmra.mxu0 %v1686
        %v2516 = vpop.f32.mrf.mxu0
        %v2517 = vadd.f32 %v2380, %v2516
        %2518 = vmatmul.f32.gmra.mxu0 %v1690
        %v2519 = vpop.f32.mrf.mxu0
        %v2520 = vadd.f32 %v2383, %v2519
        %2521 = vmatmul.f32.gmra.mxu0 %v1694
        %v2522 = vpop.f32.mrf.mxu0
        %v2523 = vadd.f32 %v2386, %v2522
        %2524 = vmatmul.f32.gmra.mxu0 %v1698
        %v2525 = vpop.f32.mrf.mxu0
        %v2526 = vadd.f32 %v2389, %v2525
        %2527 = vmatmul.f32.gmra.mxu0 %v1702
        %v2528 = vpop.f32.mrf.mxu0
        %v2529 = vadd.f32 %v2392, %v2528
        %2530 = vmatmul.f32.gmra.mxu0 %v1706
        %v2531 = vpop.f32.mrf.mxu0
        %v2532 = vadd.f32 %v2395, %v2531
        %2533 = vmatmul.f32.gmra.mxu0 %v1710
        %v2534 = vpop.f32.mrf.mxu0
        %v2535 = vadd.f32 %v2398, %v2534
        %2536 = vmatmul.f32.gmra.mxu0 %v1714
        %v2537 = vpop.f32.mrf.mxu0
        %v2538 = vadd.f32 %v2401, %v2537
        %2539 = vmatmul.f32.gmra.mxu0 %v1718
        %v2540 = vpop.f32.mrf.mxu0
        %v2541 = vadd.f32 %v2404, %v2540
        %2542 = vdwg.mxu0
        %2543 = vmatpush.msra.mxu0 %v1520
        %2544 = vmatpush.msra.mxu0 %v1518
        %2545 = vmatpush.msra.mxu0 %v1516
        %2546 = vmatpush.msra.mxu0 %v1514
        %2547 = vmatpush.msra.mxu0 %v1512
        %2548 = vmatpush.msra.mxu0 %v1510
        %2549 = vmatpush.msra.mxu0 %v1508
        %2550 = vmatpush.msra.mxu0 %v1506
        %2551 = vmatpush.msra.mxu0 %v1504
        %2552 = vmatpush.msra.mxu0 %v1502
        %2553 = vmatpush.msra.mxu0 %v1500
        %2554 = vmatpush.msra.mxu0 %v1498
        %2555 = vmatpush.msra.mxu0 %v1496
        %2556 = vmatpush.msra.mxu0 %v1494
        %2557 = vmatpush.msra.mxu0 %v1492
        %2558 = vmatpush.msra.mxu0 %v1490
        %2559 = vmatmul.f32.gmra.mxu0 %v1563
        %v2560 = vpop.f32.mrf.mxu0
        %v2561 = vadd.f32 %v2424, %v2560
        %2562 = vmatmul.f32.gmra.mxu0 %v1567
        %v2563 = vpop.f32.mrf.mxu0
        %v2564 = vadd.f32 %v2427, %v2563
        %2565 = vmatmul.f32.gmra.mxu0 %v1571
        %v2566 = vpop.f32.mrf.mxu0
        %v2567 = vadd.f32 %v2430, %v2566
        %2568 = vmatmul.f32.gmra.mxu0 %v1575
        %v2569 = vpop.f32.mrf.mxu0
        %v2570 = vadd.f32 %v2433, %v2569
        %2571 = vmatmul.f32.gmra.mxu0 %v1579
        %v2572 = vpop.f32.mrf.mxu0
        %v2573 = vadd.f32 %v2436, %v2572
        %2574 = vmatmul.f32.gmra.mxu0 %v1583
        %v2575 = vpop.f32.mrf.mxu0
        %v2576 = vadd.f32 %v2439, %v2575
        %2577 = vmatmul.f32.gmra.mxu0 %v1587
        %v2578 = vpop.f32.mrf.mxu0
        %v2579 = vadd.f32 %v2442, %v2578
        %2580 = vmatmul.f32.gmra.mxu0 %v1591
        %v2581 = vpop.f32.mrf.mxu0
        %v2582 = vadd.f32 %v2445, %v2581
        %2583 = vmatmul.f32.gmra.mxu0 %v1595
        %v2584 = vpop.f32.mrf.mxu0
        %v2585 = vadd.f32 %v2448, %v2584
        %2586 = vmatmul.f32.gmra.mxu0 %v1599
        %v2587 = vpop.f32.mrf.mxu0
        %v2588 = vadd.f32 %v2451, %v2587
        %2589 = vmatmul.f32.gmra.mxu0 %v1603
        %v2590 = vpop.f32.mrf.mxu0
        %v2591 = vadd.f32 %v2454, %v2590
        %2592 = vmatmul.f32.gmra.mxu0 %v1607
        %v2593 = vpop.f32.mrf.mxu0
        %v2594 = vadd.f32 %v2457, %v2593
        %2595 = vmatmul.f32.gmra.mxu0 %v1611
        %v2596 = vpop.f32.mrf.mxu0
        %v2597 = vadd.f32 %v2460, %v2596
        %2598 = vmatmul.f32.gmra.mxu0 %v1615
        %v2599 = vpop.f32.mrf.mxu0
        %v2600 = vadd.f32 %v2463, %v2599
        %2601 = vmatmul.f32.gmra.mxu0 %v1619
        %v2602 = vpop.f32.mrf.mxu0
        %v2603 = vadd.f32 %v2466, %v2602
        %2604 = vmatmul.f32.gmra.mxu0 %v1623
        %v2605 = vpop.f32.mrf.mxu0
        %v2606 = vadd.f32 %v2469, %v2605
        %2607 = vmatmul.f32.gmra.mxu0 %v1627
        %v2608 = vpop.f32.mrf.mxu0
        %v2609 = vadd.f32 %v2472, %v2608
        %2610 = vmatmul.f32.gmra.mxu0 %v1631
        %v2611 = vpop.f32.mrf.mxu0
        %v2612 = vadd.f32 %v2475, %v2611
        %2613 = vmatmul.f32.gmra.mxu0 %v1635
        %v2614 = vpop.f32.mrf.mxu0
        %v2615 = vadd.f32 %v2478, %v2614
        %2616 = vmatmul.f32.gmra.mxu0 %v1639
        %v2617 = vpop.f32.mrf.mxu0
        %v2618 = vadd.f32 %v2481, %v2617
        %2619 = vmatmul.f32.gmra.mxu0 %v1643
        %v2620 = vpop.f32.mrf.mxu0
        %v2621 = vadd.f32 %v2484, %v2620
        %2622 = vmatmul.f32.gmra.mxu0 %v1647
        %v2623 = vpop.f32.mrf.mxu0
        %v2624 = vadd.f32 %v2487, %v2623
        %2625 = vmatmul.f32.gmra.mxu0 %v1651
        %v2626 = vpop.f32.mrf.mxu0
        %v2627 = vadd.f32 %v2490, %v2626
        %2628 = vmatmul.f32.gmra.mxu0 %v1655
        %v2629 = vpop.f32.mrf.mxu0
        %v2630 = vadd.f32 %v2493, %v2629
        %2631 = vmatmul.f32.gmra.mxu0 %v1659
        %v2632 = vpop.f32.mrf.mxu0
        %v2633 = vadd.f32 %v2496, %v2632
        %2634 = vmatmul.f32.gmra.mxu0 %v1663
        %v2635 = vpop.f32.mrf.mxu0
        %v2636 = vadd.f32 %v2499, %v2635
        %2637 = vmatmul.f32.gmra.mxu0 %v1667
        %v2638 = vpop.f32.mrf.mxu0
        %v2639 = vadd.f32 %v2502, %v2638
        %2640 = vmatmul.f32.gmra.mxu0 %v1671
        %v2641 = vpop.f32.mrf.mxu0
        %v2642 = vadd.f32 %v2505, %v2641
        %2643 = vmatmul.f32.gmra.mxu0 %v1675
        %v2644 = vpop.f32.mrf.mxu0
        %v2645 = vadd.f32 %v2508, %v2644
        %2646 = vmatmul.f32.gmra.mxu0 %v1679
        %v2647 = vpop.f32.mrf.mxu0
        %v2648 = vadd.f32 %v2511, %v2647
        %2649 = vmatmul.f32.gmra.mxu0 %v1683
        %v2650 = vpop.f32.mrf.mxu0
        %v2651 = vadd.f32 %v2514, %v2650
        %2652 = vmatmul.f32.gmra.mxu0 %v1687
        %v2653 = vpop.f32.mrf.mxu0
        %v2654 = vadd.f32 %v2517, %v2653
        %2655 = vmatmul.f32.gmra.mxu0 %v1691
        %v2656 = vpop.f32.mrf.mxu0
        %v2657 = vadd.f32 %v2520, %v2656
        %2658 = vmatmul.f32.gmra.mxu0 %v1695
        %v2659 = vpop.f32.mrf.mxu0
        %v2660 = vadd.f32 %v2523, %v2659
        %2661 = vmatmul.f32.gmra.mxu0 %v1699
        %v2662 = vpop.f32.mrf.mxu0
        %v2663 = vadd.f32 %v2526, %v2662
        %2664 = vmatmul.f32.gmra.mxu0 %v1703
        %v2665 = vpop.f32.mrf.mxu0
        %v2666 = vadd.f32 %v2529, %v2665
        %2667 = vmatmul.f32.gmra.mxu0 %v1707
        %v2668 = vpop.f32.mrf.mxu0
        %v2669 = vadd.f32 %v2532, %v2668
        %2670 = vmatmul.f32.gmra.mxu0 %v1711
        %v2671 = vpop.f32.mrf.mxu0
        %v2672 = vadd.f32 %v2535, %v2671
        %2673 = vmatmul.f32.gmra.mxu0 %v1715
        %v2674 = vpop.f32.mrf.mxu0
        %v2675 = vadd.f32 %v2538, %v2674
        %2676 = vmatmul.f32.gmra.mxu0 %v1719
        %v2677 = vpop.f32.mrf.mxu0
        %v2678 = vadd.f32 %v2541, %v2677
        %2679 = vdwg.mxu0
        %2680 = vmatpush.msra.mxu0 %v1552
        %2681 = vmatpush.msra.mxu0 %v1550
        %2682 = vmatpush.msra.mxu0 %v1548
        %2683 = vmatpush.msra.mxu0 %v1546
        %2684 = vmatpush.msra.mxu0 %v1544
        %2685 = vmatpush.msra.mxu0 %v1542
        %2686 = vmatpush.msra.mxu0 %v1540
        %2687 = vmatpush.msra.mxu0 %v1538
        %2688 = vmatpush.msra.mxu0 %v1536
        %2689 = vmatpush.msra.mxu0 %v1534
        %2690 = vmatpush.msra.mxu0 %v1532
        %2691 = vmatpush.msra.mxu0 %v1530
        %2692 = vmatpush.msra.mxu0 %v1528
        %2693 = vmatpush.msra.mxu0 %v1526
        %2694 = vmatpush.msra.mxu0 %v1524
        %2695 = vmatpush.msra.mxu0 %v1522
        %2696 = vmatmul.f32.gmra.mxu0 %v1564
        %v2697 = vpop.f32.mrf.mxu0
        %v2698 = vadd.f32 %v2561, %v2697
        %2699 = vmatmul.f32.gmra.mxu0 %v1568
        %v2700 = vpop.f32.mrf.mxu0
        %v2701 = vadd.f32 %v2564, %v2700
        %2702 = vmatmul.f32.gmra.mxu0 %v1572
        %v2703 = vpop.f32.mrf.mxu0
        %v2704 = vadd.f32 %v2567, %v2703
        %2705 = vmatmul.f32.gmra.mxu0 %v1576
        %v2706 = vpop.f32.mrf.mxu0
        %v2707 = vadd.f32 %v2570, %v2706
        %2708 = vmatmul.f32.gmra.mxu0 %v1580
        %v2709 = vpop.f32.mrf.mxu0
        %v2710 = vadd.f32 %v2573, %v2709
        %2711 = vmatmul.f32.gmra.mxu0 %v1584
        %v2712 = vpop.f32.mrf.mxu0
        %v2713 = vadd.f32 %v2576, %v2712
        %2714 = vmatmul.f32.gmra.mxu0 %v1588
        %v2715 = vpop.f32.mrf.mxu0
        %v2716 = vadd.f32 %v2579, %v2715
        %2717 = vmatmul.f32.gmra.mxu0 %v1592
        %v2718 = vpop.f32.mrf.mxu0
        %v2719 = vadd.f32 %v2582, %v2718
        %2720 = vmatmul.f32.gmra.mxu0 %v1596
        %v2721 = vpop.f32.mrf.mxu0
        %v2722 = vadd.f32 %v2585, %v2721
        %2723 = vmatmul.f32.gmra.mxu0 %v1600
        %v2724 = vpop.f32.mrf.mxu0
        %v2725 = vadd.f32 %v2588, %v2724
        %2726 = vmatmul.f32.gmra.mxu0 %v1604
        %v2727 = vpop.f32.mrf.mxu0
        %v2728 = vadd.f32 %v2591, %v2727
        %2729 = vmatmul.f32.gmra.mxu0 %v1608
        %v2730 = vpop.f32.mrf.mxu0
        %v2731 = vadd.f32 %v2594, %v2730
        %2732 = vmatmul.f32.gmra.mxu0 %v1612
        %v2733 = vpop.f32.mrf.mxu0
        %v2734 = vadd.f32 %v2597, %v2733
        %2735 = vmatmul.f32.gmra.mxu0 %v1616
        %v2736 = vpop.f32.mrf.mxu0
        %v2737 = vadd.f32 %v2600, %v2736
        %2738 = vmatmul.f32.gmra.mxu0 %v1620
        %v2739 = vpop.f32.mrf.mxu0
        %v2740 = vadd.f32 %v2603, %v2739
        %2741 = vmatmul.f32.gmra.mxu0 %v1624
        %v2742 = vpop.f32.mrf.mxu0
        %v2743 = vadd.f32 %v2606, %v2742
        %2744 = vmatmul.f32.gmra.mxu0 %v1628
        %v2745 = vpop.f32.mrf.mxu0
        %v2746 = vadd.f32 %v2609, %v2745
        %2747 = vmatmul.f32.gmra.mxu0 %v1632
        %v2748 = vpop.f32.mrf.mxu0
        %v2749 = vadd.f32 %v2612, %v2748
        %2750 = vmatmul.f32.gmra.mxu0 %v1636
        %v2751 = vpop.f32.mrf.mxu0
        %v2752 = vadd.f32 %v2615, %v2751
        %2753 = vmatmul.f32.gmra.mxu0 %v1640
        %v2754 = vpop.f32.mrf.mxu0
        %v2755 = vadd.f32 %v2618, %v2754
        %2756 = vmatmul.f32.gmra.mxu0 %v1644
        %v2757 = vpop.f32.mrf.mxu0
        %v2758 = vadd.f32 %v2621, %v2757
        %2759 = vmatmul.f32.gmra.mxu0 %v1648
        %v2760 = vpop.f32.mrf.mxu0
        %v2761 = vadd.f32 %v2624, %v2760
        %2762 = vmatmul.f32.gmra.mxu0 %v1652
        %v2763 = vpop.f32.mrf.mxu0
        %v2764 = vadd.f32 %v2627, %v2763
        %2765 = vmatmul.f32.gmra.mxu0 %v1656
        %v2766 = vpop.f32.mrf.mxu0
        %v2767 = vadd.f32 %v2630, %v2766
        %2768 = vmatmul.f32.gmra.mxu0 %v1660
        %v2769 = vpop.f32.mrf.mxu0
        %v2770 = vadd.f32 %v2633, %v2769
        %2771 = vmatmul.f32.gmra.mxu0 %v1664
        %v2772 = vpop.f32.mrf.mxu0
        %v2773 = vadd.f32 %v2636, %v2772
        %2774 = vmatmul.f32.gmra.mxu0 %v1668
        %v2775 = vpop.f32.mrf.mxu0
        %v2776 = vadd.f32 %v2639, %v2775
        %2777 = vmatmul.f32.gmra.mxu0 %v1672
        %v2778 = vpop.f32.mrf.mxu0
        %v2779 = vadd.f32 %v2642, %v2778
        %2780 = vmatmul.f32.gmra.mxu0 %v1676
        %v2781 = vpop.f32.mrf.mxu0
        %v2782 = vadd.f32 %v2645, %v2781
        %2783 = vmatmul.f32.gmra.mxu0 %v1680
        %v2784 = vpop.f32.mrf.mxu0
        %v2785 = vadd.f32 %v2648, %v2784
        %2786 = vmatmul.f32.gmra.mxu0 %v1684
        %v2787 = vpop.f32.mrf.mxu0
        %v2788 = vadd.f32 %v2651, %v2787
        %2789 = vmatmul.f32.gmra.mxu0 %v1688
        %v2790 = vpop.f32.mrf.mxu0
        %v2791 = vadd.f32 %v2654, %v2790
        %2792 = vmatmul.f32.gmra.mxu0 %v1692
        %v2793 = vpop.f32.mrf.mxu0
        %v2794 = vadd.f32 %v2657, %v2793
        %2795 = vmatmul.f32.gmra.mxu0 %v1696
        %v2796 = vpop.f32.mrf.mxu0
        %v2797 = vadd.f32 %v2660, %v2796
        %2798 = vmatmul.f32.gmra.mxu0 %v1700
        %v2799 = vpop.f32.mrf.mxu0
        %v2800 = vadd.f32 %v2663, %v2799
        %2801 = vmatmul.f32.gmra.mxu0 %v1704
        %v2802 = vpop.f32.mrf.mxu0
        %v2803 = vadd.f32 %v2666, %v2802
        %2804 = vmatmul.f32.gmra.mxu0 %v1708
        %v2805 = vpop.f32.mrf.mxu0
        %v2806 = vadd.f32 %v2669, %v2805
        %2807 = vmatmul.f32.gmra.mxu0 %v1712
        %v2808 = vpop.f32.mrf.mxu0
        %v2809 = vadd.f32 %v2672, %v2808
        %2810 = vmatmul.f32.gmra.mxu0 %v1716
        %v2811 = vpop.f32.mrf.mxu0
        %v2812 = vadd.f32 %v2675, %v2811
        %2813 = vmatmul.f32.gmra.mxu0 %v1720
        %v2814 = vpop.f32.mrf.mxu0
        %v2815 = vadd.f32 %v2678, %v2814
        %2816 = vdwg.mxu0
        %v2817 = vmul.f32 %v2150, %v2150
        %v2818 = vmul.f32 %v2698, %v2698
        %v2819 = vmul.f32 %v2153, %v2153
        %v2820 = vmul.f32 %v2701, %v2701
        %v2821 = vmul.f32 %v2156, %v2156
        %v2822 = vmul.f32 %v2704, %v2704
        %v2823 = vmul.f32 %v2159, %v2159
        %v2824 = vmul.f32 %v2707, %v2707
        %v2825 = vmul.f32 %v2162, %v2162
        %v2826 = vmul.f32 %v2710, %v2710
        %v2827 = vmul.f32 %v2165, %v2165
        %v2828 = vmul.f32 %v2713, %v2713
        %v2829 = vmul.f32 %v2168, %v2168
        %v2830 = vmul.f32 %v2716, %v2716
        %v2831 = vmul.f32 %v2171, %v2171
        %v2832 = vmul.f32 %v2719, %v2719
        %v2833 = vmul.f32 %v2174, %v2174
        %v2834 = vmul.f32 %v2722, %v2722
        %v2835 = vmul.f32 %v2177, %v2177
        %v2836 = vmul.f32 %v2725, %v2725
        %v2837 = vmul.f32 %v2180, %v2180
        %v2838 = vmul.f32 %v2728, %v2728
        %v2839 = vmul.f32 %v2183, %v2183
        %v2840 = vmul.f32 %v2731, %v2731
        %v2841 = vmul.f32 %v2186, %v2186
        %v2842 = vmul.f32 %v2734, %v2734
        %v2843 = vmul.f32 %v2189, %v2189
        %v2844 = vmul.f32 %v2737, %v2737
        %v2845 = vmul.f32 %v2192, %v2192
        %v2846 = vmul.f32 %v2740, %v2740
        %v2847 = vmul.f32 %v2195, %v2195
        %v2848 = vmul.f32 %v2743, %v2743
        %v2849 = vmul.f32 %v2150, %v2174
        %v2850 = vmul.f32 %v2698, %v2722
        %v2851 = vmul.f32 %v2153, %v2177
        %v2852 = vmul.f32 %v2701, %v2725
        %v2853 = vmul.f32 %v2156, %v2180
        %v2854 = vmul.f32 %v2704, %v2728
        %v2855 = vmul.f32 %v2159, %v2183
        %v2856 = vmul.f32 %v2707, %v2731
        %v2857 = vmul.f32 %v2162, %v2186
        %v2858 = vmul.f32 %v2710, %v2734
        %v2859 = vmul.f32 %v2165, %v2189
        %v2860 = vmul.f32 %v2713, %v2737
        %v2861 = vmul.f32 %v2168, %v2192
        %v2862 = vmul.f32 %v2716, %v2740
        %v2863 = vmul.f32 %v2171, %v2195
        %v2864 = vmul.f32 %v2719, %v2743
        %v2865 = vsub.f32 %v2198, %v2817
        %v2866 = vsub.f32 %v2746, %v2818
        %v2867 = vsub.f32 %v2201, %v2819
        %v2868 = vsub.f32 %v2749, %v2820
        %v2869 = vsub.f32 %v2204, %v2821
        %v2870 = vsub.f32 %v2752, %v2822
        %v2871 = vsub.f32 %v2207, %v2823
        %v2872 = vsub.f32 %v2755, %v2824
        %v2873 = vsub.f32 %v2210, %v2825
        %v2874 = vsub.f32 %v2758, %v2826
        %v2875 = vsub.f32 %v2213, %v2827
        %v2876 = vsub.f32 %v2761, %v2828
        %v2877 = vsub.f32 %v2216, %v2829
        %v2878 = vsub.f32 %v2764, %v2830
        %v2879 = vsub.f32 %v2219, %v2831
        %v2880 = vsub.f32 %v2767, %v2832
        %v2881 = vsub.f32 %v2222, %v2833
        %v2882 = vsub.f32 %v2770, %v2834
        %v2883 = vsub.f32 %v2225, %v2835
        %v2884 = vsub.f32 %v2773, %v2836
        %v2885 = vsub.f32 %v2228, %v2837
        %v2886 = vsub.f32 %v2776, %v2838
        %v2887 = vsub.f32 %v2231, %v2839
        %v2888 = vsub.f32 %v2779, %v2840
        %v2889 = vsub.f32 %v2234, %v2841
        %v2890 = vsub.f32 %v2782, %v2842
        %v2891 = vsub.f32 %v2237, %v2843
        %v2892 = vsub.f32 %v2785, %v2844
        %v2893 = vsub.f32 %v2240, %v2845
        %v2894 = vsub.f32 %v2788, %v2846
        %v2895 = vsub.f32 %v2243, %v2847
        %v2896 = vsub.f32 %v2791, %v2848
        %v2897 = vsub.f32 %v2246, %v2849
        %v2898 = vsub.f32 %v2794, %v2850
        %v2899 = vsub.f32 %v2249, %v2851
        %v2900 = vsub.f32 %v2797, %v2852
        %v2901 = vsub.f32 %v2252, %v2853
        %v2902 = vsub.f32 %v2800, %v2854
        %v2903 = vsub.f32 %v2255, %v2855
        %v2904 = vsub.f32 %v2803, %v2856
        %v2905 = vsub.f32 %v2258, %v2857
        %v2906 = vsub.f32 %v2806, %v2858
        %v2907 = vsub.f32 %v2261, %v2859
        %v2908 = vsub.f32 %v2809, %v2860
        %v2909 = vsub.f32 %v2264, %v2861
        %v2910 = vsub.f32 %v2812, %v2862
        %v2911 = vsub.f32 %v2267, %v2863
        %v2912 = vsub.f32 %v2815, %v2864
        %v2913 = vmul.f32 %v2849, 2.0
        %v2914 = vmul.f32 %v2850, 2.0
        %v2915 = vmul.f32 %v2851, 2.0
        %v2916 = vmul.f32 %v2852, 2.0
        %v2917 = vmul.f32 %v2853, 2.0
        %v2918 = vmul.f32 %v2854, 2.0
        %v2919 = vmul.f32 %v2855, 2.0
        %v2920 = vmul.f32 %v2856, 2.0
        %v2921 = vmul.f32 %v2857, 2.0
        %v2922 = vmul.f32 %v2858, 2.0
        %v2923 = vmul.f32 %v2859, 2.0
        %v2924 = vmul.f32 %v2860, 2.0
        %v2925 = vmul.f32 %v2861, 2.0
        %v2926 = vmul.f32 %v2862, 2.0
        %v2927 = vmul.f32 %v2863, 2.0
        %v2928 = vmul.f32 %v2864, 2.0
        %v2929 = vadd.f32 %v2913, 0.0001
        %v2930 = vadd.f32 %v2914, 0.0001
        %v2931 = vadd.f32 %v2915, 0.0001
        %v2932 = vadd.f32 %v2916, 0.0001
        %v2933 = vadd.f32 %v2917, 0.0001
        %v2934 = vadd.f32 %v2918, 0.0001
        %v2935 = vadd.f32 %v2919, 0.0001
        %v2936 = vadd.f32 %v2920, 0.0001
        %v2937 = vadd.f32 %v2921, 0.0001
        %v2938 = vadd.f32 %v2922, 0.0001
        %v2939 = vadd.f32 %v2923, 0.0001
        %v2940 = vadd.f32 %v2924, 0.0001
        %v2941 = vadd.f32 %v2925, 0.0001
        %v2942 = vadd.f32 %v2926, 0.0001
        %v2943 = vadd.f32 %v2927, 0.0001
        %v2944 = vadd.f32 %v2928, 0.0001
        %v2945 = vmul.f32 %v2897, 2.0
        %v2946 = vmul.f32 %v2898, 2.0
        %v2947 = vmul.f32 %v2899, 2.0
        %v2948 = vmul.f32 %v2900, 2.0
        %v2949 = vmul.f32 %v2901, 2.0
        %v2950 = vmul.f32 %v2902, 2.0
        %v2951 = vmul.f32 %v2903, 2.0
        %v2952 = vmul.f32 %v2904, 2.0
        %v2953 = vmul.f32 %v2905, 2.0
        %v2954 = vmul.f32 %v2906, 2.0
        %v2955 = vmul.f32 %v2907, 2.0
        %v2956 = vmul.f32 %v2908, 2.0
        %v2957 = vmul.f32 %v2909, 2.0
        %v2958 = vmul.f32 %v2910, 2.0
        %v2959 = vmul.f32 %v2911, 2.0
        %v2960 = vmul.f32 %v2912, 2.0
        %v2961 = vadd.f32 %v2945, 0.0009
        %v2962 = vadd.f32 %v2946, 0.0009
        %v2963 = vadd.f32 %v2947, 0.0009
        %v2964 = vadd.f32 %v2948, 0.0009
        %v2965 = vadd.f32 %v2949, 0.0009
        %v2966 = vadd.f32 %v2950, 0.0009
        %v2967 = vadd.f32 %v2951, 0.0009
        %v2968 = vadd.f32 %v2952, 0.0009
        %v2969 = vadd.f32 %v2953, 0.0009
        %v2970 = vadd.f32 %v2954, 0.0009
        %v2971 = vadd.f32 %v2955, 0.0009
        %v2972 = vadd.f32 %v2956, 0.0009
        %v2973 = vadd.f32 %v2957, 0.0009
        %v2974 = vadd.f32 %v2958, 0.0009
        %v2975 = vadd.f32 %v2959, 0.0009
        %v2976 = vadd.f32 %v2960, 0.0009
        %v2977 = vmul.f32 %v2929, %v2961
        %v2978 = vmul.f32 %v2930, %v2962
        %v2979 = vmul.f32 %v2931, %v2963
        %v2980 = vmul.f32 %v2932, %v2964
        %v2981 = vmul.f32 %v2933, %v2965
        %v2982 = vmul.f32 %v2934, %v2966
        %v2983 = vmul.f32 %v2935, %v2967
        %v2984 = vmul.f32 %v2936, %v2968
        %v2985 = vmul.f32 %v2937, %v2969
        %v2986 = vmul.f32 %v2938, %v2970
        %v2987 = vmul.f32 %v2939, %v2971
        %v2988 = vmul.f32 %v2940, %v2972
        %v2989 = vmul.f32 %v2941, %v2973
        %v2990 = vmul.f32 %v2942, %v2974
        %v2991 = vmul.f32 %v2943, %v2975
        %v2992 = vmul.f32 %v2944, %v2976
        %v2993 = vadd.f32 %v2817, %v2833
        %v2994 = vadd.f32 %v2818, %v2834
        %v2995 = vadd.f32 %v2819, %v2835
        %v2996 = vadd.f32 %v2820, %v2836
        %v2997 = vadd.f32 %v2821, %v2837
        %v2998 = vadd.f32 %v2822, %v2838
        %v2999 = vadd.f32 %v2823, %v2839
        %v3000 = vadd.f32 %v2824, %v2840
        %v3001 = vadd.f32 %v2825, %v2841
        %v3002 = vadd.f32 %v2826, %v2842
        %v3003 = vadd.f32 %v2827, %v2843
        %v3004 = vadd.f32 %v2828, %v2844
        %v3005 = vadd.f32 %v2829, %v2845
        %v3006 = vadd.f32 %v2830, %v2846
        %v3007 = vadd.f32 %v2831, %v2847
        %v3008 = vadd.f32 %v2832, %v2848
        %v3009 = vadd.f32 %v2993, 0.0001
        %v3010 = vadd.f32 %v2994, 0.0001
        %v3011 = vadd.f32 %v2995, 0.0001
        %v3012 = vadd.f32 %v2996, 0.0001
        %v3013 = vadd.f32 %v2997, 0.0001
        %v3014 = vadd.f32 %v2998, 0.0001
        %v3015 = vadd.f32 %v2999, 0.0001
        %v3016 = vadd.f32 %v3000, 0.0001
        %v3017 = vadd.f32 %v3001, 0.0001
        %v3018 = vadd.f32 %v3002, 0.0001
        %v3019 = vadd.f32 %v3003, 0.0001
        %v3020 = vadd.f32 %v3004, 0.0001
        %v3021 = vadd.f32 %v3005, 0.0001
        %v3022 = vadd.f32 %v3006, 0.0001
        %v3023 = vadd.f32 %v3007, 0.0001
        %v3024 = vadd.f32 %v3008, 0.0001
        %v3025 = vadd.f32 %v2865, %v2881
        %v3026 = vadd.f32 %v2866, %v2882
        %v3027 = vadd.f32 %v2867, %v2883
        %v3028 = vadd.f32 %v2868, %v2884
        %v3029 = vadd.f32 %v2869, %v2885
        %v3030 = vadd.f32 %v2870, %v2886
        %v3031 = vadd.f32 %v2871, %v2887
        %v3032 = vadd.f32 %v2872, %v2888
        %v3033 = vadd.f32 %v2873, %v2889
        %v3034 = vadd.f32 %v2874, %v2890
        %v3035 = vadd.f32 %v2875, %v2891
        %v3036 = vadd.f32 %v2876, %v2892
        %v3037 = vadd.f32 %v2877, %v2893
        %v3038 = vadd.f32 %v2878, %v2894
        %v3039 = vadd.f32 %v2879, %v2895
        %v3040 = vadd.f32 %v2880, %v2896
        %v3041 = vadd.f32 %v3025, 0.0009
        %v3042 = vadd.f32 %v3026, 0.0009
        %v3043 = vadd.f32 %v3027, 0.0009
        %v3044 = vadd.f32 %v3028, 0.0009
        %v3045 = vadd.f32 %v3029, 0.0009
        %v3046 = vadd.f32 %v3030, 0.0009
        %v3047 = vadd.f32 %v3031, 0.0009
        %v3048 = vadd.f32 %v3032, 0.0009
        %v3049 = vadd.f32 %v3033, 0.0009
        %v3050 = vadd.f32 %v3034, 0.0009
        %v3051 = vadd.f32 %v3035, 0.0009
        %v3052 = vadd.f32 %v3036, 0.0009
        %v3053 = vadd.f32 %v3037, 0.0009
        %v3054 = vadd.f32 %v3038, 0.0009
        %v3055 = vadd.f32 %v3039, 0.0009
        %v3056 = vadd.f32 %v3040, 0.0009
        %v3057 = vmul.f32 %v3009, %v3041
        %v3058 = vmul.f32 %v3010, %v3042
        %v3059 = vmul.f32 %v3011, %v3043
        %v3060 = vmul.f32 %v3012, %v3044
        %v3061 = vmul.f32 %v3013, %v3045
        %v3062 = vmul.f32 %v3014, %v3046
        %v3063 = vmul.f32 %v3015, %v3047
        %v3064 = vmul.f32 %v3016, %v3048
        %v3065 = vmul.f32 %v3017, %v3049
        %v3066 = vmul.f32 %v3018, %v3050
        %v3067 = vmul.f32 %v3019, %v3051
        %v3068 = vmul.f32 %v3020, %v3052
        %v3069 = vmul.f32 %v3021, %v3053
        %v3070 = vmul.f32 %v3022, %v3054
        %v3071 = vmul.f32 %v3023, %v3055
        %v3072 = vmul.f32 %v3024, %v3056
        %v3073 = vrcp.pop %v3057
        %v3074 = vrcp.pop %v3058
        %v3075 = vrcp.pop %v3059
        %v3076 = vrcp.pop %v3060
        %v3077 = vrcp.pop %v3061
        %v3078 = vrcp.pop %v3062
        %v3079 = vrcp.pop %v3063
        %v3080 = vrcp.pop %v3064
        %v3081 = vrcp.pop %v3065
        %v3082 = vrcp.pop %v3066
        %v3083 = vrcp.pop %v3067
        %v3084 = vrcp.pop %v3068
        %v3085 = vrcp.pop %v3069
        %v3086 = vrcp.pop %v3070
        %v3087 = vrcp.pop %v3071
        %v3088 = vrcp.pop %v3072
        %v3089 = vmul.f32 %v2977, %v3073
        %v3090 = vmul.f32 %v2978, %v3074
        %v3091 = vmul.f32 %v2979, %v3075
        %v3092 = vmul.f32 %v2980, %v3076
        %v3093 = vmul.f32 %v2981, %v3077
        %v3094 = vmul.f32 %v2982, %v3078
        %v3095 = vmul.f32 %v2983, %v3079
        %v3096 = vmul.f32 %v2984, %v3080
        %v3097 = vmul.f32 %v2985, %v3081
        %v3098 = vmul.f32 %v2986, %v3082
        %v3099 = vmul.f32 %v2987, %v3083
        %v3100 = vmul.f32 %v2988, %v3084
        %v3101 = vmul.f32 %v2989, %v3085
        %v3102 = vmul.f32 %v2990, %v3086
        %v3103 = vmul.f32 %v2991, %v3087
        %v3104 = vmul.f32 %v2992, %v3088
        %vm3105 = vmand %vm1553, %vm535
        %vm3106 = vmand %vm1553, %vm536
        %vm3107 = vmand %vm1554, %vm535
        %vm3108 = vmand %vm1554, %vm536
        %vm3109 = vmand %vm1555, %vm535
        %vm3110 = vmand %vm1555, %vm536
        %vm3111 = vmand %vm1556, %vm535
        %vm3112 = vmand %vm1556, %vm536
        %vm3113 = vmand %vm1557, %vm535
        %vm3114 = vmand %vm1557, %vm536
        %vm3115 = vmand %vm1558, %vm535
        %vm3116 = vmand %vm1558, %vm536
        %vm3117 = vmand %vm1559, %vm535
        %vm3118 = vmand %vm1559, %vm536
        %vm3119 = vmand %vm1560, %vm535
        %vm3120 = vmand %vm1560, %vm536
        %v3121 = vsel %vm3105, %v3089, 0.0
        %v3122 = vsel %vm3106, %v3090, 0.0
        %v3123 = vsel %vm3107, %v3091, 0.0
        %v3124 = vsel %vm3108, %v3092, 0.0
        %v3125 = vsel %vm3109, %v3093, 0.0
        %v3126 = vsel %vm3110, %v3094, 0.0
        %v3127 = vsel %vm3111, %v3095, 0.0
        %v3128 = vsel %vm3112, %v3096, 0.0
        %v3129 = vsel %vm3113, %v3097, 0.0
        %v3130 = vsel %vm3114, %v3098, 0.0
        %v3131 = vsel %vm3115, %v3099, 0.0
        %v3132 = vsel %vm3116, %v3100, 0.0
        %v3133 = vsel %vm3117, %v3101, 0.0
        %v3134 = vsel %vm3118, %v3102, 0.0
        %v3135 = vsel %vm3119, %v3103, 0.0
        %v3136 = vsel %vm3120, %v3104, 0.0
        %v3137 = vadd.f32 %v3121, %v3122
        %v3138 = vadd.f32 %v3137, %v3123
        %v3139 = vadd.f32 %v3138, %v3124
        %v3140 = vadd.f32 %v3139, %v3125
        %v3141 = vadd.f32 %v3140, %v3126
        %v3142 = vadd.f32 %v3141, %v3127
        %v3143 = vadd.f32 %v3142, %v3128
        %v3144 = vadd.f32 %v3143, %v3129
        %v3145 = vadd.f32 %v3144, %v3130
        %v3146 = vadd.f32 %v3145, %v3131
        %v3147 = vadd.f32 %v3146, %v3132
        %v3148 = vadd.f32 %v3147, %v3133
        %v3149 = vadd.f32 %v3148, %v3134
        %v3150 = vadd.f32 %v3149, %v3135
        %v3151 = vadd.f32 %v3150, %v3136
        %3152 = vadd.xlane.f32.xlu0 %v3151
        %v3153 = vpop.xlane.xlu0 %3152
        %v3154 = vrot.slane %v3153, 4
        %v3155 = vadd.f32 %v3153, %v3154
        %v3156 = vrot.slane %v3155, 2
        %v3157 = vadd.f32 %v3155, %v3156
        %v3158 = vrot.slane %v3157, 1
        %v3159 = vadd.f32 %v3157, %v3158
        %s3160 = vtos %v3159
        %s3161 = sadd.f32 %s3160, 0.0
        %vm3162 = vcmp.eq.s32.totalorder %v481, 0
        %vm3163 = vcmp.eq.s32.totalorder %v503, 0
        %vm3164 = vmand %vm3162, %vm3163
        %v3165 = vstv %s761
        %v3166 = vsel %vm3164, %v3165, 0.0
        %vm3167 = vcmp.eq.s32.totalorder %v503, 1
        %vm3168 = vmand %vm3162, %vm3167
        %v3169 = vstv %s3161
        %v3170 = vsel %vm3168, %v3169, 0.0
        %v3171 = vadd.f32 %v3166, %v3170
        %3172 = vst [vmem:[%s408] sm:$0xff] %v3171
        %p3173 = scmp.eq.s32.totalorder %s25, 0
        // Predicated region
        $region53: #{human_scene_loss.1} parent=47 // pred_check
          %p3174 = pneg %p3173
        $region54: #{human_scene_loss.1} parent=47 // pred_check_branch
          %3176 = sbr.rel (%p3174) target = $region56
        $region55: #{human_scene_loss.1} parent=47 // pred_region
          %vm3177 = vcmp.eq.s32.totalorder %v503, 2
          %vm3178 = vmand %vm3162, %vm3177
          %v3179 = vadd.f32 %v658, %v659
          %v3180 = vadd.f32 %v3179, %v660
          %v3181 = vadd.f32 %v3180, %v661
          %v3182 = vadd.f32 %v3181, %v662
          %v3183 = vadd.f32 %v3182, %v663
          %v3184 = vadd.f32 %v3183, %v664
          %v3185 = vadd.f32 %v3184, %v665
          %v3186 = vadd.f32 %v3185, %v666
          %v3187 = vadd.f32 %v3186, %v667
          %v3188 = vadd.f32 %v3187, %v668
          %v3189 = vadd.f32 %v3188, %v669
          %v3190 = vadd.f32 %v3189, %v670
          %v3191 = vadd.f32 %v3190, %v671
          %v3192 = vadd.f32 %v3191, %v672
          %v3193 = vadd.f32 %v3192, %v673
          %3194 = vadd.xlane.f32.xlu0 %v3193
          %v3195 = vpop.xlane.xlu0 %3194
          %v3196 = vrot.slane %v3195, 4
          %v3197 = vadd.f32 %v3195, %v3196
          %v3198 = vrot.slane %v3197, 2
          %v3199 = vadd.f32 %v3197, %v3198
          %v3200 = vrot.slane %v3199, 1
          %v3201 = vadd.f32 %v3199, %v3200
          %s3202 = vtos %v3201
          %v3203 = vstv %s3202
          %v3204 = vsel %vm3178, %v3203, 0.0
          %v3205 = vadd.f32 %v3171, %v3204
          %3206 = vst [vmem:[%s408] sm:$0xff] %v3205
        $region56: #{human_scene_loss.1} parent=47 // pred_fallthru
          _
        %s3207 = smul.u32 8, %s26
        %p3208 = scmp.lt.s32.totalorder %s25, 2
        %s3209 = scalar_select %p3208, %s25, 2
        %p3210 = scmp.lt.s32.totalorder %s3207, 7
        %s3211 = scalar_select %p3210, %s3207, 7
        %s3212 = smul.addr %s3211, 2
        %s3213 = smul.addr %s3209, 16
        %s3214 = sadd.s32 %s3212, %s3213
        %s3215 = smul.addr %s3214, 8
        %s3216 = scalar_lea.vmem %s7, %s3215
        %p3217 = scmp.lt.s32.totalorder %s25, 2
        %s3218 = scalar_select %p3217, %s25, 2
        %p3219 = scmp.lt.s32.totalorder %s26, 0
        %s3220 = scalar_select %p3219, %s26, 0
        %s3221 = sadd.s32 %s3220, %s3218
        %s3222 = smul.addr %s3221, 8
        %s3223 = scalar_lea.vmem %s8, %s3222
        // Predicated region
        $region57: #{human_scene_loss.1} parent=47 // pred_check
          %p3224 = pneg %p215
        $region58: #{human_scene_loss.1} parent=47 // pred_check_branch
          %3226 = sbr.rel (%p3224) target = $region60
        $region59: #{human_scene_loss.1} parent=47 // pred_region
          %s3227 = smul.u32 8, %s26
        $region60: #{human_scene_loss.1} parent=47 // pred_fallthru
          _
        // Predicated region
        $region61: #{human_scene_loss.1} parent=47 // pred_check
          %p3228 = pneg %p243
        $region62: #{human_scene_loss.1} parent=47 // pred_check_branch
          %3230 = sbr.rel (%p3228) target = $region64
        $region63: #{human_scene_loss.1} parent=47 // pred_region
          _
        $region64: #{human_scene_loss.1} parent=47 // pred_fallthru
          _
      $region48: #{human_scene_loss.1} parent=5 // pred_fallthru
        _
      %p3231 = scmp.le.s32.totalorder 2, %s16
      // Predicated region
      $region65: #{human_scene_loss.1} parent=5 // pred_check
        %p3232 = pneg %p3231
      $region66: #{human_scene_loss.1} parent=5 // pred_check_branch
        %3234 = sbr.rel (%p3232) target = $region68
      $region67: #{human_scene_loss.1} parent=5 // pred_region
        %s3235 = ssub.s32 %s16, 2
        // Predicated region
        $region69: #{human_scene_loss.1} parent=67 // pred_check
          %p3236 = pneg %p221
        $region70: #{human_scene_loss.1} parent=67 // pred_check_branch
          %3238 = sbr.rel (%p3236) target = $region72
        $region71: #{human_scene_loss.1} parent=67 // pred_region
          %s3239 = smul.u32 8, %s28
          %p3240 = scmp.lt.s32.totalorder %s27, 2
          %s3241 = scalar_select %p3240, %s27, 2
          %p3242 = scmp.lt.s32.totalorder %s3239, 7
          %s3243 = scalar_select %p3242, %s3239, 7
          %s3244 = smul.addr %s3243, 2
          %s3245 = smul.addr %s3241, 16
          %s3246 = sadd.s32 %s3244, %s3245
          %s3247 = smul.addr %s3246, 8
          %s3248 = scalar_lea.vmem %s7, %s3247
        $region72: #{human_scene_loss.1} parent=67 // pred_fallthru
          _
        // Predicated region
        $region73: #{human_scene_loss.1} parent=67 // pred_check
          %p3249 = pneg %p249
        $region74: #{human_scene_loss.1} parent=67 // pred_check_branch
          %3251 = sbr.rel (%p3249) target = $region76
        $region75: #{human_scene_loss.1} parent=67 // pred_region
          %p3252 = scmp.lt.s32.totalorder %s27, 2
          %s3253 = scalar_select %p3252, %s27, 2
          %p3254 = scmp.lt.s32.totalorder %s28, 0
          %s3255 = scalar_select %p3254, %s28, 0
          %s3256 = sadd.s32 %s3255, %s3253
          %s3257 = smul.addr %s3256, 8
          %s3258 = scalar_lea.vmem %s8, %s3257
        $region76: #{human_scene_loss.1} parent=67 // pred_fallthru
          _
      $region68: #{human_scene_loss.1} parent=5 // pred_fallthru
        _
    $region6: #{human_scene_loss.1} parent=1 // loop_footer
      %s20 = sadd.s32 1, %s16
    $region7: #{human_scene_loss.1} parent=1 // loop_footer_branch
      %15 = sbr.rel target = $region3
    $region8: #{human_scene_loss.1} parent=1 // loop_exit
      _
    %3259 = vsyncpa [#allocation4], 1
    %s3260 = scalar_lea.sflag [#allocation4], 1
    %3261 = vsyncpa %s3260, 1

</llo_original>
